<compile_context>
chip_gen: v5e
topology: v5e:2x2
jax: 0.10.0
libtpu: 0.0.40
codegen_flags: <defaults>
</compile_context>

<pallas_src>
import math
import functools

import jax
import jax.numpy as jnp
from jax.experimental import pallas as pl
from jax.experimental.pallas import tpu as pltpu

NUM_HEADS = 4
_MM_DTYPE = jnp.bfloat16      # MXU input dtype; accumulation is always f32
_NEG_INF = -1e30              # additive mask bias; scores stay f32 so this is safe
_REFS_PER_FEATURE = 13        # x, mask, 4 self-attn refs, query, 6 cross-attn refs


# ----------------------------------------------------------------------------
# In-kernel helpers
# ----------------------------------------------------------------------------
def _mm(a, b):
    """2-D matmul on the MXU with bf16 inputs and f32 accumulation."""
    return jnp.dot(a.astype(_MM_DTYPE), b.astype(_MM_DTYPE),
                   preferred_element_type=jnp.float32)


def _split_heads(x, b, length, num_heads, dh):
    """(b*length, num_heads*dh) -> (b*num_heads, length, dh).

    Heads are contiguous column blocks (torch nn.MultiheadAttention layout).
    Uses only static lane slices, a leading-axis concat and layout-preserving
    reshapes (no minor-dim transposes).
    """
    parts = [x[:, h * dh:(h + 1) * dh].reshape(b, 1, length, dh)
             for h in range(num_heads)]
    return jnp.concatenate(parts, axis=1).reshape(b * num_heads, length, dh)


def _attend(q_z, k_z, v_z, bias_z, w_o3, b_o, bt, num_heads):
    """Attention batched over z = batch*heads, with folded output projection.

    q_z: (bt*H, Lq, Dh)   k_z / v_z: (bt*H, Lk, Dh)   bias_z: (bt*H, 1, Lk)
    w_o3: (H, Dh, E) bf16  b_o: (1, E) f32
    returns (bt, Lq, E) float32
    """
    lq, dh = q_z.shape[1], q_z.shape[2]
    e = w_o3.shape[-1]
    scale = 1.0 / math.sqrt(dh)

    s = jnp.einsum('zqd,zkd->zqk',
                   q_z.astype(_MM_DTYPE), k_z.astype(_MM_DTYPE),
                   preferred_element_type=jnp.float32) * scale
    s = s + bias_z                                   # broadcast over query rows
    s = s - jnp.max(s, axis=-1, keepdims=True)       # f32 softmax
    p = jnp.exp(s)
    p = p * pl.reciprocal(jnp.sum(p, axis=-1, keepdims=True), approx=True)

    ctx = jnp.einsum('zqk,zkd->zqd',
                     p.astype(_MM_DTYPE), v_z.astype(_MM_DTYPE),
                     preferred_element_type=jnp.float32)           # (bt*H, Lq, Dh)

    # Output projection folded per head: out = sum_h ctx_h @ Wo[h] + b_o.
    wo_z = jnp.broadcast_to(w_o3[None].astype(_MM_DTYPE),
                            (bt, num_heads, dh, e)).reshape(bt * num_heads, dh, e)
    part = jnp.einsum('zqd,zde->zqe',
                      ctx.astype(_MM_DTYPE), wo_z,
                      preferred_element_type=jnp.float32)          # (bt*H, Lq, E)
    return jnp.sum(part.reshape(bt, num_heads, lq, e), axis=1) + b_o


# ----------------------------------------------------------------------------
# Fused kernel: every feature's self-attn + cross-attn + predictive linear
# ----------------------------------------------------------------------------
def _attention_head_kernel(*refs, num_heads, num_features):
    n = _REFS_PER_FEATURE
    wp_ref = refs[num_features * n]          # (sum_f Q_f*E_f, OUT) bf16
    bp_ref = refs[num_features * n + 1]      # (1, OUT) f32
    out_ref = refs[num_features * n + 2]     # (1, Bt, OUT)

    bt = out_ref.shape[1]
    out_dim = out_ref.shape[2]

    wp = wp_ref[...]
    acc = jnp.zeros((bt, out_dim), jnp.float32)
    row = 0                                  # static row offset into wp

    for f in range(num_features):
        (x_ref, mask_ref, sa_wqkv, sa_bqkv, sa_wo, sa_bo,
         qry_ref, ca_wq, ca_bq, ca_wkv, ca_bkv, ca_wo, ca_bo) = \
            refs[f * n:(f + 1) * n]

        s_len, e = x_ref.shape[1], x_ref.shape[2]
        q_len = qry_ref.shape[0]
        dh = e // num_heads

        # key-padding mask -> additive bias replicated per head: (Bt*H, 1, S)
        bias = jnp.where(mask_ref[...] > 0.5, _NEG_INF, 0.0).astype(jnp.float32)
        bias_z = jnp.broadcast_to(
            bias[:, None], (bt, num_heads, 1, s_len)).reshape(bt * num_heads, 1, s_len)
        # NOTE: a fully padded row gives a uniform softmax (torch would give NaN).

        # ----------------------- self-attention -----------------------
        x2 = x_ref[...].reshape(bt * s_len, e)                     # (R, E)
        qkv = _mm(x2, sa_wqkv[...]) + sa_bqkv[...]                 # (R, 3E) f32
        q_z = _split_heads(qkv[:, :e], bt, s_len, num_heads, dh)
        k_z = _split_heads(qkv[:, e:2 * e], bt, s_len, num_heads, dh)
        v_z = _split_heads(qkv[:, 2 * e:], bt, s_len, num_heads, dh)
        attn = _attend(q_z, k_z, v_z, bias_z, sa_wo[...], sa_bo[...],
                       bt, num_heads)                              # (Bt, S, E)

        # ------------- cross-attention with learned queries -------------
        kv = _mm(attn.reshape(bt * s_len, e), ca_wkv[...]) + ca_bkv[...]   # (R, 2E)
        kc_z = _split_heads(kv[:, :e], bt, s_len, num_heads, dh)
        vc_z = _split_heads(kv[:, e:], bt, s_len, num_heads, dh)

        qp = _mm(qry_ref[...], ca_wq[...]) + ca_bq[...]            # (Q, E), batch-shared
        qh = _split_heads(qp, 1, q_len, num_heads, dh)             # (H, Q, Dh)
        qc_z = jnp.broadcast_to(
            qh[None], (bt, num_heads, q_len, dh)).reshape(bt * num_heads, q_len, dh)

        q_out = _attend(qc_z, kc_z, vc_z, bias_z, ca_wo[...], ca_bo[...],
                        bt, num_heads)                             # (Bt, Q, E)

        # -------- predictive linear folded in (no concat / flatten) --------
        for qi in range(q_len):
            acc = acc + _mm(q_out[:, qi, :], wp[row:row + e, :])
            row += e

    acc = acc + bp_ref[...]
    out_ref[0] = acc.astype(out_ref.dtype)


# ----------------------------------------------------------------------------
# Wrapper
# ----------------------------------------------------------------------------
def attention_head_forward(features, params, feature_names, *,
                           num_heads=NUM_HEADS, batch_block=None):
    """Mirrors AttentionHead.forward, in one fused pallas_call."""
    names = list(feature_names)
    num_features = len(names)
    batch = features[names[0]].shape[0]

    bt = min(batch, 8) if batch_block is None else batch_block
    while batch % bt:
        bt -= 1

    args, in_specs = [], []

    def _const_spec(arr):
        zeros = (0,) * arr.ndim
        return pl.BlockSpec(arr.shape, lambda i, _z=zeros: _z)   # grid-resident

    for name in names:
        x = features[name].astype(jnp.float32)                   # (B, S, E)
        b_, s_len, e = x.shape
        mask = features[name + "_mask"].astype(jnp.float32).reshape(b_, 1, s_len)
        p = params[name]
        sa, ca = p["self_attn"], p["cross_attn"]

        feat_args = [x, mask,
                     sa["w_qkv"], sa["b_qkv"], sa["w_o"], sa["b_o"],
                     p["query"],
                     ca["w_q"], ca["b_q"], ca["w_kv"], ca["b_kv"],
                     ca["w_o"], ca["b_o"]]
        feat_specs = [pl.BlockSpec((bt, s_len, e), lambda i: (i, 0, 0)),
                      pl.BlockSpec((bt, 1, s_len), lambda i: (i, 0, 0))]
        feat_specs += [_const_spec(a) for a in feat_args[2:]]

        args += feat_args
        in_specs += feat_specs

    wp, bp = params["predictive"]["w"], params["predictive"]["b"]
    args += [wp, bp]
    in_specs += [_const_spec(wp), _const_spec(bp)]

    out_dim = wp.shape[-1]
    kernel = functools.partial(_attention_head_kernel,
                               num_heads=num_heads, num_features=num_features)

    out = pl.pallas_call(
        kernel,
        out_shape=jax.ShapeDtypeStruct((batch // bt, bt, out_dim), jnp.float32),
        grid_spec=pltpu.PrefetchScalarGridSpec(
            num_scalar_prefetch=0,
            grid=(batch // bt,),
            in_specs=in_specs,
            out_specs=pl.BlockSpec((1, bt, out_dim), lambda i: (i, 0, 0)),
        ),
        compiler_params=pltpu.CompilerParams(
            dimension_semantics=("parallel",),       # independent batch blocks
            vmem_limit_bytes=32 * 1024 * 1024,       # safe on v5e/v6e/v7x
        ),
    )(*args)
    return out.reshape(batch, out_dim)


# ----------------------------------------------------------------------------
# Deterministic parameter init (already in the packed, kernel-friendly layout)
# ----------------------------------------------------------------------------
def _init_mha_raw(key, e):
    ks = jax.random.split(key, 8)
    s = 1.0 / math.sqrt(e)
    u = lambda k, shape: jax.random.uniform(k, shape, jnp.float32, -s, s)
    return {"wq": u(ks[0], (e, e)), "wk": u(ks[1], (e, e)), "wv": u(ks[2], (e, e)),
            "bq": u(ks[3], (1, e)), "bk": u(ks[4], (1, e)), "bv": u(ks[5], (1, e)),
            "wo": u(ks[6], (e, e)), "bo": u(ks[7], (1, e))}


def _pack_self_attn(raw, num_heads):
    e = raw["wq"].shape[0]
    dh = e // num_heads
    return {
        "w_qkv": jnp.concatenate([raw["wq"], raw["wk"], raw["wv"]], 1).astype(_MM_DTYPE),
        "b_qkv": jnp.concatenate([raw["bq"], raw["bk"], raw["bv"]], 1),
        "w_o": raw["wo"].reshape(num_heads, dh, e).astype(_MM_DTYPE),
        "b_o": raw["bo"],
    }


def _pack_cross_attn(raw, num_heads):
    e = raw["wq"].shape[0]
    dh = e // num_heads
    return {
        "w_q": raw["wq"].astype(_MM_DTYPE),
        "b_q": raw["bq"],
        "w_kv": jnp.concatenate([raw["wk"], raw["wv"]], 1).astype(_MM_DTYPE),
        "b_kv": jnp.concatenate([raw["bk"], raw["bv"]], 1),
        "w_o": raw["wo"].reshape(num_heads, dh, e).astype(_MM_DTYPE),
        "b_o": raw["bo"],
    }


if __name__ == "__main__":
    B, S, E, Q = 2, 8, 32, 2
    feature_names = ["feat_a", "feat_b"]
    OUT_DIM = 4

    key = jax.random.PRNGKey(0)
    params, features = {}, {}
    for name in feature_names:
        key, k_self, k_cross, k_q, k_x = jax.random.split(key, 5)
        params[name] = {
            "self_attn": _pack_self_attn(_init_mha_raw(k_self, E), NUM_HEADS),
            "cross_attn": _pack_cross_attn(_init_mha_raw(k_cross, E), NUM_HEADS),
            # learned queries kept as (Q, E); broadcast over batch in-kernel
            "query": (jax.random.normal(k_q, (1, Q, E), jnp.float32) * 0.1).reshape(Q, E),
        }
        features[name] = jax.random.normal(k_x, (B, S, E), jnp.float32)
        mask = jnp.zeros((B, S), jnp.float32)
        mask = mask.at[1, S - 2:].set(1.0)     # batch 1: last two keys padded
        features[name + "_mask"] = mask

    din = len(feature_names) * Q * E
    key, kw, kb = jax.random.split(key, 3)
    sp = 1.0 / math.sqrt(din)
    params["predictive"] = {
        "w": jax.random.uniform(kw, (din, OUT_DIM), jnp.float32, -sp, sp).astype(_MM_DTYPE),
        "b": jax.random.uniform(kb, (1, OUT_DIM), jnp.float32, -sp, sp),
    }

    out = attention_head_forward(features, params, feature_names)
    jax.block_until_ready(out)
    assert out.shape == (B, OUT_DIM)
    assert bool(jnp.all(jnp.isfinite(out)))
    print("KERNEL_OK")
</pallas_src>

<mosaic_0001>
module attributes {stable_mosaic.version = 11 : i64} {
  func.func @_attention_head_kernel(%arg0: i32, %arg1: memref<2x8x32xf32, #tpu.memory_space<vmem>>, %arg2: memref<2x1x8xf32, #tpu.memory_space<vmem>>, %arg3: memref<32x96xbf16, #tpu.memory_space<vmem>>, %arg4: memref<1x96xf32, #tpu.memory_space<vmem>>, %arg5: memref<4x8x32xbf16, #tpu.memory_space<vmem>>, %arg6: memref<1x32xf32, #tpu.memory_space<vmem>>, %arg7: memref<2x32xf32, #tpu.memory_space<vmem>>, %arg8: memref<32x32xbf16, #tpu.memory_space<vmem>>, %arg9: memref<1x32xf32, #tpu.memory_space<vmem>>, %arg10: memref<32x64xbf16, #tpu.memory_space<vmem>>, %arg11: memref<1x64xf32, #tpu.memory_space<vmem>>, %arg12: memref<4x8x32xbf16, #tpu.memory_space<vmem>>, %arg13: memref<1x32xf32, #tpu.memory_space<vmem>>, %arg14: memref<2x8x32xf32, #tpu.memory_space<vmem>>, %arg15: memref<2x1x8xf32, #tpu.memory_space<vmem>>, %arg16: memref<32x96xbf16, #tpu.memory_space<vmem>>, %arg17: memref<1x96xf32, #tpu.memory_space<vmem>>, %arg18: memref<4x8x32xbf16, #tpu.memory_space<vmem>>, %arg19: memref<1x32xf32, #tpu.memory_space<vmem>>, %arg20: memref<2x32xf32, #tpu.memory_space<vmem>>, %arg21: memref<32x32xbf16, #tpu.memory_space<vmem>>, %arg22: memref<1x32xf32, #tpu.memory_space<vmem>>, %arg23: memref<32x64xbf16, #tpu.memory_space<vmem>>, %arg24: memref<1x64xf32, #tpu.memory_space<vmem>>, %arg25: memref<4x8x32xbf16, #tpu.memory_space<vmem>>, %arg26: memref<1x32xf32, #tpu.memory_space<vmem>>, %arg27: memref<128x4xbf16, #tpu.memory_space<vmem>>, %arg28: memref<1x4xf32, #tpu.memory_space<vmem>>, %arg29: memref<1x2x4xf32, #tpu.memory_space<vmem>>) attributes {dimension_semantics = [#tpu.dimension_semantics<parallel>], iteration_bounds = array<i64: 1>, scalar_prefetch = 0 : i64, scratch_operands = 0 : i64, tpu.core_type = #tpu.core_type<tc>, window_params = [{transform_indices = @transform_0, window_bounds = array<i64: 2, 8, 32>}, {transform_indices = @transform_1, window_bounds = array<i64: 2, 1, 8>}, {pipeline_mode = #tpu.pipeline_mode<synchronous>, transform_indices = @transform_2, window_bounds = array<i64: 32, 96>}, {pipeline_mode = #tpu.pipeline_mode<synchronous>, transform_indices = @transform_3, window_bounds = array<i64: 1, 96>}, {pipeline_mode = #tpu.pipeline_mode<synchronous>, transform_indices = @transform_4, window_bounds = array<i64: 4, 8, 32>}, {pipeline_mode = #tpu.pipeline_mode<synchronous>, transform_indices = @transform_5, window_bounds = array<i64: 1, 32>}, {pipeline_mode = #tpu.pipeline_mode<synchronous>, transform_indices = @transform_6, window_bounds = array<i64: 2, 32>}, {pipeline_mode = #tpu.pipeline_mode<synchronous>, transform_indices = @transform_7, window_bounds = array<i64: 32, 32>}, {pipeline_mode = #tpu.pipeline_mode<synchronous>, transform_indices = @transform_8, window_bounds = array<i64: 1, 32>}, {pipeline_mode = #tpu.pipeline_mode<synchronous>, transform_indices = @transform_9, window_bounds = array<i64: 32, 64>}, {pipeline_mode = #tpu.pipeline_mode<synchronous>, transform_indices = @transform_10, window_bounds = array<i64: 1, 64>}, {pipeline_mode = #tpu.pipeline_mode<synchronous>, transform_indices = @transform_11, window_bounds = array<i64: 4, 8, 32>}, {pipeline_mode = #tpu.pipeline_mode<synchronous>, transform_indices = @transform_12, window_bounds = array<i64: 1, 32>}, {transform_indices = @transform_13, window_bounds = array<i64: 2, 8, 32>}, {transform_indices = @transform_14, window_bounds = array<i64: 2, 1, 8>}, {pipeline_mode = #tpu.pipeline_mode<synchronous>, transform_indices = @transform_15, window_bounds = array<i64: 32, 96>}, {pipeline_mode = #tpu.pipeline_mode<synchronous>, transform_indices = @transform_16, window_bounds = array<i64: 1, 96>}, {pipeline_mode = #tpu.pipeline_mode<synchronous>, transform_indices = @transform_17, window_bounds = array<i64: 4, 8, 32>}, {pipeline_mode = #tpu.pipeline_mode<synchronous>, transform_indices = @transform_18, window_bounds = array<i64: 1, 32>}, {pipeline_mode = #tpu.pipeline_mode<synchronous>, transform_indices = @transform_19, window_bounds = array<i64: 2, 32>}, {pipeline_mode = #tpu.pipeline_mode<synchronous>, transform_indices = @transform_20, window_bounds = array<i64: 32, 32>}, {pipeline_mode = #tpu.pipeline_mode<synchronous>, transform_indices = @transform_21, window_bounds = array<i64: 1, 32>}, {pipeline_mode = #tpu.pipeline_mode<synchronous>, transform_indices = @transform_22, window_bounds = array<i64: 32, 64>}, {pipeline_mode = #tpu.pipeline_mode<synchronous>, transform_indices = @transform_23, window_bounds = array<i64: 1, 64>}, {pipeline_mode = #tpu.pipeline_mode<synchronous>, transform_indices = @transform_24, window_bounds = array<i64: 4, 8, 32>}, {pipeline_mode = #tpu.pipeline_mode<synchronous>, transform_indices = @transform_25, window_bounds = array<i64: 1, 32>}, {pipeline_mode = #tpu.pipeline_mode<synchronous>, transform_indices = @transform_26, window_bounds = array<i64: 128, 4>}, {pipeline_mode = #tpu.pipeline_mode<synchronous>, transform_indices = @transform_27, window_bounds = array<i64: 1, 4>}, {transform_indices = @transform_28, window_bounds = array<i64: 1, 2, 4>}]} {
    %c0 = arith.constant 0 : index
    %c0_0 = arith.constant 0 : index
    %0 = vector.load %arg27[%c0, %c0_0] : memref<128x4xbf16, #tpu.memory_space<vmem>>, vector<128x4xbf16>
    %cst = arith.constant 0.000000e+00 : f32
    %1 = vector.broadcast %cst : f32 to vector<2x4xf32>
    %c0_1 = arith.constant 0 : index
    %c0_2 = arith.constant 0 : index
    %c0_3 = arith.constant 0 : index
    %2 = vector.load %arg2[%c0_1, %c0_2, %c0_3] : memref<2x1x8xf32, #tpu.memory_space<vmem>>, vector<2x1x8xf32>
    %cst_4 = arith.constant 5.000000e-01 : f32
    %3 = vector.broadcast %cst_4 : f32 to vector<2x1x8xf32>
    %4 = arith.cmpf ogt, %2, %3 : vector<2x1x8xf32>
    %cst_5 = arith.constant -1.000000e+30 : f32
    %cst_6 = arith.constant 0.000000e+00 : f32
    %5 = vector.broadcast %cst_5 : f32 to vector<2x1x8xf32>
    %6 = vector.broadcast %cst_6 : f32 to vector<2x1x8xf32>
    %7 = arith.select %4, %5, %6 : vector<2x1x8xi1>, vector<2x1x8xf32>
    %8 = vector.shape_cast %7 : vector<2x1x8xf32> to vector<2x1x1x8xf32>
    %9 = vector.shape_cast %8 : vector<2x1x1x8xf32> to vector<2x1x1x8xf32>
    %10 = vector.broadcast %9 : vector<2x1x1x8xf32> to vector<2x4x1x8xf32>
    %11 = vector.shape_cast %10 : vector<2x4x1x8xf32> to vector<8x1x8xf32>
    %c0_7 = arith.constant 0 : index
    %c0_8 = arith.constant 0 : index
    %c0_9 = arith.constant 0 : index
    %12 = vector.load %arg1[%c0_7, %c0_8, %c0_9] : memref<2x8x32xf32, #tpu.memory_space<vmem>>, vector<2x8x32xf32>
    %13 = vector.shape_cast %12 : vector<2x8x32xf32> to vector<16x32xf32>
    %c0_10 = arith.constant 0 : index
    %c0_11 = arith.constant 0 : index
    %14 = vector.load %arg3[%c0_10, %c0_11] : memref<32x96xbf16, #tpu.memory_space<vmem>>, vector<32x96xbf16>
    %15 = arith.truncf %13 : vector<16x32xf32> to vector<16x32xbf16>
    %cst_12 = arith.constant dense<0.000000e+00> : vector<16x96xf32>
    %16 = tpu.matmul %15, %14, %cst_12 {dimension_numbers = #tpu.dot_dimension_numbers<[1], [0], [0], [1], [0, 0, 1, 1], [], []>} : vector<16x32xbf16>, vector<32x96xbf16>, vector<16x96xf32> -> vector<16x96xf32>
    %c0_13 = arith.constant 0 : index
    %c0_14 = arith.constant 0 : index
    %17 = vector.load %arg4[%c0_13, %c0_14] : memref<1x96xf32, #tpu.memory_space<vmem>>, vector<1x96xf32>
    %18 = vector.broadcast %17 : vector<1x96xf32> to vector<16x96xf32>
    %19 = arith.addf %16, %18 : vector<16x96xf32>
    %20 = vector.extract_strided_slice %19 {offsets = [0, 0], sizes = [16, 32], strides = [1, 1]} : vector<16x96xf32> to vector<16x32xf32>
    %21 = vector.extract_strided_slice %20 {offsets = [0, 0], sizes = [16, 8], strides = [1, 1]} : vector<16x32xf32> to vector<16x8xf32>
    %22 = vector.shape_cast %21 : vector<16x8xf32> to vector<2x1x8x8xf32>
    %23 = vector.extract_strided_slice %20 {offsets = [0, 8], sizes = [16, 8], strides = [1, 1]} : vector<16x32xf32> to vector<16x8xf32>
    %24 = vector.shape_cast %23 : vector<16x8xf32> to vector<2x1x8x8xf32>
    %25 = vector.extract_strided_slice %20 {offsets = [0, 16], sizes = [16, 8], strides = [1, 1]} : vector<16x32xf32> to vector<16x8xf32>
    %26 = vector.shape_cast %25 : vector<16x8xf32> to vector<2x1x8x8xf32>
    %27 = vector.extract_strided_slice %20 {offsets = [0, 24], sizes = [16, 8], strides = [1, 1]} : vector<16x32xf32> to vector<16x8xf32>
    %28 = vector.shape_cast %27 : vector<16x8xf32> to vector<2x1x8x8xf32>
    %29 = tpu.concatenate %22, %24, %26, %28 in 1 : vector<2x1x8x8xf32>, vector<2x1x8x8xf32>, vector<2x1x8x8xf32>, vector<2x1x8x8xf32> -> vector<2x4x8x8xf32>
    %30 = vector.shape_cast %29 : vector<2x4x8x8xf32> to vector<8x8x8xf32>
    %31 = vector.extract_strided_slice %19 {offsets = [0, 32], sizes = [16, 32], strides = [1, 1]} : vector<16x96xf32> to vector<16x32xf32>
    %32 = vector.extract_strided_slice %31 {offsets = [0, 0], sizes = [16, 8], strides = [1, 1]} : vector<16x32xf32> to vector<16x8xf32>
    %33 = vector.shape_cast %32 : vector<16x8xf32> to vector<2x1x8x8xf32>
    %34 = vector.extract_strided_slice %31 {offsets = [0, 8], sizes = [16, 8], strides = [1, 1]} : vector<16x32xf32> to vector<16x8xf32>
    %35 = vector.shape_cast %34 : vector<16x8xf32> to vector<2x1x8x8xf32>
    %36 = vector.extract_strided_slice %31 {offsets = [0, 16], sizes = [16, 8], strides = [1, 1]} : vector<16x32xf32> to vector<16x8xf32>
    %37 = vector.shape_cast %36 : vector<16x8xf32> to vector<2x1x8x8xf32>
    %38 = vector.extract_strided_slice %31 {offsets = [0, 24], sizes = [16, 8], strides = [1, 1]} : vector<16x32xf32> to vector<16x8xf32>
    %39 = vector.shape_cast %38 : vector<16x8xf32> to vector<2x1x8x8xf32>
    %40 = tpu.concatenate %33, %35, %37, %39 in 1 : vector<2x1x8x8xf32>, vector<2x1x8x8xf32>, vector<2x1x8x8xf32>, vector<2x1x8x8xf32> -> vector<2x4x8x8xf32>
    %41 = vector.shape_cast %40 : vector<2x4x8x8xf32> to vector<8x8x8xf32>
    %42 = vector.extract_strided_slice %19 {offsets = [0, 64], sizes = [16, 32], strides = [1, 1]} : vector<16x96xf32> to vector<16x32xf32>
    %43 = vector.extract_strided_slice %42 {offsets = [0, 0], sizes = [16, 8], strides = [1, 1]} : vector<16x32xf32> to vector<16x8xf32>
    %44 = vector.shape_cast %43 : vector<16x8xf32> to vector<2x1x8x8xf32>
    %45 = vector.extract_strided_slice %42 {offsets = [0, 8], sizes = [16, 8], strides = [1, 1]} : vector<16x32xf32> to vector<16x8xf32>
    %46 = vector.shape_cast %45 : vector<16x8xf32> to vector<2x1x8x8xf32>
    %47 = vector.extract_strided_slice %42 {offsets = [0, 16], sizes = [16, 8], strides = [1, 1]} : vector<16x32xf32> to vector<16x8xf32>
    %48 = vector.shape_cast %47 : vector<16x8xf32> to vector<2x1x8x8xf32>
    %49 = vector.extract_strided_slice %42 {offsets = [0, 24], sizes = [16, 8], strides = [1, 1]} : vector<16x32xf32> to vector<16x8xf32>
    %50 = vector.shape_cast %49 : vector<16x8xf32> to vector<2x1x8x8xf32>
    %51 = tpu.concatenate %44, %46, %48, %50 in 1 : vector<2x1x8x8xf32>, vector<2x1x8x8xf32>, vector<2x1x8x8xf32>, vector<2x1x8x8xf32> -> vector<2x4x8x8xf32>
    %52 = vector.shape_cast %51 : vector<2x4x8x8xf32> to vector<8x8x8xf32>
    %c0_15 = arith.constant 0 : index
    %c0_16 = arith.constant 0 : index
    %c0_17 = arith.constant 0 : index
    %53 = vector.load %arg5[%c0_15, %c0_16, %c0_17] : memref<4x8x32xbf16, #tpu.memory_space<vmem>>, vector<4x8x32xbf16>
    %c0_18 = arith.constant 0 : index
    %c0_19 = arith.constant 0 : index
    %54 = vector.load %arg6[%c0_18, %c0_19] : memref<1x32xf32, #tpu.memory_space<vmem>>, vector<1x32xf32>
    %55 = arith.truncf %30 : vector<8x8x8xf32> to vector<8x8x8xbf16>
    %56 = arith.truncf %41 : vector<8x8x8xf32> to vector<8x8x8xbf16>
    "tpu.trace_start"() <{level = 10 : i32, message = "zqd,zkd->zqk"}> : () -> ()
    %cst_20 = arith.constant dense<0.000000e+00> : vector<8x8x8xf32>
    %57 = tpu.matmul %55, %56, %cst_20 {dimension_numbers = #tpu.dot_dimension_numbers<[2], [2], [1], [1], [0, 0, 0, 1, 1, 1], [0], [0]>} : vector<8x8x8xbf16>, vector<8x8x8xbf16>, vector<8x8x8xf32> -> vector<8x8x8xf32>
    "tpu.trace_stop"() : () -> ()
    %cst_21 = arith.constant 0.353553385 : f32
    %58 = vector.broadcast %cst_21 : f32 to vector<8x8x8xf32>
    %59 = arith.mulf %57, %58 : vector<8x8x8xf32>
    %60 = vector.broadcast %11 : vector<8x1x8xf32> to vector<8x8x8xf32>
    %61 = arith.addf %59, %60 : vector<8x8x8xf32>
    %cst_22 = arith.constant dense<0xFF800000> : vector<8x8xf32>
    %62 = vector.multi_reduction <maximumf>, %61, %cst_22 [2] : vector<8x8x8xf32> to vector<8x8xf32>
    %63 = vector.shape_cast %62 : vector<8x8xf32> to vector<8x8x1xf32>
    %64 = vector.broadcast %63 : vector<8x8x1xf32> to vector<8x8x8xf32>
    %65 = arith.subf %61, %64 : vector<8x8x8xf32>
    %66 = math.exp %65 : vector<8x8x8xf32>
    %cst_23 = arith.constant dense<0.000000e+00> : vector<8x8xf32>
    %67 = vector.multi_reduction <add>, %66, %cst_23 [2] : vector<8x8x8xf32> to vector<8x8xf32>
    %68 = vector.shape_cast %67 : vector<8x8xf32> to vector<8x8x1xf32>
    %69 = tpu.reciprocal %68 {approx = true} : vector<8x8x1xf32> -> vector<8x8x1xf32>
    %70 = vector.broadcast %69 : vector<8x8x1xf32> to vector<8x8x8xf32>
    %71 = arith.mulf %66, %70 : vector<8x8x8xf32>
    %72 = arith.truncf %71 : vector<8x8x8xf32> to vector<8x8x8xbf16>
    %73 = arith.truncf %52 : vector<8x8x8xf32> to vector<8x8x8xbf16>
    "tpu.trace_start"() <{level = 10 : i32, message = "zqk,zkd->zqd"}> : () -> ()
    %cst_24 = arith.constant dense<0.000000e+00> : vector<8x8x8xf32>
    %74 = tpu.matmul %72, %73, %cst_24 {dimension_numbers = #tpu.dot_dimension_numbers<[2], [1], [1], [2], [0, 0, 0, 1, 1, 2], [0], [0]>} : vector<8x8x8xbf16>, vector<8x8x8xbf16>, vector<8x8x8xf32> -> vector<8x8x8xf32>
    "tpu.trace_stop"() : () -> ()
    %75 = vector.shape_cast %53 : vector<4x8x32xbf16> to vector<1x4x8x32xbf16>
    %76 = vector.shape_cast %75 : vector<1x4x8x32xbf16> to vector<1x4x8x32xbf16>
    %77 = vector.broadcast %76 : vector<1x4x8x32xbf16> to vector<2x4x8x32xbf16>
    %78 = vector.shape_cast %77 : vector<2x4x8x32xbf16> to vector<8x8x32xbf16>
    %79 = arith.truncf %74 : vector<8x8x8xf32> to vector<8x8x8xbf16>
    "tpu.trace_start"() <{level = 10 : i32, message = "zqd,zde->zqe"}> : () -> ()
    %cst_25 = arith.constant dense<0.000000e+00> : vector<8x8x32xf32>
    %80 = tpu.matmul %79, %78, %cst_25 {dimension_numbers = #tpu.dot_dimension_numbers<[2], [1], [1], [2], [0, 0, 0, 1, 1, 2], [0], [0]>} : vector<8x8x8xbf16>, vector<8x8x32xbf16>, vector<8x8x32xf32> -> vector<8x8x32xf32>
    "tpu.trace_stop"() : () -> ()
    %81 = vector.shape_cast %80 : vector<8x8x32xf32> to vector<2x4x8x32xf32>
    %cst_26 = arith.constant dense<0.000000e+00> : vector<2x8x32xf32>
    %82 = vector.multi_reduction <add>, %81, %cst_26 [1] : vector<2x4x8x32xf32> to vector<2x8x32xf32>
    %83 = vector.shape_cast %54 : vector<1x32xf32> to vector<1x1x32xf32>
    %84 = vector.broadcast %83 : vector<1x1x32xf32> to vector<2x8x32xf32>
    %85 = arith.addf %82, %84 : vector<2x8x32xf32>
    %86 = vector.shape_cast %85 : vector<2x8x32xf32> to vector<16x32xf32>
    %c0_27 = arith.constant 0 : index
    %c0_28 = arith.constant 0 : index
    %87 = vector.load %arg10[%c0_27, %c0_28] : memref<32x64xbf16, #tpu.memory_space<vmem>>, vector<32x64xbf16>
    %88 = arith.truncf %86 : vector<16x32xf32> to vector<16x32xbf16>
    %cst_29 = arith.constant dense<0.000000e+00> : vector<16x64xf32>
    %89 = tpu.matmul %88, %87, %cst_29 {dimension_numbers = #tpu.dot_dimension_numbers<[1], [0], [0], [1], [0, 0, 1, 1], [], []>} : vector<16x32xbf16>, vector<32x64xbf16>, vector<16x64xf32> -> vector<16x64xf32>
    %c0_30 = arith.constant 0 : index
    %c0_31 = arith.constant 0 : index
    %90 = vector.load %arg11[%c0_30, %c0_31] : memref<1x64xf32, #tpu.memory_space<vmem>>, vector<1x64xf32>
    %91 = vector.broadcast %90 : vector<1x64xf32> to vector<16x64xf32>
    %92 = arith.addf %89, %91 : vector<16x64xf32>
    %93 = vector.extract_strided_slice %92 {offsets = [0, 0], sizes = [16, 32], strides = [1, 1]} : vector<16x64xf32> to vector<16x32xf32>
    %94 = vector.extract_strided_slice %93 {offsets = [0, 0], sizes = [16, 8], strides = [1, 1]} : vector<16x32xf32> to vector<16x8xf32>
    %95 = vector.shape_cast %94 : vector<16x8xf32> to vector<2x1x8x8xf32>
    %96 = vector.extract_strided_slice %93 {offsets = [0, 8], sizes = [16, 8], strides = [1, 1]} : vector<16x32xf32> to vector<16x8xf32>
    %97 = vector.shape_cast %96 : vector<16x8xf32> to vector<2x1x8x8xf32>
    %98 = vector.extract_strided_slice %93 {offsets = [0, 16], sizes = [16, 8], strides = [1, 1]} : vector<16x32xf32> to vector<16x8xf32>
    %99 = vector.shape_cast %98 : vector<16x8xf32> to vector<2x1x8x8xf32>
    %100 = vector.extract_strided_slice %93 {offsets = [0, 24], sizes = [16, 8], strides = [1, 1]} : vector<16x32xf32> to vector<16x8xf32>
    %101 = vector.shape_cast %100 : vector<16x8xf32> to vector<2x1x8x8xf32>
    %102 = tpu.concatenate %95, %97, %99, %101 in 1 : vector<2x1x8x8xf32>, vector<2x1x8x8xf32>, vector<2x1x8x8xf32>, vector<2x1x8x8xf32> -> vector<2x4x8x8xf32>
    %103 = vector.shape_cast %102 : vector<2x4x8x8xf32> to vector<8x8x8xf32>
    %104 = vector.extract_strided_slice %92 {offsets = [0, 32], sizes = [16, 32], strides = [1, 1]} : vector<16x64xf32> to vector<16x32xf32>
    %105 = vector.extract_strided_slice %104 {offsets = [0, 0], sizes = [16, 8], strides = [1, 1]} : vector<16x32xf32> to vector<16x8xf32>
    %106 = vector.shape_cast %105 : vector<16x8xf32> to vector<2x1x8x8xf32>
    %107 = vector.extract_strided_slice %104 {offsets = [0, 8], sizes = [16, 8], strides = [1, 1]} : vector<16x32xf32> to vector<16x8xf32>
    %108 = vector.shape_cast %107 : vector<16x8xf32> to vector<2x1x8x8xf32>
    %109 = vector.extract_strided_slice %104 {offsets = [0, 16], sizes = [16, 8], strides = [1, 1]} : vector<16x32xf32> to vector<16x8xf32>
    %110 = vector.shape_cast %109 : vector<16x8xf32> to vector<2x1x8x8xf32>
    %111 = vector.extract_strided_slice %104 {offsets = [0, 24], sizes = [16, 8], strides = [1, 1]} : vector<16x32xf32> to vector<16x8xf32>
    %112 = vector.shape_cast %111 : vector<16x8xf32> to vector<2x1x8x8xf32>
    %113 = tpu.concatenate %106, %108, %110, %112 in 1 : vector<2x1x8x8xf32>, vector<2x1x8x8xf32>, vector<2x1x8x8xf32>, vector<2x1x8x8xf32> -> vector<2x4x8x8xf32>
    %114 = vector.shape_cast %113 : vector<2x4x8x8xf32> to vector<8x8x8xf32>
    %c0_32 = arith.constant 0 : index
    %c0_33 = arith.constant 0 : index
    %115 = vector.load %arg7[%c0_32, %c0_33] : memref<2x32xf32, #tpu.memory_space<vmem>>, vector<2x32xf32>
    %c0_34 = arith.constant 0 : index
    %c0_35 = arith.constant 0 : index
    %116 = vector.load %arg8[%c0_34, %c0_35] : memref<32x32xbf16, #tpu.memory_space<vmem>>, vector<32x32xbf16>
    %117 = arith.truncf %115 : vector<2x32xf32> to vector<2x32xbf16>
    %cst_36 = arith.constant dense<0.000000e+00> : vector<2x32xf32>
    %118 = tpu.matmul %117, %116, %cst_36 {dimension_numbers = #tpu.dot_dimension_numbers<[1], [0], [0], [1], [0, 0, 1, 1], [], []>} : vector<2x32xbf16>, vector<32x32xbf16>, vector<2x32xf32> -> vector<2x32xf32>
    %c0_37 = arith.constant 0 : index
    %c0_38 = arith.constant 0 : index
    %119 = vector.load %arg9[%c0_37, %c0_38] : memref<1x32xf32, #tpu.memory_space<vmem>>, vector<1x32xf32>
    %120 = vector.broadcast %119 : vector<1x32xf32> to vector<2x32xf32>
    %121 = arith.addf %118, %120 : vector<2x32xf32>
    %122 = vector.extract_strided_slice %121 {offsets = [0, 0], sizes = [2, 8], strides = [1, 1]} : vector<2x32xf32> to vector<2x8xf32>
    %123 = vector.shape_cast %122 : vector<2x8xf32> to vector<1x1x2x8xf32>
    %124 = vector.extract_strided_slice %121 {offsets = [0, 8], sizes = [2, 8], strides = [1, 1]} : vector<2x32xf32> to vector<2x8xf32>
    %125 = vector.shape_cast %124 : vector<2x8xf32> to vector<1x1x2x8xf32>
    %126 = vector.extract_strided_slice %121 {offsets = [0, 16], sizes = [2, 8], strides = [1, 1]} : vector<2x32xf32> to vector<2x8xf32>
    %127 = vector.shape_cast %126 : vector<2x8xf32> to vector<1x1x2x8xf32>
    %128 = vector.extract_strided_slice %121 {offsets = [0, 24], sizes = [2, 8], strides = [1, 1]} : vector<2x32xf32> to vector<2x8xf32>
    %129 = vector.shape_cast %128 : vector<2x8xf32> to vector<1x1x2x8xf32>
    %130 = tpu.concatenate %123, %125, %127, %129 in 1 : vector<1x1x2x8xf32>, vector<1x1x2x8xf32>, vector<1x1x2x8xf32>, vector<1x1x2x8xf32> -> vector<1x4x2x8xf32>
    %131 = vector.shape_cast %130 : vector<1x4x2x8xf32> to vector<4x2x8xf32>
    %132 = vector.shape_cast %131 : vector<4x2x8xf32> to vector<1x4x2x8xf32>
    %133 = vector.shape_cast %132 : vector<1x4x2x8xf32> to vector<1x4x2x8xf32>
    %134 = vector.broadcast %133 : vector<1x4x2x8xf32> to vector<2x4x2x8xf32>
    %135 = vector.shape_cast %134 : vector<2x4x2x8xf32> to vector<8x2x8xf32>
    %c0_39 = arith.constant 0 : index
    %c0_40 = arith.constant 0 : index
    %c0_41 = arith.constant 0 : index
    %136 = vector.load %arg12[%c0_39, %c0_40, %c0_41] : memref<4x8x32xbf16, #tpu.memory_space<vmem>>, vector<4x8x32xbf16>
    %c0_42 = arith.constant 0 : index
    %c0_43 = arith.constant 0 : index
    %137 = vector.load %arg13[%c0_42, %c0_43] : memref<1x32xf32, #tpu.memory_space<vmem>>, vector<1x32xf32>
    %138 = arith.truncf %135 : vector<8x2x8xf32> to vector<8x2x8xbf16>
    %139 = arith.truncf %103 : vector<8x8x8xf32> to vector<8x8x8xbf16>
    "tpu.trace_start"() <{level = 10 : i32, message = "zqd,zkd->zqk"}> : () -> ()
    %cst_44 = arith.constant dense<0.000000e+00> : vector<8x2x8xf32>
    %140 = tpu.matmul %138, %139, %cst_44 {dimension_numbers = #tpu.dot_dimension_numbers<[2], [2], [1], [1], [0, 0, 0, 1, 1, 1], [0], [0]>} : vector<8x2x8xbf16>, vector<8x8x8xbf16>, vector<8x2x8xf32> -> vector<8x2x8xf32>
    "tpu.trace_stop"() : () -> ()
    %cst_45 = arith.constant 0.353553385 : f32
    %141 = vector.broadcast %cst_45 : f32 to vector<8x2x8xf32>
    %142 = arith.mulf %140, %141 : vector<8x2x8xf32>
    %143 = vector.broadcast %11 : vector<8x1x8xf32> to vector<8x2x8xf32>
    %144 = arith.addf %142, %143 : vector<8x2x8xf32>
    %cst_46 = arith.constant dense<0xFF800000> : vector<8x2xf32>
    %145 = vector.multi_reduction <maximumf>, %144, %cst_46 [2] : vector<8x2x8xf32> to vector<8x2xf32>
    %146 = vector.shape_cast %145 : vector<8x2xf32> to vector<8x2x1xf32>
    %147 = vector.broadcast %146 : vector<8x2x1xf32> to vector<8x2x8xf32>
    %148 = arith.subf %144, %147 : vector<8x2x8xf32>
    %149 = math.exp %148 : vector<8x2x8xf32>
    %cst_47 = arith.constant dense<0.000000e+00> : vector<8x2xf32>
    %150 = vector.multi_reduction <add>, %149, %cst_47 [2] : vector<8x2x8xf32> to vector<8x2xf32>
    %151 = vector.shape_cast %150 : vector<8x2xf32> to vector<8x2x1xf32>
    %152 = tpu.reciprocal %151 {approx = true} : vector<8x2x1xf32> -> vector<8x2x1xf32>
    %153 = vector.broadcast %152 : vector<8x2x1xf32> to vector<8x2x8xf32>
    %154 = arith.mulf %149, %153 : vector<8x2x8xf32>
    %155 = arith.truncf %154 : vector<8x2x8xf32> to vector<8x2x8xbf16>
    %156 = arith.truncf %114 : vector<8x8x8xf32> to vector<8x8x8xbf16>
    "tpu.trace_start"() <{level = 10 : i32, message = "zqk,zkd->zqd"}> : () -> ()
    %cst_48 = arith.constant dense<0.000000e+00> : vector<8x2x8xf32>
    %157 = tpu.matmul %155, %156, %cst_48 {dimension_numbers = #tpu.dot_dimension_numbers<[2], [1], [1], [2], [0, 0, 0, 1, 1, 2], [0], [0]>} : vector<8x2x8xbf16>, vector<8x8x8xbf16>, vector<8x2x8xf32> -> vector<8x2x8xf32>
    "tpu.trace_stop"() : () -> ()
    %158 = vector.shape_cast %136 : vector<4x8x32xbf16> to vector<1x4x8x32xbf16>
    %159 = vector.shape_cast %158 : vector<1x4x8x32xbf16> to vector<1x4x8x32xbf16>
    %160 = vector.broadcast %159 : vector<1x4x8x32xbf16> to vector<2x4x8x32xbf16>
    %161 = vector.shape_cast %160 : vector<2x4x8x32xbf16> to vector<8x8x32xbf16>
    %162 = arith.truncf %157 : vector<8x2x8xf32> to vector<8x2x8xbf16>
    "tpu.trace_start"() <{level = 10 : i32, message = "zqd,zde->zqe"}> : () -> ()
    %cst_49 = arith.constant dense<0.000000e+00> : vector<8x2x32xf32>
    %163 = tpu.matmul %162, %161, %cst_49 {dimension_numbers = #tpu.dot_dimension_numbers<[2], [1], [1], [2], [0, 0, 0, 1, 1, 2], [0], [0]>} : vector<8x2x8xbf16>, vector<8x8x32xbf16>, vector<8x2x32xf32> -> vector<8x2x32xf32>
    "tpu.trace_stop"() : () -> ()
    %164 = vector.shape_cast %163 : vector<8x2x32xf32> to vector<2x4x2x32xf32>
    %cst_50 = arith.constant dense<0.000000e+00> : vector<2x2x32xf32>
    %165 = vector.multi_reduction <add>, %164, %cst_50 [1] : vector<2x4x2x32xf32> to vector<2x2x32xf32>
    %166 = vector.shape_cast %137 : vector<1x32xf32> to vector<1x1x32xf32>
    %167 = vector.broadcast %166 : vector<1x1x32xf32> to vector<2x2x32xf32>
    %168 = arith.addf %165, %167 : vector<2x2x32xf32>
    %169 = vector.extract_strided_slice %168 {offsets = [0, 0, 0], sizes = [2, 1, 32], strides = [1, 1, 1]} : vector<2x2x32xf32> to vector<2x1x32xf32>
    %170 = vector.shape_cast %169 : vector<2x1x32xf32> to vector<2x32xf32>
    %171 = vector.extract_strided_slice %0 {offsets = [0, 0], sizes = [32, 4], strides = [1, 1]} : vector<128x4xbf16> to vector<32x4xbf16>
    %172 = arith.truncf %170 : vector<2x32xf32> to vector<2x32xbf16>
    %cst_51 = arith.constant dense<0.000000e+00> : vector<2x4xf32>
    %173 = tpu.matmul %172, %171, %cst_51 {dimension_numbers = #tpu.dot_dimension_numbers<[1], [0], [0], [1], [0, 0, 1, 1], [], []>} : vector<2x32xbf16>, vector<32x4xbf16>, vector<2x4xf32> -> vector<2x4xf32>
    %174 = arith.addf %1, %173 : vector<2x4xf32>
    %175 = vector.extract_strided_slice %168 {offsets = [0, 1, 0], sizes = [2, 1, 32], strides = [1, 1, 1]} : vector<2x2x32xf32> to vector<2x1x32xf32>
    %176 = vector.shape_cast %175 : vector<2x1x32xf32> to vector<2x32xf32>
    %177 = vector.extract_strided_slice %0 {offsets = [32, 0], sizes = [32, 4], strides = [1, 1]} : vector<128x4xbf16> to vector<32x4xbf16>
    %178 = arith.truncf %176 : vector<2x32xf32> to vector<2x32xbf16>
    %cst_52 = arith.constant dense<0.000000e+00> : vector<2x4xf32>
    %179 = tpu.matmul %178, %177, %cst_52 {dimension_numbers = #tpu.dot_dimension_numbers<[1], [0], [0], [1], [0, 0, 1, 1], [], []>} : vector<2x32xbf16>, vector<32x4xbf16>, vector<2x4xf32> -> vector<2x4xf32>
    %180 = arith.addf %174, %179 : vector<2x4xf32>
    %c0_53 = arith.constant 0 : index
    %c0_54 = arith.constant 0 : index
    %c0_55 = arith.constant 0 : index
    %181 = vector.load %arg15[%c0_53, %c0_54, %c0_55] : memref<2x1x8xf32, #tpu.memory_space<vmem>>, vector<2x1x8xf32>
    %cst_56 = arith.constant 5.000000e-01 : f32
    %182 = vector.broadcast %cst_56 : f32 to vector<2x1x8xf32>
    %183 = arith.cmpf ogt, %181, %182 : vector<2x1x8xf32>
    %cst_57 = arith.constant -1.000000e+30 : f32
    %cst_58 = arith.constant 0.000000e+00 : f32
    %184 = vector.broadcast %cst_57 : f32 to vector<2x1x8xf32>
    %185 = vector.broadcast %cst_58 : f32 to vector<2x1x8xf32>
    %186 = arith.select %183, %184, %185 : vector<2x1x8xi1>, vector<2x1x8xf32>
    %187 = vector.shape_cast %186 : vector<2x1x8xf32> to vector<2x1x1x8xf32>
    %188 = vector.shape_cast %187 : vector<2x1x1x8xf32> to vector<2x1x1x8xf32>
    %189 = vector.broadcast %188 : vector<2x1x1x8xf32> to vector<2x4x1x8xf32>
    %190 = vector.shape_cast %189 : vector<2x4x1x8xf32> to vector<8x1x8xf32>
    %c0_59 = arith.constant 0 : index
    %c0_60 = arith.constant 0 : index
    %c0_61 = arith.constant 0 : index
    %191 = vector.load %arg14[%c0_59, %c0_60, %c0_61] : memref<2x8x32xf32, #tpu.memory_space<vmem>>, vector<2x8x32xf32>
    %192 = vector.shape_cast %191 : vector<2x8x32xf32> to vector<16x32xf32>
    %c0_62 = arith.constant 0 : index
    %c0_63 = arith.constant 0 : index
    %193 = vector.load %arg16[%c0_62, %c0_63] : memref<32x96xbf16, #tpu.memory_space<vmem>>, vector<32x96xbf16>
    %194 = arith.truncf %192 : vector<16x32xf32> to vector<16x32xbf16>
    %cst_64 = arith.constant dense<0.000000e+00> : vector<16x96xf32>
    %195 = tpu.matmul %194, %193, %cst_64 {dimension_numbers = #tpu.dot_dimension_numbers<[1], [0], [0], [1], [0, 0, 1, 1], [], []>} : vector<16x32xbf16>, vector<32x96xbf16>, vector<16x96xf32> -> vector<16x96xf32>
    %c0_65 = arith.constant 0 : index
    %c0_66 = arith.constant 0 : index
    %196 = vector.load %arg17[%c0_65, %c0_66] : memref<1x96xf32, #tpu.memory_space<vmem>>, vector<1x96xf32>
    %197 = vector.broadcast %196 : vector<1x96xf32> to vector<16x96xf32>
    %198 = arith.addf %195, %197 : vector<16x96xf32>
    %199 = vector.extract_strided_slice %198 {offsets = [0, 0], sizes = [16, 32], strides = [1, 1]} : vector<16x96xf32> to vector<16x32xf32>
    %200 = vector.extract_strided_slice %199 {offsets = [0, 0], sizes = [16, 8], strides = [1, 1]} : vector<16x32xf32> to vector<16x8xf32>
    %201 = vector.shape_cast %200 : vector<16x8xf32> to vector<2x1x8x8xf32>
    %202 = vector.extract_strided_slice %199 {offsets = [0, 8], sizes = [16, 8], strides = [1, 1]} : vector<16x32xf32> to vector<16x8xf32>
    %203 = vector.shape_cast %202 : vector<16x8xf32> to vector<2x1x8x8xf32>
    %204 = vector.extract_strided_slice %199 {offsets = [0, 16], sizes = [16, 8], strides = [1, 1]} : vector<16x32xf32> to vector<16x8xf32>
    %205 = vector.shape_cast %204 : vector<16x8xf32> to vector<2x1x8x8xf32>
    %206 = vector.extract_strided_slice %199 {offsets = [0, 24], sizes = [16, 8], strides = [1, 1]} : vector<16x32xf32> to vector<16x8xf32>
    %207 = vector.shape_cast %206 : vector<16x8xf32> to vector<2x1x8x8xf32>
    %208 = tpu.concatenate %201, %203, %205, %207 in 1 : vector<2x1x8x8xf32>, vector<2x1x8x8xf32>, vector<2x1x8x8xf32>, vector<2x1x8x8xf32> -> vector<2x4x8x8xf32>
    %209 = vector.shape_cast %208 : vector<2x4x8x8xf32> to vector<8x8x8xf32>
    %210 = vector.extract_strided_slice %198 {offsets = [0, 32], sizes = [16, 32], strides = [1, 1]} : vector<16x96xf32> to vector<16x32xf32>
    %211 = vector.extract_strided_slice %210 {offsets = [0, 0], sizes = [16, 8], strides = [1, 1]} : vector<16x32xf32> to vector<16x8xf32>
    %212 = vector.shape_cast %211 : vector<16x8xf32> to vector<2x1x8x8xf32>
    %213 = vector.extract_strided_slice %210 {offsets = [0, 8], sizes = [16, 8], strides = [1, 1]} : vector<16x32xf32> to vector<16x8xf32>
    %214 = vector.shape_cast %213 : vector<16x8xf32> to vector<2x1x8x8xf32>
    %215 = vector.extract_strided_slice %210 {offsets = [0, 16], sizes = [16, 8], strides = [1, 1]} : vector<16x32xf32> to vector<16x8xf32>
    %216 = vector.shape_cast %215 : vector<16x8xf32> to vector<2x1x8x8xf32>
    %217 = vector.extract_strided_slice %210 {offsets = [0, 24], sizes = [16, 8], strides = [1, 1]} : vector<16x32xf32> to vector<16x8xf32>
    %218 = vector.shape_cast %217 : vector<16x8xf32> to vector<2x1x8x8xf32>
    %219 = tpu.concatenate %212, %214, %216, %218 in 1 : vector<2x1x8x8xf32>, vector<2x1x8x8xf32>, vector<2x1x8x8xf32>, vector<2x1x8x8xf32> -> vector<2x4x8x8xf32>
    %220 = vector.shape_cast %219 : vector<2x4x8x8xf32> to vector<8x8x8xf32>
    %221 = vector.extract_strided_slice %198 {offsets = [0, 64], sizes = [16, 32], strides = [1, 1]} : vector<16x96xf32> to vector<16x32xf32>
    %222 = vector.extract_strided_slice %221 {offsets = [0, 0], sizes = [16, 8], strides = [1, 1]} : vector<16x32xf32> to vector<16x8xf32>
    %223 = vector.shape_cast %222 : vector<16x8xf32> to vector<2x1x8x8xf32>
    %224 = vector.extract_strided_slice %221 {offsets = [0, 8], sizes = [16, 8], strides = [1, 1]} : vector<16x32xf32> to vector<16x8xf32>
    %225 = vector.shape_cast %224 : vector<16x8xf32> to vector<2x1x8x8xf32>
    %226 = vector.extract_strided_slice %221 {offsets = [0, 16], sizes = [16, 8], strides = [1, 1]} : vector<16x32xf32> to vector<16x8xf32>
    %227 = vector.shape_cast %226 : vector<16x8xf32> to vector<2x1x8x8xf32>
    %228 = vector.extract_strided_slice %221 {offsets = [0, 24], sizes = [16, 8], strides = [1, 1]} : vector<16x32xf32> to vector<16x8xf32>
    %229 = vector.shape_cast %228 : vector<16x8xf32> to vector<2x1x8x8xf32>
    %230 = tpu.concatenate %223, %225, %227, %229 in 1 : vector<2x1x8x8xf32>, vector<2x1x8x8xf32>, vector<2x1x8x8xf32>, vector<2x1x8x8xf32> -> vector<2x4x8x8xf32>
    %231 = vector.shape_cast %230 : vector<2x4x8x8xf32> to vector<8x8x8xf32>
    %c0_67 = arith.constant 0 : index
    %c0_68 = arith.constant 0 : index
    %c0_69 = arith.constant 0 : index
    %232 = vector.load %arg18[%c0_67, %c0_68, %c0_69] : memref<4x8x32xbf16, #tpu.memory_space<vmem>>, vector<4x8x32xbf16>
    %c0_70 = arith.constant 0 : index
    %c0_71 = arith.constant 0 : index
    %233 = vector.load %arg19[%c0_70, %c0_71] : memref<1x32xf32, #tpu.memory_space<vmem>>, vector<1x32xf32>
    %234 = arith.truncf %209 : vector<8x8x8xf32> to vector<8x8x8xbf16>
    %235 = arith.truncf %220 : vector<8x8x8xf32> to vector<8x8x8xbf16>
    "tpu.trace_start"() <{level = 10 : i32, message = "zqd,zkd->zqk"}> : () -> ()
    %cst_72 = arith.constant dense<0.000000e+00> : vector<8x8x8xf32>
    %236 = tpu.matmul %234, %235, %cst_72 {dimension_numbers = #tpu.dot_dimension_numbers<[2], [2], [1], [1], [0, 0, 0, 1, 1, 1], [0], [0]>} : vector<8x8x8xbf16>, vector<8x8x8xbf16>, vector<8x8x8xf32> -> vector<8x8x8xf32>
    "tpu.trace_stop"() : () -> ()
    %cst_73 = arith.constant 0.353553385 : f32
    %237 = vector.broadcast %cst_73 : f32 to vector<8x8x8xf32>
    %238 = arith.mulf %236, %237 : vector<8x8x8xf32>
    %239 = vector.broadcast %190 : vector<8x1x8xf32> to vector<8x8x8xf32>
    %240 = arith.addf %238, %239 : vector<8x8x8xf32>
    %cst_74 = arith.constant dense<0xFF800000> : vector<8x8xf32>
    %241 = vector.multi_reduction <maximumf>, %240, %cst_74 [2] : vector<8x8x8xf32> to vector<8x8xf32>
    %242 = vector.shape_cast %241 : vector<8x8xf32> to vector<8x8x1xf32>
    %243 = vector.broadcast %242 : vector<8x8x1xf32> to vector<8x8x8xf32>
    %244 = arith.subf %240, %243 : vector<8x8x8xf32>
    %245 = math.exp %244 : vector<8x8x8xf32>
    %cst_75 = arith.constant dense<0.000000e+00> : vector<8x8xf32>
    %246 = vector.multi_reduction <add>, %245, %cst_75 [2] : vector<8x8x8xf32> to vector<8x8xf32>
    %247 = vector.shape_cast %246 : vector<8x8xf32> to vector<8x8x1xf32>
    %248 = tpu.reciprocal %247 {approx = true} : vector<8x8x1xf32> -> vector<8x8x1xf32>
    %249 = vector.broadcast %248 : vector<8x8x1xf32> to vector<8x8x8xf32>
    %250 = arith.mulf %245, %249 : vector<8x8x8xf32>
    %251 = arith.truncf %250 : vector<8x8x8xf32> to vector<8x8x8xbf16>
    %252 = arith.truncf %231 : vector<8x8x8xf32> to vector<8x8x8xbf16>
    "tpu.trace_start"() <{level = 10 : i32, message = "zqk,zkd->zqd"}> : () -> ()
    %cst_76 = arith.constant dense<0.000000e+00> : vector<8x8x8xf32>
    %253 = tpu.matmul %251, %252, %cst_76 {dimension_numbers = #tpu.dot_dimension_numbers<[2], [1], [1], [2], [0, 0, 0, 1, 1, 2], [0], [0]>} : vector<8x8x8xbf16>, vector<8x8x8xbf16>, vector<8x8x8xf32> -> vector<8x8x8xf32>
    "tpu.trace_stop"() : () -> ()
    %254 = vector.shape_cast %232 : vector<4x8x32xbf16> to vector<1x4x8x32xbf16>
    %255 = vector.shape_cast %254 : vector<1x4x8x32xbf16> to vector<1x4x8x32xbf16>
    %256 = vector.broadcast %255 : vector<1x4x8x32xbf16> to vector<2x4x8x32xbf16>
    %257 = vector.shape_cast %256 : vector<2x4x8x32xbf16> to vector<8x8x32xbf16>
    %258 = arith.truncf %253 : vector<8x8x8xf32> to vector<8x8x8xbf16>
    "tpu.trace_start"() <{level = 10 : i32, message = "zqd,zde->zqe"}> : () -> ()
    %cst_77 = arith.constant dense<0.000000e+00> : vector<8x8x32xf32>
    %259 = tpu.matmul %258, %257, %cst_77 {dimension_numbers = #tpu.dot_dimension_numbers<[2], [1], [1], [2], [0, 0, 0, 1, 1, 2], [0], [0]>} : vector<8x8x8xbf16>, vector<8x8x32xbf16>, vector<8x8x32xf32> -> vector<8x8x32xf32>
    "tpu.trace_stop"() : () -> ()
    %260 = vector.shape_cast %259 : vector<8x8x32xf32> to vector<2x4x8x32xf32>
    %cst_78 = arith.constant dense<0.000000e+00> : vector<2x8x32xf32>
    %261 = vector.multi_reduction <add>, %260, %cst_78 [1] : vector<2x4x8x32xf32> to vector<2x8x32xf32>
    %262 = vector.shape_cast %233 : vector<1x32xf32> to vector<1x1x32xf32>
    %263 = vector.broadcast %262 : vector<1x1x32xf32> to vector<2x8x32xf32>
    %264 = arith.addf %261, %263 : vector<2x8x32xf32>
    %265 = vector.shape_cast %264 : vector<2x8x32xf32> to vector<16x32xf32>
    %c0_79 = arith.constant 0 : index
    %c0_80 = arith.constant 0 : index
    %266 = vector.load %arg23[%c0_79, %c0_80] : memref<32x64xbf16, #tpu.memory_space<vmem>>, vector<32x64xbf16>
    %267 = arith.truncf %265 : vector<16x32xf32> to vector<16x32xbf16>
    %cst_81 = arith.constant dense<0.000000e+00> : vector<16x64xf32>
    %268 = tpu.matmul %267, %266, %cst_81 {dimension_numbers = #tpu.dot_dimension_numbers<[1], [0], [0], [1], [0, 0, 1, 1], [], []>} : vector<16x32xbf16>, vector<32x64xbf16>, vector<16x64xf32> -> vector<16x64xf32>
    %c0_82 = arith.constant 0 : index
    %c0_83 = arith.constant 0 : index
    %269 = vector.load %arg24[%c0_82, %c0_83] : memref<1x64xf32, #tpu.memory_space<vmem>>, vector<1x64xf32>
    %270 = vector.broadcast %269 : vector<1x64xf32> to vector<16x64xf32>
    %271 = arith.addf %268, %270 : vector<16x64xf32>
    %272 = vector.extract_strided_slice %271 {offsets = [0, 0], sizes = [16, 32], strides = [1, 1]} : vector<16x64xf32> to vector<16x32xf32>
    %273 = vector.extract_strided_slice %272 {offsets = [0, 0], sizes = [16, 8], strides = [1, 1]} : vector<16x32xf32> to vector<16x8xf32>
    %274 = vector.shape_cast %273 : vector<16x8xf32> to vector<2x1x8x8xf32>
    %275 = vector.extract_strided_slice %272 {offsets = [0, 8], sizes = [16, 8], strides = [1, 1]} : vector<16x32xf32> to vector<16x8xf32>
    %276 = vector.shape_cast %275 : vector<16x8xf32> to vector<2x1x8x8xf32>
    %277 = vector.extract_strided_slice %272 {offsets = [0, 16], sizes = [16, 8], strides = [1, 1]} : vector<16x32xf32> to vector<16x8xf32>
    %278 = vector.shape_cast %277 : vector<16x8xf32> to vector<2x1x8x8xf32>
    %279 = vector.extract_strided_slice %272 {offsets = [0, 24], sizes = [16, 8], strides = [1, 1]} : vector<16x32xf32> to vector<16x8xf32>
    %280 = vector.shape_cast %279 : vector<16x8xf32> to vector<2x1x8x8xf32>
    %281 = tpu.concatenate %274, %276, %278, %280 in 1 : vector<2x1x8x8xf32>, vector<2x1x8x8xf32>, vector<2x1x8x8xf32>, vector<2x1x8x8xf32> -> vector<2x4x8x8xf32>
    %282 = vector.shape_cast %281 : vector<2x4x8x8xf32> to vector<8x8x8xf32>
    %283 = vector.extract_strided_slice %271 {offsets = [0, 32], sizes = [16, 32], strides = [1, 1]} : vector<16x64xf32> to vector<16x32xf32>
    %284 = vector.extract_strided_slice %283 {offsets = [0, 0], sizes = [16, 8], strides = [1, 1]} : vector<16x32xf32> to vector<16x8xf32>
    %285 = vector.shape_cast %284 : vector<16x8xf32> to vector<2x1x8x8xf32>
    %286 = vector.extract_strided_slice %283 {offsets = [0, 8], sizes = [16, 8], strides = [1, 1]} : vector<16x32xf32> to vector<16x8xf32>
    %287 = vector.shape_cast %286 : vector<16x8xf32> to vector<2x1x8x8xf32>
    %288 = vector.extract_strided_slice %283 {offsets = [0, 16], sizes = [16, 8], strides = [1, 1]} : vector<16x32xf32> to vector<16x8xf32>
    %289 = vector.shape_cast %288 : vector<16x8xf32> to vector<2x1x8x8xf32>
    %290 = vector.extract_strided_slice %283 {offsets = [0, 24], sizes = [16, 8], strides = [1, 1]} : vector<16x32xf32> to vector<16x8xf32>
    %291 = vector.shape_cast %290 : vector<16x8xf32> to vector<2x1x8x8xf32>
    %292 = tpu.concatenate %285, %287, %289, %291 in 1 : vector<2x1x8x8xf32>, vector<2x1x8x8xf32>, vector<2x1x8x8xf32>, vector<2x1x8x8xf32> -> vector<2x4x8x8xf32>
    %293 = vector.shape_cast %292 : vector<2x4x8x8xf32> to vector<8x8x8xf32>
    %c0_84 = arith.constant 0 : index
    %c0_85 = arith.constant 0 : index
    %294 = vector.load %arg20[%c0_84, %c0_85] : memref<2x32xf32, #tpu.memory_space<vmem>>, vector<2x32xf32>
    %c0_86 = arith.constant 0 : index
    %c0_87 = arith.constant 0 : index
    %295 = vector.load %arg21[%c0_86, %c0_87] : memref<32x32xbf16, #tpu.memory_space<vmem>>, vector<32x32xbf16>
    %296 = arith.truncf %294 : vector<2x32xf32> to vector<2x32xbf16>
    %cst_88 = arith.constant dense<0.000000e+00> : vector<2x32xf32>
    %297 = tpu.matmul %296, %295, %cst_88 {dimension_numbers = #tpu.dot_dimension_numbers<[1], [0], [0], [1], [0, 0, 1, 1], [], []>} : vector<2x32xbf16>, vector<32x32xbf16>, vector<2x32xf32> -> vector<2x32xf32>
    %c0_89 = arith.constant 0 : index
    %c0_90 = arith.constant 0 : index
    %298 = vector.load %arg22[%c0_89, %c0_90] : memref<1x32xf32, #tpu.memory_space<vmem>>, vector<1x32xf32>
    %299 = vector.broadcast %298 : vector<1x32xf32> to vector<2x32xf32>
    %300 = arith.addf %297, %299 : vector<2x32xf32>
    %301 = vector.extract_strided_slice %300 {offsets = [0, 0], sizes = [2, 8], strides = [1, 1]} : vector<2x32xf32> to vector<2x8xf32>
    %302 = vector.shape_cast %301 : vector<2x8xf32> to vector<1x1x2x8xf32>
    %303 = vector.extract_strided_slice %300 {offsets = [0, 8], sizes = [2, 8], strides = [1, 1]} : vector<2x32xf32> to vector<2x8xf32>
    %304 = vector.shape_cast %303 : vector<2x8xf32> to vector<1x1x2x8xf32>
    %305 = vector.extract_strided_slice %300 {offsets = [0, 16], sizes = [2, 8], strides = [1, 1]} : vector<2x32xf32> to vector<2x8xf32>
    %306 = vector.shape_cast %305 : vector<2x8xf32> to vector<1x1x2x8xf32>
    %307 = vector.extract_strided_slice %300 {offsets = [0, 24], sizes = [2, 8], strides = [1, 1]} : vector<2x32xf32> to vector<2x8xf32>
    %308 = vector.shape_cast %307 : vector<2x8xf32> to vector<1x1x2x8xf32>
    %309 = tpu.concatenate %302, %304, %306, %308 in 1 : vector<1x1x2x8xf32>, vector<1x1x2x8xf32>, vector<1x1x2x8xf32>, vector<1x1x2x8xf32> -> vector<1x4x2x8xf32>
    %310 = vector.shape_cast %309 : vector<1x4x2x8xf32> to vector<4x2x8xf32>
    %311 = vector.shape_cast %310 : vector<4x2x8xf32> to vector<1x4x2x8xf32>
    %312 = vector.shape_cast %311 : vector<1x4x2x8xf32> to vector<1x4x2x8xf32>
    %313 = vector.broadcast %312 : vector<1x4x2x8xf32> to vector<2x4x2x8xf32>
    %314 = vector.shape_cast %313 : vector<2x4x2x8xf32> to vector<8x2x8xf32>
    %c0_91 = arith.constant 0 : index
    %c0_92 = arith.constant 0 : index
    %c0_93 = arith.constant 0 : index
    %315 = vector.load %arg25[%c0_91, %c0_92, %c0_93] : memref<4x8x32xbf16, #tpu.memory_space<vmem>>, vector<4x8x32xbf16>
    %c0_94 = arith.constant 0 : index
    %c0_95 = arith.constant 0 : index
    %316 = vector.load %arg26[%c0_94, %c0_95] : memref<1x32xf32, #tpu.memory_space<vmem>>, vector<1x32xf32>
    %317 = arith.truncf %314 : vector<8x2x8xf32> to vector<8x2x8xbf16>
    %318 = arith.truncf %282 : vector<8x8x8xf32> to vector<8x8x8xbf16>
    "tpu.trace_start"() <{level = 10 : i32, message = "zqd,zkd->zqk"}> : () -> ()
    %cst_96 = arith.constant dense<0.000000e+00> : vector<8x2x8xf32>
    %319 = tpu.matmul %317, %318, %cst_96 {dimension_numbers = #tpu.dot_dimension_numbers<[2], [2], [1], [1], [0, 0, 0, 1, 1, 1], [0], [0]>} : vector<8x2x8xbf16>, vector<8x8x8xbf16>, vector<8x2x8xf32> -> vector<8x2x8xf32>
    "tpu.trace_stop"() : () -> ()
    %cst_97 = arith.constant 0.353553385 : f32
    %320 = vector.broadcast %cst_97 : f32 to vector<8x2x8xf32>
    %321 = arith.mulf %319, %320 : vector<8x2x8xf32>
    %322 = vector.broadcast %190 : vector<8x1x8xf32> to vector<8x2x8xf32>
    %323 = arith.addf %321, %322 : vector<8x2x8xf32>
    %cst_98 = arith.constant dense<0xFF800000> : vector<8x2xf32>
    %324 = vector.multi_reduction <maximumf>, %323, %cst_98 [2] : vector<8x2x8xf32> to vector<8x2xf32>
    %325 = vector.shape_cast %324 : vector<8x2xf32> to vector<8x2x1xf32>
    %326 = vector.broadcast %325 : vector<8x2x1xf32> to vector<8x2x8xf32>
    %327 = arith.subf %323, %326 : vector<8x2x8xf32>
    %328 = math.exp %327 : vector<8x2x8xf32>
    %cst_99 = arith.constant dense<0.000000e+00> : vector<8x2xf32>
    %329 = vector.multi_reduction <add>, %328, %cst_99 [2] : vector<8x2x8xf32> to vector<8x2xf32>
    %330 = vector.shape_cast %329 : vector<8x2xf32> to vector<8x2x1xf32>
    %331 = tpu.reciprocal %330 {approx = true} : vector<8x2x1xf32> -> vector<8x2x1xf32>
    %332 = vector.broadcast %331 : vector<8x2x1xf32> to vector<8x2x8xf32>
    %333 = arith.mulf %328, %332 : vector<8x2x8xf32>
    %334 = arith.truncf %333 : vector<8x2x8xf32> to vector<8x2x8xbf16>
    %335 = arith.truncf %293 : vector<8x8x8xf32> to vector<8x8x8xbf16>
    "tpu.trace_start"() <{level = 10 : i32, message = "zqk,zkd->zqd"}> : () -> ()
    %cst_100 = arith.constant dense<0.000000e+00> : vector<8x2x8xf32>
    %336 = tpu.matmul %334, %335, %cst_100 {dimension_numbers = #tpu.dot_dimension_numbers<[2], [1], [1], [2], [0, 0, 0, 1, 1, 2], [0], [0]>} : vector<8x2x8xbf16>, vector<8x8x8xbf16>, vector<8x2x8xf32> -> vector<8x2x8xf32>
    "tpu.trace_stop"() : () -> ()
    %337 = vector.shape_cast %315 : vector<4x8x32xbf16> to vector<1x4x8x32xbf16>
    %338 = vector.shape_cast %337 : vector<1x4x8x32xbf16> to vector<1x4x8x32xbf16>
    %339 = vector.broadcast %338 : vector<1x4x8x32xbf16> to vector<2x4x8x32xbf16>
    %340 = vector.shape_cast %339 : vector<2x4x8x32xbf16> to vector<8x8x32xbf16>
    %341 = arith.truncf %336 : vector<8x2x8xf32> to vector<8x2x8xbf16>
    "tpu.trace_start"() <{level = 10 : i32, message = "zqd,zde->zqe"}> : () -> ()
    %cst_101 = arith.constant dense<0.000000e+00> : vector<8x2x32xf32>
    %342 = tpu.matmul %341, %340, %cst_101 {dimension_numbers = #tpu.dot_dimension_numbers<[2], [1], [1], [2], [0, 0, 0, 1, 1, 2], [0], [0]>} : vector<8x2x8xbf16>, vector<8x8x32xbf16>, vector<8x2x32xf32> -> vector<8x2x32xf32>
    "tpu.trace_stop"() : () -> ()
    %343 = vector.shape_cast %342 : vector<8x2x32xf32> to vector<2x4x2x32xf32>
    %cst_102 = arith.constant dense<0.000000e+00> : vector<2x2x32xf32>
    %344 = vector.multi_reduction <add>, %343, %cst_102 [1] : vector<2x4x2x32xf32> to vector<2x2x32xf32>
    %345 = vector.shape_cast %316 : vector<1x32xf32> to vector<1x1x32xf32>
    %346 = vector.broadcast %345 : vector<1x1x32xf32> to vector<2x2x32xf32>
    %347 = arith.addf %344, %346 : vector<2x2x32xf32>
    %348 = vector.extract_strided_slice %347 {offsets = [0, 0, 0], sizes = [2, 1, 32], strides = [1, 1, 1]} : vector<2x2x32xf32> to vector<2x1x32xf32>
    %349 = vector.shape_cast %348 : vector<2x1x32xf32> to vector<2x32xf32>
    %350 = vector.extract_strided_slice %0 {offsets = [64, 0], sizes = [32, 4], strides = [1, 1]} : vector<128x4xbf16> to vector<32x4xbf16>
    %351 = arith.truncf %349 : vector<2x32xf32> to vector<2x32xbf16>
    %cst_103 = arith.constant dense<0.000000e+00> : vector<2x4xf32>
    %352 = tpu.matmul %351, %350, %cst_103 {dimension_numbers = #tpu.dot_dimension_numbers<[1], [0], [0], [1], [0, 0, 1, 1], [], []>} : vector<2x32xbf16>, vector<32x4xbf16>, vector<2x4xf32> -> vector<2x4xf32>
    %353 = arith.addf %180, %352 : vector<2x4xf32>
    %354 = vector.extract_strided_slice %347 {offsets = [0, 1, 0], sizes = [2, 1, 32], strides = [1, 1, 1]} : vector<2x2x32xf32> to vector<2x1x32xf32>
    %355 = vector.shape_cast %354 : vector<2x1x32xf32> to vector<2x32xf32>
    %356 = vector.extract_strided_slice %0 {offsets = [96, 0], sizes = [32, 4], strides = [1, 1]} : vector<128x4xbf16> to vector<32x4xbf16>
    %357 = arith.truncf %355 : vector<2x32xf32> to vector<2x32xbf16>
    %cst_104 = arith.constant dense<0.000000e+00> : vector<2x4xf32>
    %358 = tpu.matmul %357, %356, %cst_104 {dimension_numbers = #tpu.dot_dimension_numbers<[1], [0], [0], [1], [0, 0, 1, 1], [], []>} : vector<2x32xbf16>, vector<32x4xbf16>, vector<2x4xf32> -> vector<2x4xf32>
    %359 = arith.addf %353, %358 : vector<2x4xf32>
    %c0_105 = arith.constant 0 : index
    %c0_106 = arith.constant 0 : index
    %360 = vector.load %arg28[%c0_105, %c0_106] : memref<1x4xf32, #tpu.memory_space<vmem>>, vector<1x4xf32>
    %361 = vector.broadcast %360 : vector<1x4xf32> to vector<2x4xf32>
    %362 = arith.addf %359, %361 : vector<2x4xf32>
    %c0_107 = arith.constant 0 : index
    %c0_108 = arith.constant 0 : index
    %c0_109 = arith.constant 0 : index
    %363 = vector.load %arg29[%c0_107, %c0_108, %c0_109] : memref<1x2x4xf32, #tpu.memory_space<vmem>>, vector<1x2x4xf32>
    %364 = vector.shape_cast %363 : vector<1x2x4xf32> to vector<2x4xf32>
    %365 = vector.shape_cast %362 : vector<2x4xf32> to vector<1x2x4xf32>
    tpu.vector_store %arg29[%c0_107, %c0_108, %c0_109], %365 {strides = array<i32>} : memref<1x2x4xf32, #tpu.memory_space<vmem>>, vector<1x2x4xf32>,
    return
  }
  func.func @transform_0(%arg0: i32) -> (i32, i32, i32) {
    %c0_i32 = arith.constant 0 : i32
    %c0_i32_0 = arith.constant 0 : i32
    %c0_i32_1 = arith.constant 0 : i32
    return %arg0, %c0_i32, %c0_i32_0 : i32, i32, i32
  }
  func.func @transform_1(%arg0: i32) -> (i32, i32, i32) {
    %c0_i32 = arith.constant 0 : i32
    %c0_i32_0 = arith.constant 0 : i32
    %c0_i32_1 = arith.constant 0 : i32
    return %arg0, %c0_i32, %c0_i32_0 : i32, i32, i32
  }
  func.func @transform_2(%arg0: i32) -> (i32, i32) {
    %c0_i32 = arith.constant 0 : i32
    %c0_i32_0 = arith.constant 0 : i32
    %c0_i32_1 = arith.constant 0 : i32
    return %c0_i32, %c0_i32_0 : i32, i32
  }
  func.func @transform_3(%arg0: i32) -> (i32, i32) {
    %c0_i32 = arith.constant 0 : i32
    %c0_i32_0 = arith.constant 0 : i32
    %c0_i32_1 = arith.constant 0 : i32
    return %c0_i32, %c0_i32_0 : i32, i32
  }
  func.func @transform_4(%arg0: i32) -> (i32, i32, i32) {
    %c0_i32 = arith.constant 0 : i32
    %c0_i32_0 = arith.constant 0 : i32
    %c0_i32_1 = arith.constant 0 : i32
    %c0_i32_2 = arith.constant 0 : i32
    return %c0_i32, %c0_i32_0, %c0_i32_1 : i32, i32, i32
  }
  func.func @transform_5(%arg0: i32) -> (i32, i32) {
    %c0_i32 = arith.constant 0 : i32
    %c0_i32_0 = arith.constant 0 : i32
    %c0_i32_1 = arith.constant 0 : i32
    return %c0_i32, %c0_i32_0 : i32, i32
  }
  func.func @transform_6(%arg0: i32) -> (i32, i32) {
    %c0_i32 = arith.constant 0 : i32
    %c0_i32_0 = arith.constant 0 : i32
    %c0_i32_1 = arith.constant 0 : i32
    return %c0_i32, %c0_i32_0 : i32, i32
  }
  func.func @transform_7(%arg0: i32) -> (i32, i32) {
    %c0_i32 = arith.constant 0 : i32
    %c0_i32_0 = arith.constant 0 : i32
    %c0_i32_1 = arith.constant 0 : i32
    return %c0_i32, %c0_i32_0 : i32, i32
  }
  func.func @transform_8(%arg0: i32) -> (i32, i32) {
    %c0_i32 = arith.constant 0 : i32
    %c0_i32_0 = arith.constant 0 : i32
    %c0_i32_1 = arith.constant 0 : i32
    return %c0_i32, %c0_i32_0 : i32, i32
  }
  func.func @transform_9(%arg0: i32) -> (i32, i32) {
    %c0_i32 = arith.constant 0 : i32
    %c0_i32_0 = arith.constant 0 : i32
    %c0_i32_1 = arith.constant 0 : i32
    return %c0_i32, %c0_i32_0 : i32, i32
  }
  func.func @transform_10(%arg0: i32) -> (i32, i32) {
    %c0_i32 = arith.constant 0 : i32
    %c0_i32_0 = arith.constant 0 : i32
    %c0_i32_1 = arith.constant 0 : i32
    return %c0_i32, %c0_i32_0 : i32, i32
  }
  func.func @transform_11(%arg0: i32) -> (i32, i32, i32) {
    %c0_i32 = arith.constant 0 : i32
    %c0_i32_0 = arith.constant 0 : i32
    %c0_i32_1 = arith.constant 0 : i32
    %c0_i32_2 = arith.constant 0 : i32
    return %c0_i32, %c0_i32_0, %c0_i32_1 : i32, i32, i32
  }
  func.func @transform_12(%arg0: i32) -> (i32, i32) {
    %c0_i32 = arith.constant 0 : i32
    %c0_i32_0 = arith.constant 0 : i32
    %c0_i32_1 = arith.constant 0 : i32
    return %c0_i32, %c0_i32_0 : i32, i32
  }
  func.func @transform_13(%arg0: i32) -> (i32, i32, i32) {
    %c0_i32 = arith.constant 0 : i32
    %c0_i32_0 = arith.constant 0 : i32
    %c0_i32_1 = arith.constant 0 : i32
    return %arg0, %c0_i32, %c0_i32_0 : i32, i32, i32
  }
  func.func @transform_14(%arg0: i32) -> (i32, i32, i32) {
    %c0_i32 = arith.constant 0 : i32
    %c0_i32_0 = arith.constant 0 : i32
    %c0_i32_1 = arith.constant 0 : i32
    return %arg0, %c0_i32, %c0_i32_0 : i32, i32, i32
  }
  func.func @transform_15(%arg0: i32) -> (i32, i32) {
    %c0_i32 = arith.constant 0 : i32
    %c0_i32_0 = arith.constant 0 : i32
    %c0_i32_1 = arith.constant 0 : i32
    return %c0_i32, %c0_i32_0 : i32, i32
  }
  func.func @transform_16(%arg0: i32) -> (i32, i32) {
    %c0_i32 = arith.constant 0 : i32
    %c0_i32_0 = arith.constant 0 : i32
    %c0_i32_1 = arith.constant 0 : i32
    return %c0_i32, %c0_i32_0 : i32, i32
  }
  func.func @transform_17(%arg0: i32) -> (i32, i32, i32) {
    %c0_i32 = arith.constant 0 : i32
    %c0_i32_0 = arith.constant 0 : i32
    %c0_i32_1 = arith.constant 0 : i32
    %c0_i32_2 = arith.constant 0 : i32
    return %c0_i32, %c0_i32_0, %c0_i32_1 : i32, i32, i32
  }
  func.func @transform_18(%arg0: i32) -> (i32, i32) {
    %c0_i32 = arith.constant 0 : i32
    %c0_i32_0 = arith.constant 0 : i32
    %c0_i32_1 = arith.constant 0 : i32
    return %c0_i32, %c0_i32_0 : i32, i32
  }
  func.func @transform_19(%arg0: i32) -> (i32, i32) {
    %c0_i32 = arith.constant 0 : i32
    %c0_i32_0 = arith.constant 0 : i32
    %c0_i32_1 = arith.constant 0 : i32
    return %c0_i32, %c0_i32_0 : i32, i32
  }
  func.func @transform_20(%arg0: i32) -> (i32, i32) {
    %c0_i32 = arith.constant 0 : i32
    %c0_i32_0 = arith.constant 0 : i32
    %c0_i32_1 = arith.constant 0 : i32
    return %c0_i32, %c0_i32_0 : i32, i32
  }
  func.func @transform_21(%arg0: i32) -> (i32, i32) {
    %c0_i32 = arith.constant 0 : i32
    %c0_i32_0 = arith.constant 0 : i32
    %c0_i32_1 = arith.constant 0 : i32
    return %c0_i32, %c0_i32_0 : i32, i32
  }
  func.func @transform_22(%arg0: i32) -> (i32, i32) {
    %c0_i32 = arith.constant 0 : i32
    %c0_i32_0 = arith.constant 0 : i32
    %c0_i32_1 = arith.constant 0 : i32
    return %c0_i32, %c0_i32_0 : i32, i32
  }
  func.func @transform_23(%arg0: i32) -> (i32, i32) {
    %c0_i32 = arith.constant 0 : i32
    %c0_i32_0 = arith.constant 0 : i32
    %c0_i32_1 = arith.constant 0 : i32
    return %c0_i32, %c0_i32_0 : i32, i32
  }
  func.func @transform_24(%arg0: i32) -> (i32, i32, i32) {
    %c0_i32 = arith.constant 0 : i32
    %c0_i32_0 = arith.constant 0 : i32
    %c0_i32_1 = arith.constant 0 : i32
    %c0_i32_2 = arith.constant 0 : i32
    return %c0_i32, %c0_i32_0, %c0_i32_1 : i32, i32, i32
  }
  func.func @transform_25(%arg0: i32) -> (i32, i32) {
    %c0_i32 = arith.constant 0 : i32
    %c0_i32_0 = arith.constant 0 : i32
    %c0_i32_1 = arith.constant 0 : i32
    return %c0_i32, %c0_i32_0 : i32, i32
  }
  func.func @transform_26(%arg0: i32) -> (i32, i32) {
    %c0_i32 = arith.constant 0 : i32
    %c0_i32_0 = arith.constant 0 : i32
    %c0_i32_1 = arith.constant 0 : i32
    return %c0_i32, %c0_i32_0 : i32, i32
  }
  func.func @transform_27(%arg0: i32) -> (i32, i32) {
    %c0_i32 = arith.constant 0 : i32
    %c0_i32_0 = arith.constant 0 : i32
    %c0_i32_1 = arith.constant 0 : i32
    return %c0_i32, %c0_i32_0 : i32, i32
  }
  func.func @transform_28(%arg0: i32) -> (i32, i32, i32) {
    %c0_i32 = arith.constant 0 : i32
    %c0_i32_0 = arith.constant 0 : i32
    %c0_i32_1 = arith.constant 0 : i32
    return %arg0, %c0_i32, %c0_i32_0 : i32, i32, i32
  }
}

</mosaic_0001>

<llo_original>
// kernel: tpu_custom_call.1
$region0: #{tpu_custom_call.1}
  #allocation0 [shape = 'u32[]', space=smem, size = 0x4, offset = 0x4, fixed_abs, tag = 'smem constant byte address 0x4 - core index']
  #allocation1 [shape = 'u32[72,128]{1,0:T(1,128)}', space=vmem, size = 0x9000, scoped, tag = 'internal scratch']
  %s0 = inlined_call_operand.vmem [shape: f32[2,8,32], index: 0, kind: input, shape index: {}]
  %s1 = inlined_call_operand.vmem [shape: f32[2,1,8], index: 1, kind: input, shape index: {}]
  %s2 = inlined_call_operand.vmem [shape: bf16[32,96], index: 2, kind: input, shape index: {}]
  %s3 = inlined_call_operand.hbm [shape: f32[1,96], index: 3, kind: input, shape index: {}]
  %s4 = inlined_call_operand.vmem [shape: bf16[4,8,32], index: 4, kind: input, shape index: {}]
  %s5 = inlined_call_operand.hbm [shape: f32[1,32], index: 5, kind: input, shape index: {}]
  %s6 = inlined_call_operand.hbm [shape: f32[2,32], index: 6, kind: input, shape index: {}]
  %s7 = inlined_call_operand.vmem [shape: bf16[32,32], index: 7, kind: input, shape index: {}]
  %s8 = inlined_call_operand.hbm [shape: f32[1,32], index: 8, kind: input, shape index: {}]
  %s9 = inlined_call_operand.hbm [shape: bf16[32,64], index: 9, kind: input, shape index: {}]
  %s10 = inlined_call_operand.hbm [shape: f32[1,64], index: 10, kind: input, shape index: {}]
  %s11 = inlined_call_operand.hbm [shape: bf16[4,8,32], index: 11, kind: input, shape index: {}]
  %s12 = inlined_call_operand.hbm [shape: f32[1,32], index: 12, kind: input, shape index: {}]
  %s13 = inlined_call_operand.hbm [shape: f32[2,8,32], index: 13, kind: input, shape index: {}]
  %s14 = inlined_call_operand.hbm [shape: f32[2,1,8], index: 14, kind: input, shape index: {}]
  %s15 = inlined_call_operand.hbm [shape: bf16[32,96], index: 15, kind: input, shape index: {}]
  %s16 = inlined_call_operand.hbm [shape: f32[1,96], index: 16, kind: input, shape index: {}]
  %s17 = inlined_call_operand.hbm [shape: bf16[4,8,32], index: 17, kind: input, shape index: {}]
  %s18 = inlined_call_operand.hbm [shape: f32[1,32], index: 18, kind: input, shape index: {}]
  %s19 = inlined_call_operand.hbm [shape: f32[2,32], index: 19, kind: input, shape index: {}]
  %s20 = inlined_call_operand.vmem [shape: bf16[32,32], index: 20, kind: input, shape index: {}]
  %s21 = inlined_call_operand.vmem [shape: f32[1,32], index: 21, kind: input, shape index: {}]
  %s22 = inlined_call_operand.hbm [shape: bf16[32,64], index: 22, kind: input, shape index: {}]
  %s23 = inlined_call_operand.vmem [shape: f32[1,64], index: 23, kind: input, shape index: {}]
  %s24 = inlined_call_operand.hbm [shape: bf16[4,8,32], index: 24, kind: input, shape index: {}]
  %s25 = inlined_call_operand.vmem [shape: f32[1,32], index: 25, kind: input, shape index: {}]
  %s26 = inlined_call_operand.vmem [shape: bf16[128,4], index: 26, kind: input, shape index: {}]
  %s27 = inlined_call_operand.vmem [shape: f32[1,4], index: 27, kind: input, shape index: {}]
  %s28 = inlined_call_operand.hbm [shape: f32[1,2,4], index: 28, kind: output, shape index: {}]
  %s29 = sld [smem:[#allocation0]]
  $region190: #{tpu_custom_call.1} parent=0
    _
  %s31 = ssub.s32 1, %s29
  %s32 = scalar_select 0, %s31, %s29
  $region1: #{tpu_custom_call.1} parent=0
    #allocation2 [shape = 'u8[512]{0}', space=vmem, size = 0x400, scoped, tag = 'input window, operand 3, single buffered']
    #allocation3 [shape = 's32[1]{0}', space=sflag, size = 0x4, scoped, tag = 'scoped memory for tpu_custom_call.1']
    #allocation4 [shape = 's32[1]{0}', space=sflag, size = 0x4, scoped, tag = 'scoped memory for tpu_custom_call.1']
    #allocation5 [shape = 'u8[512]{0}', space=vmem, size = 0x400, scoped, tag = 'input window, operand 5, single buffered']
    #allocation6 [shape = 's32[1]{0}', space=sflag, size = 0x4, scoped, tag = 'scoped memory for tpu_custom_call.1']
    #allocation7 [shape = 'u8[1024]{0}', space=vmem, size = 0x400, scoped, tag = 'input window, operand 6, single buffered']
    #allocation8 [shape = 'u8[512]{0}', space=vmem, size = 0x400, scoped, tag = 'input window, operand 8, single buffered']
    #allocation9 [shape = 's32[1]{0}', space=sflag, size = 0x4, scoped, tag = 'scoped memory for tpu_custom_call.1']
    #allocation10 [shape = 'u8[8192]{0}', space=vmem, size = 0x2000, scoped, tag = 'input window, operand 9, single buffered']
    #allocation11 [shape = 'u8[512]{0}', space=vmem, size = 0x400, scoped, tag = 'input window, operand 10, single buffered']
    #allocation12 [shape = 's32[1]{0}', space=sflag, size = 0x4, scoped, tag = 'scoped memory for tpu_custom_call.1']
    #allocation13 [shape = 'u8[8192]{0}', space=vmem, size = 0x2000, scoped, tag = 'input window, operand 11, single buffered']
    #allocation14 [shape = 'u8[512]{0}', space=vmem, size = 0x400, scoped, tag = 'input window, operand 12, single buffered']
    #allocation15 [shape = 's32[1]{0}', space=sflag, size = 0x4, scoped, tag = 'scoped memory for tpu_custom_call.1']
    #allocation16 [shape = 'u8[8192]{0}', space=vmem, size = 0x2000, scoped, tag = 'input window, operand 13, single buffered']
    #allocation17 [shape = 'u8[1024]{0}', space=vmem, size = 0x400, scoped, tag = 'input window, operand 14, single buffered']
    #allocation18 [shape = 's32[1]{0}', space=sflag, size = 0x4, scoped, tag = 'scoped memory for tpu_custom_call.1']
    #allocation19 [shape = 'u8[8192]{0}', space=vmem, size = 0x2000, scoped, tag = 'input window, operand 15, single buffered']
    #allocation20 [shape = 'u8[512]{0}', space=vmem, size = 0x400, scoped, tag = 'input window, operand 16, single buffered']
    #allocation21 [shape = 's32[1]{0}', space=sflag, size = 0x4, scoped, tag = 'scoped memory for tpu_custom_call.1']
    #allocation22 [shape = 'u8[8192]{0}', space=vmem, size = 0x2000, scoped, tag = 'input window, operand 17, single buffered']
    #allocation23 [shape = 'u8[512]{0}', space=vmem, size = 0x400, scoped, tag = 'input window, operand 18, single buffered']
    #allocation24 [shape = 's32[1]{0}', space=sflag, size = 0x4, scoped, tag = 'scoped memory for tpu_custom_call.1']
    #allocation25 [shape = 'u8[1024]{0}', space=vmem, size = 0x400, scoped, tag = 'input window, operand 19, single buffered']
    #allocation26 [shape = 'u8[8192]{0}', space=vmem, size = 0x2000, scoped, tag = 'input window, operand 22, single buffered']
    #allocation27 [shape = 's32[1]{0}', space=sflag, size = 0x4, scoped, tag = 'scoped memory for tpu_custom_call.1']
    #allocation28 [shape = 'u8[8192]{0}', space=vmem, size = 0x2000, scoped, tag = 'input window, operand 24, single buffered']
    #allocation29 [shape = 'u8[1024]{0}', space=vmem, size = 0x400, scoped, tag = 'output window, operand 0, single buffered']
    %33 = vsyncpa [#allocation3], 0
    %34 = vsyncpa [#allocation6], 0
    %35 = vsyncpa [#allocation9], 0
    %36 = vsyncpa [#allocation12], 0
    %37 = vsyncpa [#allocation15], 0
    %38 = vsyncpa [#allocation18], 0
    %39 = vsyncpa [#allocation21], 0
    %40 = vsyncpa [#allocation24], 0
    %41 = vsyncpa [#allocation27], 0
    %42 = vsyncpa [#allocation4], 0
    // Predicated region
    $region2: #{tpu_custom_call.1} parent=1 // pred_check
      _
    $region3: #{tpu_custom_call.1} parent=1 // pred_check_branch
      %44 = sbr.rel (0) target = $region5
    $region4: #{tpu_custom_call.1} parent=1 // pred_region
      _
    $region5: #{tpu_custom_call.1} parent=1 // pred_fallthru
      _
    // Predicated region
    $region6: #{tpu_custom_call.1} parent=1 // pred_check
      _
    $region7: #{tpu_custom_call.1} parent=1 // pred_check_branch
      %46 = sbr.rel (0) target = $region9
    $region8: #{tpu_custom_call.1} parent=1 // pred_region
      _
    $region9: #{tpu_custom_call.1} parent=1 // pred_fallthru
      _
    // Predicated region
    $region10: #{tpu_custom_call.1} parent=1 // pred_check
      _
    $region11: #{tpu_custom_call.1} parent=1 // pred_check_branch
      %48 = sbr.rel (0) target = $region13
    $region12: #{tpu_custom_call.1} parent=1 // pred_region
      _
    $region13: #{tpu_custom_call.1} parent=1 // pred_fallthru
      _
    // Predicated region
    $region14: #{tpu_custom_call.1} parent=1 // pred_check
      _
    $region15: #{tpu_custom_call.1} parent=1 // pred_check_branch
      %50 = sbr.rel (0) target = $region17
    $region16: #{tpu_custom_call.1} parent=1 // pred_region
      %52 = vsyncadd [#allocation3], 0
      %s54 = sshll.u32 %s3, 4
      %s55 = int_to_ptr.hbm [resolvable:$true] %s54
      %s56 = sshll.u32 [#allocation2], 4
      %s57 = int_to_ptr.vmem [resolvable:$true] %s56
      %59 = dma.hbm_to_vmem [thread:$0]  %s55, 16, %s57, [#allocation3]
    $region17: #{tpu_custom_call.1} parent=1 // pred_fallthru
      _
    // Predicated region
    $region18: #{tpu_custom_call.1} parent=1 // pred_check
      _
    $region19: #{tpu_custom_call.1} parent=1 // pred_check_branch
      %61 = sbr.rel (0) target = $region21
    $region20: #{tpu_custom_call.1} parent=1 // pred_region
      _
    $region21: #{tpu_custom_call.1} parent=1 // pred_fallthru
      _
    // Predicated region
    $region22: #{tpu_custom_call.1} parent=1 // pred_check
      _
    $region23: #{tpu_custom_call.1} parent=1 // pred_check_branch
      %63 = sbr.rel (0) target = $region25
    $region24: #{tpu_custom_call.1} parent=1 // pred_region
      %65 = vsyncadd [#allocation6], 0
      %s67 = sshll.u32 %s5, 4
      %s68 = int_to_ptr.hbm [resolvable:$true] %s67
      %s69 = sshll.u32 [#allocation5], 4
      %s70 = int_to_ptr.vmem [resolvable:$true] %s69
      %72 = dma.hbm_to_vmem [thread:$0]  %s68, 16, %s70, [#allocation6]
    $region25: #{tpu_custom_call.1} parent=1 // pred_fallthru
      _
    // Predicated region
    $region26: #{tpu_custom_call.1} parent=1 // pred_check
      _
    $region27: #{tpu_custom_call.1} parent=1 // pred_check_branch
      %74 = sbr.rel (0) target = $region29
    $region28: #{tpu_custom_call.1} parent=1 // pred_region
      %76 = vsyncadd [#allocation6], 0
      %s78 = sshll.u32 %s6, 4
      %s79 = int_to_ptr.hbm [resolvable:$true] %s78
      %s80 = sshll.u32 [#allocation7], 4
      %s81 = int_to_ptr.vmem [resolvable:$true] %s80
      %83 = dma.hbm_to_vmem [thread:$0]  %s79, 32, %s81, [#allocation6]
    $region29: #{tpu_custom_call.1} parent=1 // pred_fallthru
      _
    // Predicated region
    $region30: #{tpu_custom_call.1} parent=1 // pred_check
      _
    $region31: #{tpu_custom_call.1} parent=1 // pred_check_branch
      %85 = sbr.rel (0) target = $region33
    $region32: #{tpu_custom_call.1} parent=1 // pred_region
      _
    $region33: #{tpu_custom_call.1} parent=1 // pred_fallthru
      _
    // Predicated region
    $region34: #{tpu_custom_call.1} parent=1 // pred_check
      _
    $region35: #{tpu_custom_call.1} parent=1 // pred_check_branch
      %87 = sbr.rel (0) target = $region37
    $region36: #{tpu_custom_call.1} parent=1 // pred_region
      %89 = vsyncadd [#allocation9], 0
      %s91 = sshll.u32 %s8, 4
      %s92 = int_to_ptr.hbm [resolvable:$true] %s91
      %s93 = sshll.u32 [#allocation8], 4
      %s94 = int_to_ptr.vmem [resolvable:$true] %s93
      %96 = dma.hbm_to_vmem [thread:$0]  %s92, 16, %s94, [#allocation9]
    $region37: #{tpu_custom_call.1} parent=1 // pred_fallthru
      _
    // Predicated region
    $region38: #{tpu_custom_call.1} parent=1 // pred_check
      _
    $region39: #{tpu_custom_call.1} parent=1 // pred_check_branch
      %98 = sbr.rel (0) target = $region41
    $region40: #{tpu_custom_call.1} parent=1 // pred_region
      %100 = vsyncadd [#allocation9], 0
      %s101 = sshll.u32 %s9, 4
      %s102 = int_to_ptr.hbm [resolvable:$true] %s101
      %s103 = sshll.u32 [#allocation10], 4
      %s104 = int_to_ptr.vmem [resolvable:$true] %s103
      %109 = dma.hbm_to_vmem [thread:$0]  %s102, 256, %s104, [#allocation9], 64, 64, 4
    $region41: #{tpu_custom_call.1} parent=1 // pred_fallthru
      _
    // Predicated region
    $region42: #{tpu_custom_call.1} parent=1 // pred_check
      _
    $region43: #{tpu_custom_call.1} parent=1 // pred_check_branch
      %111 = sbr.rel (0) target = $region45
    $region44: #{tpu_custom_call.1} parent=1 // pred_region
      %113 = vsyncadd [#allocation12], 0
      %s115 = sshll.u32 %s10, 4
      %s116 = int_to_ptr.hbm [resolvable:$true] %s115
      %s117 = sshll.u32 [#allocation11], 4
      %s118 = int_to_ptr.vmem [resolvable:$true] %s117
      %120 = dma.hbm_to_vmem [thread:$0]  %s116, 16, %s118, [#allocation12]
    $region45: #{tpu_custom_call.1} parent=1 // pred_fallthru
      _
    // Predicated region
    $region46: #{tpu_custom_call.1} parent=1 // pred_check
      _
    $region47: #{tpu_custom_call.1} parent=1 // pred_check_branch
      %122 = sbr.rel (0) target = $region49
    $region48: #{tpu_custom_call.1} parent=1 // pred_region
      %124 = vsyncadd [#allocation12], 0
      %s125 = sshll.u32 %s11, 4
      %s126 = int_to_ptr.hbm [resolvable:$true] %s125
      %s127 = sshll.u32 [#allocation13], 4
      %s128 = int_to_ptr.vmem [resolvable:$true] %s127
      %133 = dma.hbm_to_vmem [thread:$0]  %s126, 256, %s128, [#allocation12], 64, 64, 4
    $region49: #{tpu_custom_call.1} parent=1 // pred_fallthru
      _
    // Predicated region
    $region50: #{tpu_custom_call.1} parent=1 // pred_check
      _
    $region51: #{tpu_custom_call.1} parent=1 // pred_check_branch
      %135 = sbr.rel (0) target = $region53
    $region52: #{tpu_custom_call.1} parent=1 // pred_region
      %137 = vsyncadd [#allocation15], 0
      %s139 = sshll.u32 %s12, 4
      %s140 = int_to_ptr.hbm [resolvable:$true] %s139
      %s141 = sshll.u32 [#allocation14], 4
      %s142 = int_to_ptr.vmem [resolvable:$true] %s141
      %144 = dma.hbm_to_vmem [thread:$0]  %s140, 16, %s142, [#allocation15]
    $region53: #{tpu_custom_call.1} parent=1 // pred_fallthru
      _
    // Predicated region
    $region54: #{tpu_custom_call.1} parent=1 // pred_check
      _
    $region55: #{tpu_custom_call.1} parent=1 // pred_check_branch
      %146 = sbr.rel (0) target = $region57
    $region56: #{tpu_custom_call.1} parent=1 // pred_region
      %148 = vsyncadd [#allocation15], 0
      %s149 = sshll.u32 %s13, 4
      %s150 = int_to_ptr.hbm [resolvable:$true] %s149
      %s151 = sshll.u32 [#allocation16], 4
      %s152 = int_to_ptr.vmem [resolvable:$true] %s151
      %157 = dma.hbm_to_vmem [thread:$0]  %s150, 256, %s152, [#allocation15], 128, 128, 8
    $region57: #{tpu_custom_call.1} parent=1 // pred_fallthru
      _
    // Predicated region
    $region58: #{tpu_custom_call.1} parent=1 // pred_check
      _
    $region59: #{tpu_custom_call.1} parent=1 // pred_check_branch
      %159 = sbr.rel (0) target = $region61
    $region60: #{tpu_custom_call.1} parent=1 // pred_region
      %161 = vsyncadd [#allocation18], 0
      %s162 = sshll.u32 %s14, 4
      %s163 = int_to_ptr.hbm [resolvable:$true] %s162
      %s164 = sshll.u32 [#allocation17], 4
      %s165 = int_to_ptr.vmem [resolvable:$true] %s164
      %170 = dma.hbm_to_vmem [thread:$0]  %s163, 32, %s165, [#allocation18], 16, 16, 1
    $region61: #{tpu_custom_call.1} parent=1 // pred_fallthru
      _
    // Predicated region
    $region62: #{tpu_custom_call.1} parent=1 // pred_check
      _
    $region63: #{tpu_custom_call.1} parent=1 // pred_check_branch
      %172 = sbr.rel (0) target = $region65
    $region64: #{tpu_custom_call.1} parent=1 // pred_region
      %174 = vsyncadd [#allocation18], 0
      %s175 = sshll.u32 %s15, 4
      %s176 = int_to_ptr.hbm [resolvable:$true] %s175
      %s177 = sshll.u32 [#allocation19], 4
      %s178 = int_to_ptr.vmem [resolvable:$true] %s177
      %183 = dma.hbm_to_vmem [thread:$0]  %s176, 256, %s178, [#allocation18], 64, 64, 4
    $region65: #{tpu_custom_call.1} parent=1 // pred_fallthru
      _
    // Predicated region
    $region66: #{tpu_custom_call.1} parent=1 // pred_check
      _
    $region67: #{tpu_custom_call.1} parent=1 // pred_check_branch
      %185 = sbr.rel (0) target = $region69
    $region68: #{tpu_custom_call.1} parent=1 // pred_region
      %187 = vsyncadd [#allocation21], 0
      %s189 = sshll.u32 %s16, 4
      %s190 = int_to_ptr.hbm [resolvable:$true] %s189
      %s191 = sshll.u32 [#allocation20], 4
      %s192 = int_to_ptr.vmem [resolvable:$true] %s191
      %194 = dma.hbm_to_vmem [thread:$0]  %s190, 16, %s192, [#allocation21]
    $region69: #{tpu_custom_call.1} parent=1 // pred_fallthru
      _
    // Predicated region
    $region70: #{tpu_custom_call.1} parent=1 // pred_check
      _
    $region71: #{tpu_custom_call.1} parent=1 // pred_check_branch
      %196 = sbr.rel (0) target = $region73
    $region72: #{tpu_custom_call.1} parent=1 // pred_region
      %198 = vsyncadd [#allocation21], 0
      %s199 = sshll.u32 %s17, 4
      %s200 = int_to_ptr.hbm [resolvable:$true] %s199
      %s201 = sshll.u32 [#allocation22], 4
      %s202 = int_to_ptr.vmem [resolvable:$true] %s201
      %207 = dma.hbm_to_vmem [thread:$0]  %s200, 256, %s202, [#allocation21], 64, 64, 4
    $region73: #{tpu_custom_call.1} parent=1 // pred_fallthru
      _
    // Predicated region
    $region74: #{tpu_custom_call.1} parent=1 // pred_check
      _
    $region75: #{tpu_custom_call.1} parent=1 // pred_check_branch
      %209 = sbr.rel (0) target = $region77
    $region76: #{tpu_custom_call.1} parent=1 // pred_region
      %211 = vsyncadd [#allocation24], 0
      %s213 = sshll.u32 %s18, 4
      %s214 = int_to_ptr.hbm [resolvable:$true] %s213
      %s215 = sshll.u32 [#allocation23], 4
      %s216 = int_to_ptr.vmem [resolvable:$true] %s215
      %218 = dma.hbm_to_vmem [thread:$0]  %s214, 16, %s216, [#allocation24]
    $region77: #{tpu_custom_call.1} parent=1 // pred_fallthru
      _
    // Predicated region
    $region78: #{tpu_custom_call.1} parent=1 // pred_check
      _
    $region79: #{tpu_custom_call.1} parent=1 // pred_check_branch
      %220 = sbr.rel (0) target = $region81
    $region80: #{tpu_custom_call.1} parent=1 // pred_region
      %222 = vsyncadd [#allocation24], 0
      %s224 = sshll.u32 %s19, 4
      %s225 = int_to_ptr.hbm [resolvable:$true] %s224
      %s226 = sshll.u32 [#allocation25], 4
      %s227 = int_to_ptr.vmem [resolvable:$true] %s226
      %229 = dma.hbm_to_vmem [thread:$0]  %s225, 32, %s227, [#allocation24]
    $region81: #{tpu_custom_call.1} parent=1 // pred_fallthru
      _
    // Predicated region
    $region82: #{tpu_custom_call.1} parent=1 // pred_check
      _
    $region83: #{tpu_custom_call.1} parent=1 // pred_check_branch
      %231 = sbr.rel (0) target = $region85
    $region84: #{tpu_custom_call.1} parent=1 // pred_region
      _
    $region85: #{tpu_custom_call.1} parent=1 // pred_fallthru
      _
    // Predicated region
    $region86: #{tpu_custom_call.1} parent=1 // pred_check
      _
    $region87: #{tpu_custom_call.1} parent=1 // pred_check_branch
      %233 = sbr.rel (0) target = $region89
    $region88: #{tpu_custom_call.1} parent=1 // pred_region
      _
    $region89: #{tpu_custom_call.1} parent=1 // pred_fallthru
      _
    // Predicated region
    $region90: #{tpu_custom_call.1} parent=1 // pred_check
      _
    $region91: #{tpu_custom_call.1} parent=1 // pred_check_branch
      %235 = sbr.rel (0) target = $region93
    $region92: #{tpu_custom_call.1} parent=1 // pred_region
      %237 = vsyncadd [#allocation27], 0
      %s238 = sshll.u32 %s22, 4
      %s239 = int_to_ptr.hbm [resolvable:$true] %s238
      %s240 = sshll.u32 [#allocation26], 4
      %s241 = int_to_ptr.vmem [resolvable:$true] %s240
      %246 = dma.hbm_to_vmem [thread:$0]  %s239, 256, %s241, [#allocation27], 64, 64, 4
    $region93: #{tpu_custom_call.1} parent=1 // pred_fallthru
      _
    // Predicated region
    $region94: #{tpu_custom_call.1} parent=1 // pred_check
      _
    $region95: #{tpu_custom_call.1} parent=1 // pred_check_branch
      %248 = sbr.rel (0) target = $region97
    $region96: #{tpu_custom_call.1} parent=1 // pred_region
      _
    $region97: #{tpu_custom_call.1} parent=1 // pred_fallthru
      _
    // Predicated region
    $region98: #{tpu_custom_call.1} parent=1 // pred_check
      _
    $region99: #{tpu_custom_call.1} parent=1 // pred_check_branch
      %250 = sbr.rel (0) target = $region101
    $region100: #{tpu_custom_call.1} parent=1 // pred_region
      %252 = vsyncadd [#allocation27], 0
      %s253 = sshll.u32 %s24, 4
      %s254 = int_to_ptr.hbm [resolvable:$true] %s253
      %s255 = sshll.u32 [#allocation28], 4
      %s256 = int_to_ptr.vmem [resolvable:$true] %s255
      %261 = dma.hbm_to_vmem [thread:$0]  %s254, 256, %s256, [#allocation27], 64, 64, 4
    $region101: #{tpu_custom_call.1} parent=1 // pred_fallthru
      _
    // Predicated region
    $region102: #{tpu_custom_call.1} parent=1 // pred_check
      _
    $region103: #{tpu_custom_call.1} parent=1 // pred_check_branch
      %263 = sbr.rel (0) target = $region105
    $region104: #{tpu_custom_call.1} parent=1 // pred_region
      _
    $region105: #{tpu_custom_call.1} parent=1 // pred_fallthru
      _
    // Predicated region
    $region106: #{tpu_custom_call.1} parent=1 // pred_check
      _
    $region107: #{tpu_custom_call.1} parent=1 // pred_check_branch
      %265 = sbr.rel (0) target = $region109
    $region108: #{tpu_custom_call.1} parent=1 // pred_region
      _
    $region109: #{tpu_custom_call.1} parent=1 // pred_fallthru
      _
    // Predicated region
    $region110: #{tpu_custom_call.1} parent=1 // pred_check
      _
    $region111: #{tpu_custom_call.1} parent=1 // pred_check_branch
      %267 = sbr.rel (0) target = $region113
    $region112: #{tpu_custom_call.1} parent=1 // pred_region
      _
    $region113: #{tpu_custom_call.1} parent=1 // pred_fallthru
      _
    // Predicated region
    $region114: #{tpu_custom_call.1} parent=1 // pred_check
      _
    $region115: #{tpu_custom_call.1} parent=1 // pred_check_branch
      %269 = sbr.rel (0) target = $region117
    $region116: #{tpu_custom_call.1} parent=1 // pred_region
      %271 = dma.done [#allocation3], 16
    $region117: #{tpu_custom_call.1} parent=1 // pred_fallthru
      _
    // Predicated region
    $region118: #{tpu_custom_call.1} parent=1 // pred_check
      _
    $region119: #{tpu_custom_call.1} parent=1 // pred_check_branch
      %273 = sbr.rel (0) target = $region121
    $region120: #{tpu_custom_call.1} parent=1 // pred_region
      %275 = dma.done [#allocation6], 16
    $region121: #{tpu_custom_call.1} parent=1 // pred_fallthru
      _
    // Predicated region
    $region122: #{tpu_custom_call.1} parent=1 // pred_check
      _
    $region123: #{tpu_custom_call.1} parent=1 // pred_check_branch
      %277 = sbr.rel (0) target = $region125
    $region124: #{tpu_custom_call.1} parent=1 // pred_region
      %279 = dma.done [#allocation6], 32
    $region125: #{tpu_custom_call.1} parent=1 // pred_fallthru
      _
    // Predicated region
    $region126: #{tpu_custom_call.1} parent=1 // pred_check
      _
    $region127: #{tpu_custom_call.1} parent=1 // pred_check_branch
      %281 = sbr.rel (0) target = $region129
    $region128: #{tpu_custom_call.1} parent=1 // pred_region
      %283 = dma.done [#allocation9], 16
    $region129: #{tpu_custom_call.1} parent=1 // pred_fallthru
      _
    // Predicated region
    $region130: #{tpu_custom_call.1} parent=1 // pred_check
      _
    $region131: #{tpu_custom_call.1} parent=1 // pred_check_branch
      %285 = sbr.rel (0) target = $region133
    $region132: #{tpu_custom_call.1} parent=1 // pred_region
      %287 = dma.done [#allocation9], 256
    $region133: #{tpu_custom_call.1} parent=1 // pred_fallthru
      _
    // Predicated region
    $region134: #{tpu_custom_call.1} parent=1 // pred_check
      _
    $region135: #{tpu_custom_call.1} parent=1 // pred_check_branch
      %289 = sbr.rel (0) target = $region137
    $region136: #{tpu_custom_call.1} parent=1 // pred_region
      %291 = dma.done [#allocation12], 16
    $region137: #{tpu_custom_call.1} parent=1 // pred_fallthru
      _
    // Predicated region
    $region138: #{tpu_custom_call.1} parent=1 // pred_check
      _
    $region139: #{tpu_custom_call.1} parent=1 // pred_check_branch
      %293 = sbr.rel (0) target = $region141
    $region140: #{tpu_custom_call.1} parent=1 // pred_region
      %295 = dma.done [#allocation12], 256
    $region141: #{tpu_custom_call.1} parent=1 // pred_fallthru
      _
    // Predicated region
    $region142: #{tpu_custom_call.1} parent=1 // pred_check
      _
    $region143: #{tpu_custom_call.1} parent=1 // pred_check_branch
      %297 = sbr.rel (0) target = $region145
    $region144: #{tpu_custom_call.1} parent=1 // pred_region
      %299 = dma.done [#allocation15], 16
    $region145: #{tpu_custom_call.1} parent=1 // pred_fallthru
      _
    // Predicated region
    $region146: #{tpu_custom_call.1} parent=1 // pred_check
      _
    $region147: #{tpu_custom_call.1} parent=1 // pred_check_branch
      %301 = sbr.rel (0) target = $region149
    $region148: #{tpu_custom_call.1} parent=1 // pred_region
      %303 = dma.done [#allocation15], 256
    $region149: #{tpu_custom_call.1} parent=1 // pred_fallthru
      _
    // Predicated region
    $region150: #{tpu_custom_call.1} parent=1 // pred_check
      _
    $region151: #{tpu_custom_call.1} parent=1 // pred_check_branch
      %305 = sbr.rel (0) target = $region153
    $region152: #{tpu_custom_call.1} parent=1 // pred_region
      %307 = dma.done [#allocation18], 32
    $region153: #{tpu_custom_call.1} parent=1 // pred_fallthru
      _
    // Predicated region
    $region154: #{tpu_custom_call.1} parent=1 // pred_check
      _
    $region155: #{tpu_custom_call.1} parent=1 // pred_check_branch
      %309 = sbr.rel (0) target = $region157
    $region156: #{tpu_custom_call.1} parent=1 // pred_region
      %311 = dma.done [#allocation18], 256
    $region157: #{tpu_custom_call.1} parent=1 // pred_fallthru
      _
    // Predicated region
    $region158: #{tpu_custom_call.1} parent=1 // pred_check
      _
    $region159: #{tpu_custom_call.1} parent=1 // pred_check_branch
      %313 = sbr.rel (0) target = $region161
    $region160: #{tpu_custom_call.1} parent=1 // pred_region
      %315 = dma.done [#allocation21], 16
    $region161: #{tpu_custom_call.1} parent=1 // pred_fallthru
      _
    // Predicated region
    $region162: #{tpu_custom_call.1} parent=1 // pred_check
      _
    $region163: #{tpu_custom_call.1} parent=1 // pred_check_branch
      %317 = sbr.rel (0) target = $region165
    $region164: #{tpu_custom_call.1} parent=1 // pred_region
      %319 = dma.done [#allocation21], 256
    $region165: #{tpu_custom_call.1} parent=1 // pred_fallthru
      _
    // Predicated region
    $region166: #{tpu_custom_call.1} parent=1 // pred_check
      _
    $region167: #{tpu_custom_call.1} parent=1 // pred_check_branch
      %321 = sbr.rel (0) target = $region169
    $region168: #{tpu_custom_call.1} parent=1 // pred_region
      %323 = dma.done [#allocation24], 16
    $region169: #{tpu_custom_call.1} parent=1 // pred_fallthru
      _
    // Predicated region
    $region170: #{tpu_custom_call.1} parent=1 // pred_check
      _
    $region171: #{tpu_custom_call.1} parent=1 // pred_check_branch
      %325 = sbr.rel (0) target = $region173
    $region172: #{tpu_custom_call.1} parent=1 // pred_region
      %327 = dma.done [#allocation24], 32
    $region173: #{tpu_custom_call.1} parent=1 // pred_fallthru
      _
    // Predicated region
    $region174: #{tpu_custom_call.1} parent=1 // pred_check
      _
    $region175: #{tpu_custom_call.1} parent=1 // pred_check_branch
      %329 = sbr.rel (0) target = $region177
    $region176: #{tpu_custom_call.1} parent=1 // pred_region
      %331 = dma.done [#allocation27], 256
    $region177: #{tpu_custom_call.1} parent=1 // pred_fallthru
      _
    // Predicated region
    $region178: #{tpu_custom_call.1} parent=1 // pred_check
      _
    $region179: #{tpu_custom_call.1} parent=1 // pred_check_branch
      %333 = sbr.rel (0) target = $region181
    $region180: #{tpu_custom_call.1} parent=1 // pred_region
      %335 = dma.done [#allocation27], 256
    $region181: #{tpu_custom_call.1} parent=1 // pred_fallthru
      _
    %v337 = vld [vmem:[%s26] sm:$0xf]
    %v338 = vld [vmem:[%s26 + $0x4] sm:$0xf]
    %v339 = vld [vmem:[%s26 + $0x8] sm:$0xf]
    %v340 = vld [vmem:[%s26 + $0xc] sm:$0xf]
    %v341 = vld [vmem:[%s26 + $0x10] sm:$0xf]
    %v342 = vld [vmem:[%s26 + $0x14] sm:$0xf]
    %v343 = vld [vmem:[%s26 + $0x18] sm:$0xf]
    %v344 = vld [vmem:[%s26 + $0x1c] sm:$0xf]
    %v345 = vld [vmem:[%s26 + $0x20] sm:$0xf]
    %v346 = vld [vmem:[%s26 + $0x24] sm:$0xf]
    %v347 = vld [vmem:[%s26 + $0x28] sm:$0xf]
    %v348 = vld [vmem:[%s26 + $0x2c] sm:$0xf]
    %v349 = vld [vmem:[%s26 + $0x30] sm:$0xf]
    %v350 = vld [vmem:[%s26 + $0x34] sm:$0xf]
    %v351 = vld [vmem:[%s26 + $0x38] sm:$0xf]
    %v352 = vld [vmem:[%s26 + $0x3c] sm:$0xf]
    %v353 = vld [vmem:[%s1] sm:$0x1]
    %v354 = vld [vmem:[%s1 + $0x1] sm:$0x1]
    %vm355 = vcmp.gt.f32.partialorder %v353, 0.5
    %vm356 = vcmp.gt.f32.partialorder %v354, 0.5
    %v357 = vsel %vm355, -1e+30, 0.0
    %v358 = vsel %vm356, -1e+30, 0.0
    %v359 = vld [vmem:[%s0] sm:$0xff]
    %v360 = vld [vmem:[%s0 + $0x8] sm:$0xff]
    %v361 = vld [vmem:[%s2] sm:$0xf]
    %v362 = vld [vmem:[%s2 + $0x4] sm:$0xf]
    %v363 = vld [vmem:[%s2 + $0x8] sm:$0xf]
    %v364 = vld [vmem:[%s2 + $0xc] sm:$0xf]
    %v365 = vpack.c.bf16 %v360, %v359
    %v366 = vld [vmem:[#allocation2] sm:$0x1]
    %v368 = vperm.slane %v366, 0
    %v374 = vunpack.c.l.b16 %v361
    %v375 = vunpack.c.l.b16 %v362
    %v376 = vunpack.c.l.b16 %v363
    %v377 = vunpack.c.l.b16 %v364
    %v378 = vpack.c.b16 %v375, %v374
    %v379 = vpack.c.b16 %v377, %v376
    %vm382 = vcmask 261120
    %v384 = vsel %vm382, %v365, 0
    %386 = vmatpush.bf16.msra.mxu0 0
    %387 = vmatpush.bf16.msra.mxu0 0
    %388 = vmatpush.bf16.msra.mxu0 0
    %389 = vmatpush.bf16.msra.mxu0 0
    %390 = vmatpush.bf16.msra.mxu0 0
    %391 = vmatpush.bf16.msra.mxu0 0
    %392 = vmatpush.bf16.msra.mxu0 %v379
    %393 = vmatpush.bf16.msra.mxu0 %v378
    %394 = vmatmul.bf16.gmra.mxu0 %v384
    %v395 = vpop.f32.mrf.mxu0
    %v396 = vadd.f32 %v368, %v395
    %v397 = vpop.f32.mrf.mxu0
    %v398 = vadd.f32 %v368, %v397
    %399 = vdwg.mxu0
    %402 = vrot.lane.b32.xlu0 %v396, 120
    %v403 = vpop.permute.xlu0 %402
    %404 = vrot.lane.b32.xlu0 %v398, 120
    %v405 = vpop.permute.xlu0 %404
    %408 = vrot.lane.b32.xlu0 %v396, 112
    %v409 = vpop.permute.xlu0 %408
    %410 = vrot.lane.b32.xlu0 %v398, 112
    %v411 = vpop.permute.xlu0 %410
    %414 = vrot.lane.b32.xlu0 %v396, 104
    %v415 = vpop.permute.xlu0 %414
    %416 = vrot.lane.b32.xlu0 %v398, 104
    %v417 = vpop.permute.xlu0 %416
    %v420 = vld [vmem:[%s4] sm:$0xf]
    %v421 = vld [vmem:[%s4 + $0x4] sm:$0xf]
    %v422 = vld [vmem:[%s4 + $0x8] sm:$0xf]
    %v423 = vld [vmem:[%s4 + $0xc] sm:$0xf]
    %v424 = vld [vmem:[#allocation5] sm:$0x1]
    %v425 = vpack.c.bf16 %v396, %v396
    %v426 = vpack.c.bf16 %v403, %v403
    %v427 = vpack.c.bf16 %v409, %v409
    %v428 = vpack.c.bf16 %v415, %v415
    %v429 = vpack.c.bf16 %v398, %v398
    %v430 = vpack.c.bf16 %v405, %v405
    %v431 = vpack.c.bf16 %v411, %v411
    %v432 = vpack.c.bf16 %v417, %v417
    %v434 = vunpack.c.l.b16 %v425
    %v435 = vpack.c.b16 %v434, %v434
    %436 = vrot.lane.b32.xlu0 %v435, 96
    %v437 = vpop.permute.xlu0 %436
    %vm438 = vcmask 64512
    %v440 = vsel %vm438, %v425, 0
    %v443 = vsel %vm438, %v437, 0
    %445 = vmatpush.bf16.xpose.msra.mxu0 0
    %446 = vmatpush.bf16.xpose.msra.mxu0 0
    %447 = vmatpush.bf16.xpose.msra.mxu0 0
    %448 = vmatpush.bf16.xpose.msra.mxu0 0
    %449 = vmatpush.bf16.xpose.msra.mxu0 0
    %450 = vmatpush.bf16.xpose.msra.mxu0 0
    %451 = vmatpush.bf16.xpose.msra.mxu0 0
    %452 = vmatpush.bf16.xpose.msra.mxu0 %v443
    %453 = vmatmul.bf16.gmra.mxu0 %v440
    %v454 = vpop.f32.mrf.mxu0
    %v455 = vadd.f32 0.0, %v454
    %v456 = vpop.f32.mrf.mxu0
    %457 = vdwg.mxu0
    %v459 = vunpack.c.l.b16 %v426
    %v460 = vpack.c.b16 %v459, %v459
    %461 = vrot.lane.b32.xlu0 %v460, 96
    %v462 = vpop.permute.xlu0 %461
    %v464 = vsel %vm438, %v426, 0
    %v467 = vsel %vm438, %v462, 0
    %469 = vmatpush.bf16.xpose.msra.mxu0 0
    %470 = vmatpush.bf16.xpose.msra.mxu0 0
    %471 = vmatpush.bf16.xpose.msra.mxu0 0
    %472 = vmatpush.bf16.xpose.msra.mxu0 0
    %473 = vmatpush.bf16.xpose.msra.mxu0 0
    %474 = vmatpush.bf16.xpose.msra.mxu0 0
    %475 = vmatpush.bf16.xpose.msra.mxu0 0
    %476 = vmatpush.bf16.xpose.msra.mxu0 %v467
    %477 = vmatmul.bf16.gmra.mxu0 %v464
    %v478 = vpop.f32.mrf.mxu0
    %v479 = vadd.f32 0.0, %v478
    %v480 = vpop.f32.mrf.mxu0
    %481 = vdwg.mxu0
    %v483 = vunpack.c.l.b16 %v427
    %v484 = vpack.c.b16 %v483, %v483
    %485 = vrot.lane.b32.xlu0 %v484, 96
    %v486 = vpop.permute.xlu0 %485
    %v488 = vsel %vm438, %v427, 0
    %v491 = vsel %vm438, %v486, 0
    %493 = vmatpush.bf16.xpose.msra.mxu0 0
    %494 = vmatpush.bf16.xpose.msra.mxu0 0
    %495 = vmatpush.bf16.xpose.msra.mxu0 0
    %496 = vmatpush.bf16.xpose.msra.mxu0 0
    %497 = vmatpush.bf16.xpose.msra.mxu0 0
    %498 = vmatpush.bf16.xpose.msra.mxu0 0
    %499 = vmatpush.bf16.xpose.msra.mxu0 0
    %500 = vmatpush.bf16.xpose.msra.mxu0 %v491
    %501 = vmatmul.bf16.gmra.mxu0 %v488
    %v502 = vpop.f32.mrf.mxu0
    %v503 = vadd.f32 0.0, %v502
    %v504 = vpop.f32.mrf.mxu0
    %505 = vdwg.mxu0
    %v507 = vunpack.c.l.b16 %v428
    %v508 = vpack.c.b16 %v507, %v507
    %509 = vrot.lane.b32.xlu0 %v508, 96
    %v510 = vpop.permute.xlu0 %509
    %v512 = vsel %vm438, %v428, 0
    %v515 = vsel %vm438, %v510, 0
    %517 = vmatpush.bf16.xpose.msra.mxu0 0
    %518 = vmatpush.bf16.xpose.msra.mxu0 0
    %519 = vmatpush.bf16.xpose.msra.mxu0 0
    %520 = vmatpush.bf16.xpose.msra.mxu0 0
    %521 = vmatpush.bf16.xpose.msra.mxu0 0
    %522 = vmatpush.bf16.xpose.msra.mxu0 0
    %523 = vmatpush.bf16.xpose.msra.mxu0 0
    %524 = vmatpush.bf16.xpose.msra.mxu0 %v515
    %525 = vmatmul.bf16.gmra.mxu0 %v512
    %v526 = vpop.f32.mrf.mxu0
    %v527 = vadd.f32 0.0, %v526
    %v528 = vpop.f32.mrf.mxu0
    %529 = vdwg.mxu0
    %v531 = vunpack.c.l.b16 %v429
    %v532 = vpack.c.b16 %v531, %v531
    %533 = vrot.lane.b32.xlu0 %v532, 96
    %v534 = vpop.permute.xlu0 %533
    %v536 = vsel %vm438, %v429, 0
    %v539 = vsel %vm438, %v534, 0
    %541 = vmatpush.bf16.xpose.msra.mxu0 0
    %542 = vmatpush.bf16.xpose.msra.mxu0 0
    %543 = vmatpush.bf16.xpose.msra.mxu0 0
    %544 = vmatpush.bf16.xpose.msra.mxu0 0
    %545 = vmatpush.bf16.xpose.msra.mxu0 0
    %546 = vmatpush.bf16.xpose.msra.mxu0 0
    %547 = vmatpush.bf16.xpose.msra.mxu0 0
    %548 = vmatpush.bf16.xpose.msra.mxu0 %v539
    %549 = vmatmul.bf16.gmra.mxu0 %v536
    %v550 = vpop.f32.mrf.mxu0
    %v551 = vadd.f32 0.0, %v550
    %v552 = vpop.f32.mrf.mxu0
    %553 = vdwg.mxu0
    %v555 = vunpack.c.l.b16 %v430
    %v556 = vpack.c.b16 %v555, %v555
    %557 = vrot.lane.b32.xlu0 %v556, 96
    %v558 = vpop.permute.xlu0 %557
    %v560 = vsel %vm438, %v430, 0
    %v563 = vsel %vm438, %v558, 0
    %565 = vmatpush.bf16.xpose.msra.mxu0 0
    %566 = vmatpush.bf16.xpose.msra.mxu0 0
    %567 = vmatpush.bf16.xpose.msra.mxu0 0
    %568 = vmatpush.bf16.xpose.msra.mxu0 0
    %569 = vmatpush.bf16.xpose.msra.mxu0 0
    %570 = vmatpush.bf16.xpose.msra.mxu0 0
    %571 = vmatpush.bf16.xpose.msra.mxu0 0
    %572 = vmatpush.bf16.xpose.msra.mxu0 %v563
    %573 = vmatmul.bf16.gmra.mxu0 %v560
    %v574 = vpop.f32.mrf.mxu0
    %v575 = vadd.f32 0.0, %v574
    %v576 = vpop.f32.mrf.mxu0
    %577 = vdwg.mxu0
    %v579 = vunpack.c.l.b16 %v431
    %v580 = vpack.c.b16 %v579, %v579
    %581 = vrot.lane.b32.xlu0 %v580, 96
    %v582 = vpop.permute.xlu0 %581
    %v584 = vsel %vm438, %v431, 0
    %v587 = vsel %vm438, %v582, 0
    %589 = vmatpush.bf16.xpose.msra.mxu0 0
    %590 = vmatpush.bf16.xpose.msra.mxu0 0
    %591 = vmatpush.bf16.xpose.msra.mxu0 0
    %592 = vmatpush.bf16.xpose.msra.mxu0 0
    %593 = vmatpush.bf16.xpose.msra.mxu0 0
    %594 = vmatpush.bf16.xpose.msra.mxu0 0
    %595 = vmatpush.bf16.xpose.msra.mxu0 0
    %596 = vmatpush.bf16.xpose.msra.mxu0 %v587
    %597 = vmatmul.bf16.gmra.mxu0 %v584
    %v598 = vpop.f32.mrf.mxu0
    %v599 = vadd.f32 0.0, %v598
    %v600 = vpop.f32.mrf.mxu0
    %601 = vdwg.mxu0
    %v603 = vunpack.c.l.b16 %v432
    %v604 = vpack.c.b16 %v603, %v603
    %605 = vrot.lane.b32.xlu0 %v604, 96
    %v606 = vpop.permute.xlu0 %605
    %v608 = vsel %vm438, %v432, 0
    %v611 = vsel %vm438, %v606, 0
    %613 = vmatpush.bf16.xpose.msra.mxu0 0
    %614 = vmatpush.bf16.xpose.msra.mxu0 0
    %615 = vmatpush.bf16.xpose.msra.mxu0 0
    %616 = vmatpush.bf16.xpose.msra.mxu0 0
    %617 = vmatpush.bf16.xpose.msra.mxu0 0
    %618 = vmatpush.bf16.xpose.msra.mxu0 0
    %619 = vmatpush.bf16.xpose.msra.mxu0 0
    %620 = vmatpush.bf16.xpose.msra.mxu0 %v611
    %621 = vmatmul.bf16.gmra.mxu0 %v608
    %v622 = vpop.f32.mrf.mxu0
    %v623 = vadd.f32 0.0, %v622
    %v624 = vpop.f32.mrf.mxu0
    %625 = vdwg.mxu0
    %v626 = vmul.f32 %v455, 0.35355338
    %v627 = vmul.f32 %v479, 0.35355338
    %v628 = vmul.f32 %v503, 0.35355338
    %v629 = vmul.f32 %v527, 0.35355338
    %v630 = vmul.f32 %v551, 0.35355338
    %v631 = vmul.f32 %v575, 0.35355338
    %v632 = vmul.f32 %v599, 0.35355338
    %v633 = vmul.f32 %v623, 0.35355338
    %v636 = vperm.slane %v357, 0
    %v637 = vperm.slane %v358, 0
    %v640 = vadd.f32 %v626, %v636
    %v641 = vadd.f32 %v627, %v636
    %v642 = vadd.f32 %v628, %v636
    %v643 = vadd.f32 %v629, %v636
    %v644 = vadd.f32 %v630, %v637
    %v645 = vadd.f32 %v631, %v637
    %v646 = vadd.f32 %v632, %v637
    %v647 = vadd.f32 %v633, %v637
    %v648 = vsel %vm438, %v640, -inf
    %649 = vmax.xlane.f32.xlu0 %v648
    %v650 = vpop.xlane.xlu0 %649
    %v651 = vsel %vm438, %v641, -inf
    %652 = vmax.xlane.f32.xlu0 %v651
    %v653 = vpop.xlane.xlu0 %652
    %v654 = vsel %vm438, %v642, -inf
    %655 = vmax.xlane.f32.xlu0 %v654
    %v656 = vpop.xlane.xlu0 %655
    %v657 = vsel %vm438, %v643, -inf
    %658 = vmax.xlane.f32.xlu0 %v657
    %v659 = vpop.xlane.xlu0 %658
    %v660 = vsel %vm438, %v644, -inf
    %661 = vmax.xlane.f32.xlu0 %v660
    %v662 = vpop.xlane.xlu0 %661
    %v663 = vsel %vm438, %v645, -inf
    %664 = vmax.xlane.f32.xlu0 %v663
    %v665 = vpop.xlane.xlu0 %664
    %v666 = vsel %vm438, %v646, -inf
    %667 = vmax.xlane.f32.xlu0 %v666
    %v668 = vpop.xlane.xlu0 %667
    %v669 = vsel %vm438, %v647, -inf
    %670 = vmax.xlane.f32.xlu0 %v669
    %v671 = vpop.xlane.xlu0 %670
    %v672 = vsub.f32 %v640, %v650
    %v673 = vsub.f32 %v641, %v653
    %v674 = vsub.f32 %v642, %v656
    %v675 = vsub.f32 %v643, %v659
    %v676 = vsub.f32 %v644, %v662
    %v677 = vsub.f32 %v645, %v665
    %v678 = vsub.f32 %v646, %v668
    %v679 = vsub.f32 %v647, %v671
    %v680 = vmul.f32 %v672, 1.442695
    %v681 = vpow.pop %v680
    %v682 = vmul.f32 %v673, 1.442695
    %v683 = vpow.pop %v682
    %v684 = vmul.f32 %v674, 1.442695
    %v685 = vpow.pop %v684
    %v686 = vmul.f32 %v675, 1.442695
    %v687 = vpow.pop %v686
    %v688 = vmul.f32 %v676, 1.442695
    %v689 = vpow.pop %v688
    %v690 = vmul.f32 %v677, 1.442695
    %v691 = vpow.pop %v690
    %v692 = vmul.f32 %v678, 1.442695
    %v693 = vpow.pop %v692
    %v694 = vmul.f32 %v679, 1.442695
    %v695 = vpow.pop %v694
    %v696 = vsel %vm438, %v681, 0.0
    %697 = vadd.xlane.f32.xlu0 %v696
    %v698 = vpop.xlane.xlu0 %697
    %v699 = vsel %vm438, %v683, 0.0
    %700 = vadd.xlane.f32.xlu0 %v699
    %v701 = vpop.xlane.xlu0 %700
    %v702 = vsel %vm438, %v685, 0.0
    %703 = vadd.xlane.f32.xlu0 %v702
    %v704 = vpop.xlane.xlu0 %703
    %v705 = vsel %vm438, %v687, 0.0
    %706 = vadd.xlane.f32.xlu0 %v705
    %v707 = vpop.xlane.xlu0 %706
    %v708 = vsel %vm438, %v689, 0.0
    %709 = vadd.xlane.f32.xlu0 %v708
    %v710 = vpop.xlane.xlu0 %709
    %v711 = vsel %vm438, %v691, 0.0
    %712 = vadd.xlane.f32.xlu0 %v711
    %v713 = vpop.xlane.xlu0 %712
    %v714 = vsel %vm438, %v693, 0.0
    %715 = vadd.xlane.f32.xlu0 %v714
    %v716 = vpop.xlane.xlu0 %715
    %v717 = vsel %vm438, %v695, 0.0
    %718 = vadd.xlane.f32.xlu0 %v717
    %v719 = vpop.xlane.xlu0 %718
    %v720 = vrcp.pop %v698
    %v721 = vrcp.pop %v701
    %v722 = vrcp.pop %v704
    %v723 = vrcp.pop %v707
    %v724 = vrcp.pop %v710
    %v725 = vrcp.pop %v713
    %v726 = vrcp.pop %v716
    %v727 = vrcp.pop %v719
    %v728 = vmul.f32 %v681, %v720
    %v729 = vmul.f32 %v683, %v721
    %v730 = vmul.f32 %v685, %v722
    %v731 = vmul.f32 %v687, %v723
    %v732 = vmul.f32 %v689, %v724
    %v733 = vmul.f32 %v691, %v725
    %v734 = vmul.f32 %v693, %v726
    %v735 = vmul.f32 %v695, %v727
    %v736 = vpack.c.bf16 %v728, %v728
    %v737 = vpack.c.bf16 %v729, %v729
    %v738 = vpack.c.bf16 %v730, %v730
    %v739 = vpack.c.bf16 %v731, %v731
    %v740 = vpack.c.bf16 %v732, %v732
    %v741 = vpack.c.bf16 %v733, %v733
    %v742 = vpack.c.bf16 %v734, %v734
    %v743 = vpack.c.bf16 %v735, %v735
    %744 = vrot.lane.b32.xlu0 %v435, 64
    %v745 = vpop.permute.xlu0 %744
    %v747 = vsel %vm438, %v736, 0
    %vm749 = vcmask 1043456
    %v751 = vsel %vm749, %v745, 0
    %753 = vmatpush.bf16.msra.mxu0 0
    %754 = vmatpush.bf16.msra.mxu0 0
    %755 = vmatpush.bf16.msra.mxu0 0
    %756 = vmatpush.bf16.msra.mxu0 0
    %757 = vmatpush.bf16.msra.mxu0 0
    %758 = vmatpush.bf16.msra.mxu0 0
    %759 = vmatpush.bf16.msra.mxu0 0
    %760 = vmatpush.bf16.msra.mxu0 %v751
    %761 = vmatmul.bf16.gmra.mxu0 %v747
    %v762 = vpop.f32.mrf.mxu0
    %v763 = vadd.f32 0.0, %v762
    %v764 = vpop.f32.mrf.mxu0
    %765 = vdwg.mxu0
    %766 = vrot.lane.b32.xlu0 %v460, 64
    %v767 = vpop.permute.xlu0 %766
    %v769 = vsel %vm438, %v737, 0
    %v772 = vsel %vm749, %v767, 0
    %774 = vmatpush.bf16.msra.mxu0 0
    %775 = vmatpush.bf16.msra.mxu0 0
    %776 = vmatpush.bf16.msra.mxu0 0
    %777 = vmatpush.bf16.msra.mxu0 0
    %778 = vmatpush.bf16.msra.mxu0 0
    %779 = vmatpush.bf16.msra.mxu0 0
    %780 = vmatpush.bf16.msra.mxu0 0
    %781 = vmatpush.bf16.msra.mxu0 %v772
    %782 = vmatmul.bf16.gmra.mxu0 %v769
    %v783 = vpop.f32.mrf.mxu0
    %v784 = vadd.f32 0.0, %v783
    %v785 = vpop.f32.mrf.mxu0
    %786 = vdwg.mxu0
    %787 = vrot.lane.b32.xlu0 %v484, 64
    %v788 = vpop.permute.xlu0 %787
    %v790 = vsel %vm438, %v738, 0
    %v793 = vsel %vm749, %v788, 0
    %795 = vmatpush.bf16.msra.mxu0 0
    %796 = vmatpush.bf16.msra.mxu0 0
    %797 = vmatpush.bf16.msra.mxu0 0
    %798 = vmatpush.bf16.msra.mxu0 0
    %799 = vmatpush.bf16.msra.mxu0 0
    %800 = vmatpush.bf16.msra.mxu0 0
    %801 = vmatpush.bf16.msra.mxu0 0
    %802 = vmatpush.bf16.msra.mxu0 %v793
    %803 = vmatmul.bf16.gmra.mxu0 %v790
    %v804 = vpop.f32.mrf.mxu0
    %v805 = vadd.f32 0.0, %v804
    %v806 = vpop.f32.mrf.mxu0
    %807 = vdwg.mxu0
    %808 = vrot.lane.b32.xlu0 %v508, 64
    %v809 = vpop.permute.xlu0 %808
    %v811 = vsel %vm438, %v739, 0
    %v814 = vsel %vm749, %v809, 0
    %816 = vmatpush.bf16.msra.mxu0 0
    %817 = vmatpush.bf16.msra.mxu0 0
    %818 = vmatpush.bf16.msra.mxu0 0
    %819 = vmatpush.bf16.msra.mxu0 0
    %820 = vmatpush.bf16.msra.mxu0 0
    %821 = vmatpush.bf16.msra.mxu0 0
    %822 = vmatpush.bf16.msra.mxu0 0
    %823 = vmatpush.bf16.msra.mxu0 %v814
    %824 = vmatmul.bf16.gmra.mxu0 %v811
    %v825 = vpop.f32.mrf.mxu0
    %v826 = vadd.f32 0.0, %v825
    %v827 = vpop.f32.mrf.mxu0
    %828 = vdwg.mxu0
    %829 = vrot.lane.b32.xlu0 %v532, 64
    %v830 = vpop.permute.xlu0 %829
    %v832 = vsel %vm438, %v740, 0
    %v835 = vsel %vm749, %v830, 0
    %837 = vmatpush.bf16.msra.mxu0 0
    %838 = vmatpush.bf16.msra.mxu0 0
    %839 = vmatpush.bf16.msra.mxu0 0
    %840 = vmatpush.bf16.msra.mxu0 0
    %841 = vmatpush.bf16.msra.mxu0 0
    %842 = vmatpush.bf16.msra.mxu0 0
    %843 = vmatpush.bf16.msra.mxu0 0
    %844 = vmatpush.bf16.msra.mxu0 %v835
    %845 = vmatmul.bf16.gmra.mxu0 %v832
    %v846 = vpop.f32.mrf.mxu0
    %v847 = vadd.f32 0.0, %v846
    %v848 = vpop.f32.mrf.mxu0
    %849 = vdwg.mxu0
    %850 = vrot.lane.b32.xlu0 %v556, 64
    %v851 = vpop.permute.xlu0 %850
    %v853 = vsel %vm438, %v741, 0
    %v856 = vsel %vm749, %v851, 0
    %858 = vmatpush.bf16.msra.mxu0 0
    %859 = vmatpush.bf16.msra.mxu0 0
    %860 = vmatpush.bf16.msra.mxu0 0
    %861 = vmatpush.bf16.msra.mxu0 0
    %862 = vmatpush.bf16.msra.mxu0 0
    %863 = vmatpush.bf16.msra.mxu0 0
    %864 = vmatpush.bf16.msra.mxu0 0
    %865 = vmatpush.bf16.msra.mxu0 %v856
    %866 = vmatmul.bf16.gmra.mxu0 %v853
    %v867 = vpop.f32.mrf.mxu0
    %v868 = vadd.f32 0.0, %v867
    %v869 = vpop.f32.mrf.mxu0
    %870 = vdwg.mxu0
    %871 = vrot.lane.b32.xlu0 %v580, 64
    %v872 = vpop.permute.xlu0 %871
    %v874 = vsel %vm438, %v742, 0
    %v877 = vsel %vm749, %v872, 0
    %879 = vmatpush.bf16.msra.mxu0 0
    %880 = vmatpush.bf16.msra.mxu0 0
    %881 = vmatpush.bf16.msra.mxu0 0
    %882 = vmatpush.bf16.msra.mxu0 0
    %883 = vmatpush.bf16.msra.mxu0 0
    %884 = vmatpush.bf16.msra.mxu0 0
    %885 = vmatpush.bf16.msra.mxu0 0
    %886 = vmatpush.bf16.msra.mxu0 %v877
    %887 = vmatmul.bf16.gmra.mxu0 %v874
    %v888 = vpop.f32.mrf.mxu0
    %v889 = vadd.f32 0.0, %v888
    %v890 = vpop.f32.mrf.mxu0
    %891 = vdwg.mxu0
    %892 = vrot.lane.b32.xlu0 %v604, 64
    %v893 = vpop.permute.xlu0 %892
    %v895 = vsel %vm438, %v743, 0
    %v898 = vsel %vm749, %v893, 0
    %900 = vmatpush.bf16.msra.mxu0 0
    %901 = vmatpush.bf16.msra.mxu0 0
    %902 = vmatpush.bf16.msra.mxu0 0
    %903 = vmatpush.bf16.msra.mxu0 0
    %904 = vmatpush.bf16.msra.mxu0 0
    %905 = vmatpush.bf16.msra.mxu0 0
    %906 = vmatpush.bf16.msra.mxu0 0
    %907 = vmatpush.bf16.msra.mxu0 %v898
    %908 = vmatmul.bf16.gmra.mxu0 %v895
    %v909 = vpop.f32.mrf.mxu0
    %v910 = vadd.f32 0.0, %v909
    %v911 = vpop.f32.mrf.mxu0
    %912 = vdwg.mxu0
    %v913 = vpack.c.bf16 %v763, %v763
    %v914 = vpack.c.bf16 %v784, %v784
    %v915 = vpack.c.bf16 %v805, %v805
    %v916 = vpack.c.bf16 %v826, %v826
    %v917 = vpack.c.bf16 %v847, %v847
    %v918 = vpack.c.bf16 %v868, %v868
    %v919 = vpack.c.bf16 %v889, %v889
    %v920 = vpack.c.bf16 %v910, %v910
    %v922 = vsel %vm438, %v913, 0
    %v925 = vsel %vm749, %v420, 0
    %927 = vmatpush.bf16.msra.mxu0 0
    %928 = vmatpush.bf16.msra.mxu0 0
    %929 = vmatpush.bf16.msra.mxu0 0
    %930 = vmatpush.bf16.msra.mxu0 0
    %931 = vmatpush.bf16.msra.mxu0 0
    %932 = vmatpush.bf16.msra.mxu0 0
    %933 = vmatpush.bf16.msra.mxu0 0
    %934 = vmatpush.bf16.msra.mxu0 %v925
    %935 = vmatmul.bf16.gmra.mxu0 %v922
    %v936 = vpop.f32.mrf.mxu0
    %v937 = vadd.f32 0.0, %v936
    %v938 = vpop.f32.mrf.mxu0
    %939 = vdwg.mxu0
    %v941 = vsel %vm438, %v914, 0
    %v944 = vsel %vm749, %v421, 0
    %946 = vmatpush.bf16.msra.mxu0 0
    %947 = vmatpush.bf16.msra.mxu0 0
    %948 = vmatpush.bf16.msra.mxu0 0
    %949 = vmatpush.bf16.msra.mxu0 0
    %950 = vmatpush.bf16.msra.mxu0 0
    %951 = vmatpush.bf16.msra.mxu0 0
    %952 = vmatpush.bf16.msra.mxu0 0
    %953 = vmatpush.bf16.msra.mxu0 %v944
    %954 = vmatmul.bf16.gmra.mxu0 %v941
    %v955 = vpop.f32.mrf.mxu0
    %v956 = vadd.f32 0.0, %v955
    %v957 = vpop.f32.mrf.mxu0
    %958 = vdwg.mxu0
    %v960 = vsel %vm438, %v915, 0
    %v963 = vsel %vm749, %v422, 0
    %965 = vmatpush.bf16.msra.mxu0 0
    %966 = vmatpush.bf16.msra.mxu0 0
    %967 = vmatpush.bf16.msra.mxu0 0
    %968 = vmatpush.bf16.msra.mxu0 0
    %969 = vmatpush.bf16.msra.mxu0 0
    %970 = vmatpush.bf16.msra.mxu0 0
    %971 = vmatpush.bf16.msra.mxu0 0
    %972 = vmatpush.bf16.msra.mxu0 %v963
    %973 = vmatmul.bf16.gmra.mxu0 %v960
    %v974 = vpop.f32.mrf.mxu0
    %v975 = vadd.f32 0.0, %v974
    %v976 = vpop.f32.mrf.mxu0
    %977 = vdwg.mxu0
    %v979 = vsel %vm438, %v916, 0
    %v982 = vsel %vm749, %v423, 0
    %984 = vmatpush.bf16.msra.mxu0 0
    %985 = vmatpush.bf16.msra.mxu0 0
    %986 = vmatpush.bf16.msra.mxu0 0
    %987 = vmatpush.bf16.msra.mxu0 0
    %988 = vmatpush.bf16.msra.mxu0 0
    %989 = vmatpush.bf16.msra.mxu0 0
    %990 = vmatpush.bf16.msra.mxu0 0
    %991 = vmatpush.bf16.msra.mxu0 %v982
    %992 = vmatmul.bf16.gmra.mxu0 %v979
    %v993 = vpop.f32.mrf.mxu0
    %v994 = vadd.f32 0.0, %v993
    %v995 = vpop.f32.mrf.mxu0
    %996 = vdwg.mxu0
    %v998 = vsel %vm438, %v917, 0
    %1000 = vmatpush.bf16.msra.mxu0 0
    %1001 = vmatpush.bf16.msra.mxu0 0
    %1002 = vmatpush.bf16.msra.mxu0 0
    %1003 = vmatpush.bf16.msra.mxu0 0
    %1004 = vmatpush.bf16.msra.mxu0 0
    %1005 = vmatpush.bf16.msra.mxu0 0
    %1006 = vmatpush.bf16.msra.mxu0 0
    %1007 = vmatpush.bf16.msra.mxu0 %v925
    %1008 = vmatmul.bf16.gmra.mxu0 %v998
    %v1009 = vpop.f32.mrf.mxu0
    %v1010 = vadd.f32 0.0, %v1009
    %v1011 = vpop.f32.mrf.mxu0
    %1012 = vdwg.mxu0
    %v1014 = vsel %vm438, %v918, 0
    %1016 = vmatpush.bf16.msra.mxu0 0
    %1017 = vmatpush.bf16.msra.mxu0 0
    %1018 = vmatpush.bf16.msra.mxu0 0
    %1019 = vmatpush.bf16.msra.mxu0 0
    %1020 = vmatpush.bf16.msra.mxu0 0
    %1021 = vmatpush.bf16.msra.mxu0 0
    %1022 = vmatpush.bf16.msra.mxu0 0
    %1023 = vmatpush.bf16.msra.mxu0 %v944
    %1024 = vmatmul.bf16.gmra.mxu0 %v1014
    %v1025 = vpop.f32.mrf.mxu0
    %v1026 = vadd.f32 0.0, %v1025
    %v1027 = vpop.f32.mrf.mxu0
    %1028 = vdwg.mxu0
    %v1030 = vsel %vm438, %v919, 0
    %1032 = vmatpush.bf16.msra.mxu0 0
    %1033 = vmatpush.bf16.msra.mxu0 0
    %1034 = vmatpush.bf16.msra.mxu0 0
    %1035 = vmatpush.bf16.msra.mxu0 0
    %1036 = vmatpush.bf16.msra.mxu0 0
    %1037 = vmatpush.bf16.msra.mxu0 0
    %1038 = vmatpush.bf16.msra.mxu0 0
    %1039 = vmatpush.bf16.msra.mxu0 %v963
    %1040 = vmatmul.bf16.gmra.mxu0 %v1030
    %v1041 = vpop.f32.mrf.mxu0
    %v1042 = vadd.f32 0.0, %v1041
    %v1043 = vpop.f32.mrf.mxu0
    %1044 = vdwg.mxu0
    %v1046 = vsel %vm438, %v920, 0
    %1048 = vmatpush.bf16.msra.mxu0 0
    %1049 = vmatpush.bf16.msra.mxu0 0
    %1050 = vmatpush.bf16.msra.mxu0 0
    %1051 = vmatpush.bf16.msra.mxu0 0
    %1052 = vmatpush.bf16.msra.mxu0 0
    %1053 = vmatpush.bf16.msra.mxu0 0
    %1054 = vmatpush.bf16.msra.mxu0 0
    %1055 = vmatpush.bf16.msra.mxu0 %v982
    %1056 = vmatmul.bf16.gmra.mxu0 %v1046
    %v1057 = vpop.f32.mrf.mxu0
    %v1058 = vadd.f32 0.0, %v1057
    %v1059 = vpop.f32.mrf.mxu0
    %1060 = vdwg.mxu0
    %v1061 = vsel %vm382, %v937, 0.0
    %v1062 = vsel %vm382, %v956, 0.0
    %v1063 = vadd.f32 %v1061, %v1062
    %v1064 = vsel %vm382, %v975, 0.0
    %v1065 = vadd.f32 %v1063, %v1064
    %v1066 = vsel %vm382, %v994, 0.0
    %v1067 = vadd.f32 %v1065, %v1066
    %v1068 = vsel %vm382, %v1010, 0.0
    %v1069 = vsel %vm382, %v1026, 0.0
    %v1070 = vadd.f32 %v1068, %v1069
    %v1071 = vsel %vm382, %v1042, 0.0
    %v1072 = vadd.f32 %v1070, %v1071
    %v1073 = vsel %vm382, %v1058, 0.0
    %v1074 = vadd.f32 %v1072, %v1073
    %v1076 = vperm.slane %v424, 0
    %v1078 = vadd.f32 %v1067, %v1076
    %v1079 = vadd.f32 %v1074, %v1076
    %v1080 = vld [vmem:[#allocation10] sm:$0xf]
    %v1081 = vld [vmem:[#allocation10 + $0x4] sm:$0xf]
    %v1082 = vld [vmem:[#allocation10 + $0x8] sm:$0xf]
    %v1083 = vld [vmem:[#allocation10 + $0xc] sm:$0xf]
    %v1084 = vpack.c.bf16 %v1079, %v1078
    %v1085 = vld [vmem:[#allocation11] sm:$0x1]
    %v1087 = vperm.slane %v1085, 0
    %v1093 = vunpack.c.l.b16 %v1080
    %v1094 = vunpack.c.l.b16 %v1081
    %v1095 = vunpack.c.l.b16 %v1082
    %v1096 = vunpack.c.l.b16 %v1083
    %v1097 = vpack.c.b16 %v1094, %v1093
    %v1098 = vpack.c.b16 %v1096, %v1095
    %v1102 = vsel %vm382, %v1084, 0
    %1104 = vmatpush.bf16.msra.mxu0 0
    %1105 = vmatpush.bf16.msra.mxu0 0
    %1106 = vmatpush.bf16.msra.mxu0 0
    %1107 = vmatpush.bf16.msra.mxu0 0
    %1108 = vmatpush.bf16.msra.mxu0 0
    %1109 = vmatpush.bf16.msra.mxu0 0
    %1110 = vmatpush.bf16.msra.mxu0 %v1098
    %1111 = vmatpush.bf16.msra.mxu0 %v1097
    %1112 = vmatmul.bf16.gmra.mxu0 %v1102
    %v1113 = vpop.f32.mrf.mxu0
    %v1114 = vadd.f32 %v1087, %v1113
    %v1115 = vpop.f32.mrf.mxu0
    %v1116 = vadd.f32 %v1087, %v1115
    %1117 = vdwg.mxu0
    %1120 = vrot.lane.b32.xlu0 %v1114, 120
    %v1121 = vpop.permute.xlu0 %1120
    %1122 = vrot.lane.b32.xlu0 %v1116, 120
    %v1123 = vpop.permute.xlu0 %1122
    %1126 = vrot.lane.b32.xlu0 %v1114, 112
    %v1127 = vpop.permute.xlu0 %1126
    %1128 = vrot.lane.b32.xlu0 %v1116, 112
    %v1129 = vpop.permute.xlu0 %1128
    %1132 = vrot.lane.b32.xlu0 %v1114, 104
    %v1133 = vpop.permute.xlu0 %1132
    %1134 = vrot.lane.b32.xlu0 %v1116, 104
    %v1135 = vpop.permute.xlu0 %1134
    %v1138 = vld [vmem:[#allocation7] sm:$0x3]
    %v1139 = vld [vmem:[%s7] sm:$0xf]
    %v1140 = vld [vmem:[%s7 + $0x4] sm:$0xf]
    %v1141 = vld [vmem:[%s7 + $0x8] sm:$0xf]
    %v1142 = vld [vmem:[%s7 + $0xc] sm:$0xf]
    %v1143 = vpack.c.bf16 %v1138, %v1138
    %v1144 = vld [vmem:[#allocation8] sm:$0x1]
    %v1146 = vperm.slane %v1144, 0
    %v1152 = vunpack.c.l.b16 %v1139
    %v1153 = vunpack.c.l.b16 %v1140
    %v1154 = vunpack.c.l.b16 %v1141
    %v1155 = vunpack.c.l.b16 %v1142
    %v1156 = vpack.c.b16 %v1153, %v1152
    %v1157 = vpack.c.b16 %v1155, %v1154
    %v1161 = vsel %vm382, %v1143, 0
    %1163 = vmatpush.bf16.msra.mxu0 0
    %1164 = vmatpush.bf16.msra.mxu0 0
    %1165 = vmatpush.bf16.msra.mxu0 0
    %1166 = vmatpush.bf16.msra.mxu0 0
    %1167 = vmatpush.bf16.msra.mxu0 0
    %1168 = vmatpush.bf16.msra.mxu0 0
    %1169 = vmatpush.bf16.msra.mxu0 %v1157
    %1170 = vmatpush.bf16.msra.mxu0 %v1156
    %1171 = vmatmul.bf16.gmra.mxu0 %v1161
    %v1172 = vpop.f32.mrf.mxu0
    %v1173 = vadd.f32 %v1146, %v1172
    %v1174 = vpop.f32.mrf.mxu0
    %1175 = vdwg.mxu0
    %1177 = vrot.lane.b32.xlu0 %v1173, 120
    %v1178 = vpop.permute.xlu0 %1177
    %1180 = vrot.lane.b32.xlu0 %v1173, 112
    %v1181 = vpop.permute.xlu0 %1180
    %1183 = vrot.lane.b32.xlu0 %v1173, 104
    %v1184 = vpop.permute.xlu0 %1183
    %v1186 = vld [vmem:[#allocation13] sm:$0xf]
    %v1187 = vld [vmem:[#allocation13 + $0x4] sm:$0xf]
    %v1188 = vld [vmem:[#allocation13 + $0x8] sm:$0xf]
    %v1189 = vld [vmem:[#allocation13 + $0xc] sm:$0xf]
    %v1190 = vld [vmem:[#allocation14] sm:$0x1]
    %v1191 = vpack.c.bf16 %v1173, %v1173
    %v1192 = vpack.c.bf16 %v1178, %v1178
    %v1193 = vpack.c.bf16 %v1181, %v1181
    %v1194 = vpack.c.bf16 %v1184, %v1184
    %v1195 = vpack.c.bf16 %v1114, %v1114
    %v1196 = vpack.c.bf16 %v1121, %v1121
    %v1197 = vpack.c.bf16 %v1127, %v1127
    %v1198 = vpack.c.bf16 %v1133, %v1133
    %v1199 = vpack.c.bf16 %v1116, %v1116
    %v1200 = vpack.c.bf16 %v1123, %v1123
    %v1201 = vpack.c.bf16 %v1129, %v1129
    %v1202 = vpack.c.bf16 %v1135, %v1135
    %v1204 = vsel %vm438, %v1191, 0
    %v1207 = vsel %vm438, %v1195, 0
    %1209 = vmatpush.bf16.xpose.msra.mxu0 0
    %1210 = vmatpush.bf16.xpose.msra.mxu0 0
    %1211 = vmatpush.bf16.xpose.msra.mxu0 0
    %1212 = vmatpush.bf16.xpose.msra.mxu0 0
    %1213 = vmatpush.bf16.xpose.msra.mxu0 0
    %1214 = vmatpush.bf16.xpose.msra.mxu0 0
    %1215 = vmatpush.bf16.xpose.msra.mxu0 0
    %1216 = vmatpush.bf16.xpose.msra.mxu0 %v1207
    %1217 = vmatmul.bf16.gmra.mxu0 %v1204
    %v1218 = vpop.f32.mrf.mxu0
    %v1219 = vadd.f32 0.0, %v1218
    %v1220 = vpop.f32.mrf.mxu0
    %1221 = vdwg.mxu0
    %v1223 = vsel %vm438, %v1192, 0
    %v1226 = vsel %vm438, %v1196, 0
    %1228 = vmatpush.bf16.xpose.msra.mxu0 0
    %1229 = vmatpush.bf16.xpose.msra.mxu0 0
    %1230 = vmatpush.bf16.xpose.msra.mxu0 0
    %1231 = vmatpush.bf16.xpose.msra.mxu0 0
    %1232 = vmatpush.bf16.xpose.msra.mxu0 0
    %1233 = vmatpush.bf16.xpose.msra.mxu0 0
    %1234 = vmatpush.bf16.xpose.msra.mxu0 0
    %1235 = vmatpush.bf16.xpose.msra.mxu0 %v1226
    %1236 = vmatmul.bf16.gmra.mxu0 %v1223
    %v1237 = vpop.f32.mrf.mxu0
    %v1238 = vadd.f32 0.0, %v1237
    %v1239 = vpop.f32.mrf.mxu0
    %1240 = vdwg.mxu0
    %v1242 = vsel %vm438, %v1193, 0
    %v1245 = vsel %vm438, %v1197, 0
    %1247 = vmatpush.bf16.xpose.msra.mxu0 0
    %1248 = vmatpush.bf16.xpose.msra.mxu0 0
    %1249 = vmatpush.bf16.xpose.msra.mxu0 0
    %1250 = vmatpush.bf16.xpose.msra.mxu0 0
    %1251 = vmatpush.bf16.xpose.msra.mxu0 0
    %1252 = vmatpush.bf16.xpose.msra.mxu0 0
    %1253 = vmatpush.bf16.xpose.msra.mxu0 0
    %1254 = vmatpush.bf16.xpose.msra.mxu0 %v1245
    %1255 = vmatmul.bf16.gmra.mxu0 %v1242
    %v1256 = vpop.f32.mrf.mxu0
    %v1257 = vadd.f32 0.0, %v1256
    %v1258 = vpop.f32.mrf.mxu0
    %1259 = vdwg.mxu0
    %v1261 = vsel %vm438, %v1194, 0
    %v1264 = vsel %vm438, %v1198, 0
    %1266 = vmatpush.bf16.xpose.msra.mxu0 0
    %1267 = vmatpush.bf16.xpose.msra.mxu0 0
    %1268 = vmatpush.bf16.xpose.msra.mxu0 0
    %1269 = vmatpush.bf16.xpose.msra.mxu0 0
    %1270 = vmatpush.bf16.xpose.msra.mxu0 0
    %1271 = vmatpush.bf16.xpose.msra.mxu0 0
    %1272 = vmatpush.bf16.xpose.msra.mxu0 0
    %1273 = vmatpush.bf16.xpose.msra.mxu0 %v1264
    %1274 = vmatmul.bf16.gmra.mxu0 %v1261
    %v1275 = vpop.f32.mrf.mxu0
    %v1276 = vadd.f32 0.0, %v1275
    %v1277 = vpop.f32.mrf.mxu0
    %1278 = vdwg.mxu0
    %v1280 = vsel %vm438, %v1199, 0
    %1282 = vmatpush.bf16.xpose.msra.mxu0 0
    %1283 = vmatpush.bf16.xpose.msra.mxu0 0
    %1284 = vmatpush.bf16.xpose.msra.mxu0 0
    %1285 = vmatpush.bf16.xpose.msra.mxu0 0
    %1286 = vmatpush.bf16.xpose.msra.mxu0 0
    %1287 = vmatpush.bf16.xpose.msra.mxu0 0
    %1288 = vmatpush.bf16.xpose.msra.mxu0 0
    %1289 = vmatpush.bf16.xpose.msra.mxu0 %v1280
    %1290 = vmatmul.bf16.gmra.mxu0 %v1204
    %v1291 = vpop.f32.mrf.mxu0
    %v1292 = vadd.f32 0.0, %v1291
    %v1293 = vpop.f32.mrf.mxu0
    %1294 = vdwg.mxu0
    %v1296 = vsel %vm438, %v1200, 0
    %1298 = vmatpush.bf16.xpose.msra.mxu0 0
    %1299 = vmatpush.bf16.xpose.msra.mxu0 0
    %1300 = vmatpush.bf16.xpose.msra.mxu0 0
    %1301 = vmatpush.bf16.xpose.msra.mxu0 0
    %1302 = vmatpush.bf16.xpose.msra.mxu0 0
    %1303 = vmatpush.bf16.xpose.msra.mxu0 0
    %1304 = vmatpush.bf16.xpose.msra.mxu0 0
    %1305 = vmatpush.bf16.xpose.msra.mxu0 %v1296
    %1306 = vmatmul.bf16.gmra.mxu0 %v1223
    %v1307 = vpop.f32.mrf.mxu0
    %v1308 = vadd.f32 0.0, %v1307
    %v1309 = vpop.f32.mrf.mxu0
    %1310 = vdwg.mxu0
    %v1312 = vsel %vm438, %v1201, 0
    %1314 = vmatpush.bf16.xpose.msra.mxu0 0
    %1315 = vmatpush.bf16.xpose.msra.mxu0 0
    %1316 = vmatpush.bf16.xpose.msra.mxu0 0
    %1317 = vmatpush.bf16.xpose.msra.mxu0 0
    %1318 = vmatpush.bf16.xpose.msra.mxu0 0
    %1319 = vmatpush.bf16.xpose.msra.mxu0 0
    %1320 = vmatpush.bf16.xpose.msra.mxu0 0
    %1321 = vmatpush.bf16.xpose.msra.mxu0 %v1312
    %1322 = vmatmul.bf16.gmra.mxu0 %v1242
    %v1323 = vpop.f32.mrf.mxu0
    %v1324 = vadd.f32 0.0, %v1323
    %v1325 = vpop.f32.mrf.mxu0
    %1326 = vdwg.mxu0
    %v1328 = vsel %vm438, %v1202, 0
    %1330 = vmatpush.bf16.xpose.msra.mxu0 0
    %1331 = vmatpush.bf16.xpose.msra.mxu0 0
    %1332 = vmatpush.bf16.xpose.msra.mxu0 0
    %1333 = vmatpush.bf16.xpose.msra.mxu0 0
    %1334 = vmatpush.bf16.xpose.msra.mxu0 0
    %1335 = vmatpush.bf16.xpose.msra.mxu0 0
    %1336 = vmatpush.bf16.xpose.msra.mxu0 0
    %1337 = vmatpush.bf16.xpose.msra.mxu0 %v1328
    %1338 = vmatmul.bf16.gmra.mxu0 %v1261
    %v1339 = vpop.f32.mrf.mxu0
    %v1340 = vadd.f32 0.0, %v1339
    %v1341 = vpop.f32.mrf.mxu0
    %1342 = vdwg.mxu0
    %v1343 = vmul.f32 %v1219, 0.35355338
    %v1344 = vmul.f32 %v1238, 0.35355338
    %v1345 = vmul.f32 %v1257, 0.35355338
    %v1346 = vmul.f32 %v1276, 0.35355338
    %v1347 = vmul.f32 %v1292, 0.35355338
    %v1348 = vmul.f32 %v1308, 0.35355338
    %v1349 = vmul.f32 %v1324, 0.35355338
    %v1350 = vmul.f32 %v1340, 0.35355338
    %v1351 = vadd.f32 %v1343, %v636
    %v1352 = vadd.f32 %v1344, %v636
    %v1353 = vadd.f32 %v1345, %v636
    %v1354 = vadd.f32 %v1346, %v636
    %v1355 = vadd.f32 %v1347, %v637
    %v1356 = vadd.f32 %v1348, %v637
    %v1357 = vadd.f32 %v1349, %v637
    %v1358 = vadd.f32 %v1350, %v637
    %vm1359 = vcmask 58368
    %v1360 = vsel %vm1359, %v1351, -inf
    %1361 = vmax.xlane.f32.xlu0 %v1360
    %v1362 = vpop.xlane.xlu0 %1361
    %v1363 = vsel %vm1359, %v1352, -inf
    %1364 = vmax.xlane.f32.xlu0 %v1363
    %v1365 = vpop.xlane.xlu0 %1364
    %v1366 = vsel %vm1359, %v1353, -inf
    %1367 = vmax.xlane.f32.xlu0 %v1366
    %v1368 = vpop.xlane.xlu0 %1367
    %v1369 = vsel %vm1359, %v1354, -inf
    %1370 = vmax.xlane.f32.xlu0 %v1369
    %v1371 = vpop.xlane.xlu0 %1370
    %v1372 = vsel %vm1359, %v1355, -inf
    %1373 = vmax.xlane.f32.xlu0 %v1372
    %v1374 = vpop.xlane.xlu0 %1373
    %v1375 = vsel %vm1359, %v1356, -inf
    %1376 = vmax.xlane.f32.xlu0 %v1375
    %v1377 = vpop.xlane.xlu0 %1376
    %v1378 = vsel %vm1359, %v1357, -inf
    %1379 = vmax.xlane.f32.xlu0 %v1378
    %v1380 = vpop.xlane.xlu0 %1379
    %v1381 = vsel %vm1359, %v1358, -inf
    %1382 = vmax.xlane.f32.xlu0 %v1381
    %v1383 = vpop.xlane.xlu0 %1382
    %v1384 = vsub.f32 %v1351, %v1362
    %v1385 = vsub.f32 %v1352, %v1365
    %v1386 = vsub.f32 %v1353, %v1368
    %v1387 = vsub.f32 %v1354, %v1371
    %v1388 = vsub.f32 %v1355, %v1374
    %v1389 = vsub.f32 %v1356, %v1377
    %v1390 = vsub.f32 %v1357, %v1380
    %v1391 = vsub.f32 %v1358, %v1383
    %v1392 = vmul.f32 %v1384, 1.442695
    %v1393 = vpow.pop %v1392
    %v1394 = vmul.f32 %v1385, 1.442695
    %v1395 = vpow.pop %v1394
    %v1396 = vmul.f32 %v1386, 1.442695
    %v1397 = vpow.pop %v1396
    %v1398 = vmul.f32 %v1387, 1.442695
    %v1399 = vpow.pop %v1398
    %v1400 = vmul.f32 %v1388, 1.442695
    %v1401 = vpow.pop %v1400
    %v1402 = vmul.f32 %v1389, 1.442695
    %v1403 = vpow.pop %v1402
    %v1404 = vmul.f32 %v1390, 1.442695
    %v1405 = vpow.pop %v1404
    %v1406 = vmul.f32 %v1391, 1.442695
    %v1407 = vpow.pop %v1406
    %v1408 = vsel %vm1359, %v1393, 0.0
    %1409 = vadd.xlane.f32.xlu0 %v1408
    %v1410 = vpop.xlane.xlu0 %1409
    %v1411 = vsel %vm1359, %v1395, 0.0
    %1412 = vadd.xlane.f32.xlu0 %v1411
    %v1413 = vpop.xlane.xlu0 %1412
    %v1414 = vsel %vm1359, %v1397, 0.0
    %1415 = vadd.xlane.f32.xlu0 %v1414
    %v1416 = vpop.xlane.xlu0 %1415
    %v1417 = vsel %vm1359, %v1399, 0.0
    %1418 = vadd.xlane.f32.xlu0 %v1417
    %v1419 = vpop.xlane.xlu0 %1418
    %v1420 = vsel %vm1359, %v1401, 0.0
    %1421 = vadd.xlane.f32.xlu0 %v1420
    %v1422 = vpop.xlane.xlu0 %1421
    %v1423 = vsel %vm1359, %v1403, 0.0
    %1424 = vadd.xlane.f32.xlu0 %v1423
    %v1425 = vpop.xlane.xlu0 %1424
    %v1426 = vsel %vm1359, %v1405, 0.0
    %1427 = vadd.xlane.f32.xlu0 %v1426
    %v1428 = vpop.xlane.xlu0 %1427
    %v1429 = vsel %vm1359, %v1407, 0.0
    %1430 = vadd.xlane.f32.xlu0 %v1429
    %v1431 = vpop.xlane.xlu0 %1430
    %v1432 = vrcp.pop %v1410
    %v1433 = vrcp.pop %v1413
    %v1434 = vrcp.pop %v1416
    %v1435 = vrcp.pop %v1419
    %v1436 = vrcp.pop %v1422
    %v1437 = vrcp.pop %v1425
    %v1438 = vrcp.pop %v1428
    %v1439 = vrcp.pop %v1431
    %v1440 = vmul.f32 %v1393, %v1432
    %v1441 = vmul.f32 %v1395, %v1433
    %v1442 = vmul.f32 %v1397, %v1434
    %v1443 = vmul.f32 %v1399, %v1435
    %v1444 = vmul.f32 %v1401, %v1436
    %v1445 = vmul.f32 %v1403, %v1437
    %v1446 = vmul.f32 %v1405, %v1438
    %v1447 = vmul.f32 %v1407, %v1439
    %v1448 = vpack.c.bf16 %v1440, %v1440
    %v1449 = vpack.c.bf16 %v1441, %v1441
    %v1450 = vpack.c.bf16 %v1442, %v1442
    %v1451 = vpack.c.bf16 %v1443, %v1443
    %v1452 = vpack.c.bf16 %v1444, %v1444
    %v1453 = vpack.c.bf16 %v1445, %v1445
    %v1454 = vpack.c.bf16 %v1446, %v1446
    %v1455 = vpack.c.bf16 %v1447, %v1447
    %v1457 = vunpack.c.l.b16 %v1195
    %v1458 = vpack.c.b16 %v1457, %v1457
    %1459 = vrot.lane.b32.xlu0 %v1458, 96
    %v1460 = vpop.permute.xlu0 %1459
    %v1462 = vsel %vm438, %v1448, 0
    %v1465 = vsel %vm749, %v1460, 0
    %1467 = vmatpush.bf16.msra.mxu0 0
    %1468 = vmatpush.bf16.msra.mxu0 0
    %1469 = vmatpush.bf16.msra.mxu0 0
    %1470 = vmatpush.bf16.msra.mxu0 0
    %1471 = vmatpush.bf16.msra.mxu0 0
    %1472 = vmatpush.bf16.msra.mxu0 0
    %1473 = vmatpush.bf16.msra.mxu0 0
    %1474 = vmatpush.bf16.msra.mxu0 %v1465
    %1475 = vmatmul.bf16.gmra.mxu0 %v1462
    %v1476 = vpop.f32.mrf.mxu0
    %v1477 = vadd.f32 0.0, %v1476
    %v1478 = vpop.f32.mrf.mxu0
    %1479 = vdwg.mxu0
    %v1481 = vunpack.c.l.b16 %v1196
    %v1482 = vpack.c.b16 %v1481, %v1481
    %1483 = vrot.lane.b32.xlu0 %v1482, 96
    %v1484 = vpop.permute.xlu0 %1483
    %v1486 = vsel %vm438, %v1449, 0
    %v1489 = vsel %vm749, %v1484, 0
    %1491 = vmatpush.bf16.msra.mxu0 0
    %1492 = vmatpush.bf16.msra.mxu0 0
    %1493 = vmatpush.bf16.msra.mxu0 0
    %1494 = vmatpush.bf16.msra.mxu0 0
    %1495 = vmatpush.bf16.msra.mxu0 0
    %1496 = vmatpush.bf16.msra.mxu0 0
    %1497 = vmatpush.bf16.msra.mxu0 0
    %1498 = vmatpush.bf16.msra.mxu0 %v1489
    %1499 = vmatmul.bf16.gmra.mxu0 %v1486
    %v1500 = vpop.f32.mrf.mxu0
    %v1501 = vadd.f32 0.0, %v1500
    %v1502 = vpop.f32.mrf.mxu0
    %1503 = vdwg.mxu0
    %v1505 = vunpack.c.l.b16 %v1197
    %v1506 = vpack.c.b16 %v1505, %v1505
    %1507 = vrot.lane.b32.xlu0 %v1506, 96
    %v1508 = vpop.permute.xlu0 %1507
    %v1510 = vsel %vm438, %v1450, 0
    %v1513 = vsel %vm749, %v1508, 0
    %1515 = vmatpush.bf16.msra.mxu0 0
    %1516 = vmatpush.bf16.msra.mxu0 0
    %1517 = vmatpush.bf16.msra.mxu0 0
    %1518 = vmatpush.bf16.msra.mxu0 0
    %1519 = vmatpush.bf16.msra.mxu0 0
    %1520 = vmatpush.bf16.msra.mxu0 0
    %1521 = vmatpush.bf16.msra.mxu0 0
    %1522 = vmatpush.bf16.msra.mxu0 %v1513
    %1523 = vmatmul.bf16.gmra.mxu0 %v1510
    %v1524 = vpop.f32.mrf.mxu0
    %v1525 = vadd.f32 0.0, %v1524
    %v1526 = vpop.f32.mrf.mxu0
    %1527 = vdwg.mxu0
    %v1529 = vunpack.c.l.b16 %v1198
    %v1530 = vpack.c.b16 %v1529, %v1529
    %1531 = vrot.lane.b32.xlu0 %v1530, 96
    %v1532 = vpop.permute.xlu0 %1531
    %v1534 = vsel %vm438, %v1451, 0
    %v1537 = vsel %vm749, %v1532, 0
    %1539 = vmatpush.bf16.msra.mxu0 0
    %1540 = vmatpush.bf16.msra.mxu0 0
    %1541 = vmatpush.bf16.msra.mxu0 0
    %1542 = vmatpush.bf16.msra.mxu0 0
    %1543 = vmatpush.bf16.msra.mxu0 0
    %1544 = vmatpush.bf16.msra.mxu0 0
    %1545 = vmatpush.bf16.msra.mxu0 0
    %1546 = vmatpush.bf16.msra.mxu0 %v1537
    %1547 = vmatmul.bf16.gmra.mxu0 %v1534
    %v1548 = vpop.f32.mrf.mxu0
    %v1549 = vadd.f32 0.0, %v1548
    %v1550 = vpop.f32.mrf.mxu0
    %1551 = vdwg.mxu0
    %v1553 = vunpack.c.l.b16 %v1199
    %v1554 = vpack.c.b16 %v1553, %v1553
    %1555 = vrot.lane.b32.xlu0 %v1554, 96
    %v1556 = vpop.permute.xlu0 %1555
    %v1558 = vsel %vm438, %v1452, 0
    %v1561 = vsel %vm749, %v1556, 0
    %1563 = vmatpush.bf16.msra.mxu0 0
    %1564 = vmatpush.bf16.msra.mxu0 0
    %1565 = vmatpush.bf16.msra.mxu0 0
    %1566 = vmatpush.bf16.msra.mxu0 0
    %1567 = vmatpush.bf16.msra.mxu0 0
    %1568 = vmatpush.bf16.msra.mxu0 0
    %1569 = vmatpush.bf16.msra.mxu0 0
    %1570 = vmatpush.bf16.msra.mxu0 %v1561
    %1571 = vmatmul.bf16.gmra.mxu0 %v1558
    %v1572 = vpop.f32.mrf.mxu0
    %v1573 = vadd.f32 0.0, %v1572
    %v1574 = vpop.f32.mrf.mxu0
    %1575 = vdwg.mxu0
    %v1577 = vunpack.c.l.b16 %v1200
    %v1578 = vpack.c.b16 %v1577, %v1577
    %1579 = vrot.lane.b32.xlu0 %v1578, 96
    %v1580 = vpop.permute.xlu0 %1579
    %v1582 = vsel %vm438, %v1453, 0
    %v1585 = vsel %vm749, %v1580, 0
    %1587 = vmatpush.bf16.msra.mxu0 0
    %1588 = vmatpush.bf16.msra.mxu0 0
    %1589 = vmatpush.bf16.msra.mxu0 0
    %1590 = vmatpush.bf16.msra.mxu0 0
    %1591 = vmatpush.bf16.msra.mxu0 0
    %1592 = vmatpush.bf16.msra.mxu0 0
    %1593 = vmatpush.bf16.msra.mxu0 0
    %1594 = vmatpush.bf16.msra.mxu0 %v1585
    %1595 = vmatmul.bf16.gmra.mxu0 %v1582
    %v1596 = vpop.f32.mrf.mxu0
    %v1597 = vadd.f32 0.0, %v1596
    %v1598 = vpop.f32.mrf.mxu0
    %1599 = vdwg.mxu0
    %v1601 = vunpack.c.l.b16 %v1201
    %v1602 = vpack.c.b16 %v1601, %v1601
    %1603 = vrot.lane.b32.xlu0 %v1602, 96
    %v1604 = vpop.permute.xlu0 %1603
    %v1606 = vsel %vm438, %v1454, 0
    %v1609 = vsel %vm749, %v1604, 0
    %1611 = vmatpush.bf16.msra.mxu0 0
    %1612 = vmatpush.bf16.msra.mxu0 0
    %1613 = vmatpush.bf16.msra.mxu0 0
    %1614 = vmatpush.bf16.msra.mxu0 0
    %1615 = vmatpush.bf16.msra.mxu0 0
    %1616 = vmatpush.bf16.msra.mxu0 0
    %1617 = vmatpush.bf16.msra.mxu0 0
    %1618 = vmatpush.bf16.msra.mxu0 %v1609
    %1619 = vmatmul.bf16.gmra.mxu0 %v1606
    %v1620 = vpop.f32.mrf.mxu0
    %v1621 = vadd.f32 0.0, %v1620
    %v1622 = vpop.f32.mrf.mxu0
    %1623 = vdwg.mxu0
    %v1625 = vunpack.c.l.b16 %v1202
    %v1626 = vpack.c.b16 %v1625, %v1625
    %1627 = vrot.lane.b32.xlu0 %v1626, 96
    %v1628 = vpop.permute.xlu0 %1627
    %v1630 = vsel %vm438, %v1455, 0
    %v1633 = vsel %vm749, %v1628, 0
    %1635 = vmatpush.bf16.msra.mxu0 0
    %1636 = vmatpush.bf16.msra.mxu0 0
    %1637 = vmatpush.bf16.msra.mxu0 0
    %1638 = vmatpush.bf16.msra.mxu0 0
    %1639 = vmatpush.bf16.msra.mxu0 0
    %1640 = vmatpush.bf16.msra.mxu0 0
    %1641 = vmatpush.bf16.msra.mxu0 0
    %1642 = vmatpush.bf16.msra.mxu0 %v1633
    %1643 = vmatmul.bf16.gmra.mxu0 %v1630
    %v1644 = vpop.f32.mrf.mxu0
    %v1645 = vadd.f32 0.0, %v1644
    %v1646 = vpop.f32.mrf.mxu0
    %1647 = vdwg.mxu0
    %v1648 = vpack.c.bf16 %v1477, %v1477
    %v1649 = vpack.c.bf16 %v1501, %v1501
    %v1650 = vpack.c.bf16 %v1525, %v1525
    %v1651 = vpack.c.bf16 %v1549, %v1549
    %v1652 = vpack.c.bf16 %v1573, %v1573
    %v1653 = vpack.c.bf16 %v1597, %v1597
    %v1654 = vpack.c.bf16 %v1621, %v1621
    %v1655 = vpack.c.bf16 %v1645, %v1645
    %v1657 = vsel %vm438, %v1648, 0
    %v1660 = vsel %vm749, %v1186, 0
    %1662 = vmatpush.bf16.msra.mxu0 0
    %1663 = vmatpush.bf16.msra.mxu0 0
    %1664 = vmatpush.bf16.msra.mxu0 0
    %1665 = vmatpush.bf16.msra.mxu0 0
    %1666 = vmatpush.bf16.msra.mxu0 0
    %1667 = vmatpush.bf16.msra.mxu0 0
    %1668 = vmatpush.bf16.msra.mxu0 0
    %1669 = vmatpush.bf16.msra.mxu0 %v1660
    %1670 = vmatmul.bf16.gmra.mxu0 %v1657
    %v1671 = vpop.f32.mrf.mxu0
    %v1672 = vadd.f32 0.0, %v1671
    %v1673 = vpop.f32.mrf.mxu0
    %1674 = vdwg.mxu0
    %v1676 = vsel %vm438, %v1649, 0
    %v1679 = vsel %vm749, %v1187, 0
    %1681 = vmatpush.bf16.msra.mxu0 0
    %1682 = vmatpush.bf16.msra.mxu0 0
    %1683 = vmatpush.bf16.msra.mxu0 0
    %1684 = vmatpush.bf16.msra.mxu0 0
    %1685 = vmatpush.bf16.msra.mxu0 0
    %1686 = vmatpush.bf16.msra.mxu0 0
    %1687 = vmatpush.bf16.msra.mxu0 0
    %1688 = vmatpush.bf16.msra.mxu0 %v1679
    %1689 = vmatmul.bf16.gmra.mxu0 %v1676
    %v1690 = vpop.f32.mrf.mxu0
    %v1691 = vadd.f32 0.0, %v1690
    %v1692 = vpop.f32.mrf.mxu0
    %1693 = vdwg.mxu0
    %v1695 = vsel %vm438, %v1650, 0
    %v1698 = vsel %vm749, %v1188, 0
    %1700 = vmatpush.bf16.msra.mxu0 0
    %1701 = vmatpush.bf16.msra.mxu0 0
    %1702 = vmatpush.bf16.msra.mxu0 0
    %1703 = vmatpush.bf16.msra.mxu0 0
    %1704 = vmatpush.bf16.msra.mxu0 0
    %1705 = vmatpush.bf16.msra.mxu0 0
    %1706 = vmatpush.bf16.msra.mxu0 0
    %1707 = vmatpush.bf16.msra.mxu0 %v1698
    %1708 = vmatmul.bf16.gmra.mxu0 %v1695
    %v1709 = vpop.f32.mrf.mxu0
    %v1710 = vadd.f32 0.0, %v1709
    %v1711 = vpop.f32.mrf.mxu0
    %1712 = vdwg.mxu0
    %v1714 = vsel %vm438, %v1651, 0
    %v1717 = vsel %vm749, %v1189, 0
    %1719 = vmatpush.bf16.msra.mxu0 0
    %1720 = vmatpush.bf16.msra.mxu0 0
    %1721 = vmatpush.bf16.msra.mxu0 0
    %1722 = vmatpush.bf16.msra.mxu0 0
    %1723 = vmatpush.bf16.msra.mxu0 0
    %1724 = vmatpush.bf16.msra.mxu0 0
    %1725 = vmatpush.bf16.msra.mxu0 0
    %1726 = vmatpush.bf16.msra.mxu0 %v1717
    %1727 = vmatmul.bf16.gmra.mxu0 %v1714
    %v1728 = vpop.f32.mrf.mxu0
    %v1729 = vadd.f32 0.0, %v1728
    %v1730 = vpop.f32.mrf.mxu0
    %1731 = vdwg.mxu0
    %v1733 = vsel %vm438, %v1652, 0
    %1735 = vmatpush.bf16.msra.mxu0 0
    %1736 = vmatpush.bf16.msra.mxu0 0
    %1737 = vmatpush.bf16.msra.mxu0 0
    %1738 = vmatpush.bf16.msra.mxu0 0
    %1739 = vmatpush.bf16.msra.mxu0 0
    %1740 = vmatpush.bf16.msra.mxu0 0
    %1741 = vmatpush.bf16.msra.mxu0 0
    %1742 = vmatpush.bf16.msra.mxu0 %v1660
    %1743 = vmatmul.bf16.gmra.mxu0 %v1733
    %v1744 = vpop.f32.mrf.mxu0
    %v1745 = vadd.f32 0.0, %v1744
    %v1746 = vpop.f32.mrf.mxu0
    %1747 = vdwg.mxu0
    %v1749 = vsel %vm438, %v1653, 0
    %1751 = vmatpush.bf16.msra.mxu0 0
    %1752 = vmatpush.bf16.msra.mxu0 0
    %1753 = vmatpush.bf16.msra.mxu0 0
    %1754 = vmatpush.bf16.msra.mxu0 0
    %1755 = vmatpush.bf16.msra.mxu0 0
    %1756 = vmatpush.bf16.msra.mxu0 0
    %1757 = vmatpush.bf16.msra.mxu0 0
    %1758 = vmatpush.bf16.msra.mxu0 %v1679
    %1759 = vmatmul.bf16.gmra.mxu0 %v1749
    %v1760 = vpop.f32.mrf.mxu0
    %v1761 = vadd.f32 0.0, %v1760
    %v1762 = vpop.f32.mrf.mxu0
    %1763 = vdwg.mxu0
    %v1765 = vsel %vm438, %v1654, 0
    %1767 = vmatpush.bf16.msra.mxu0 0
    %1768 = vmatpush.bf16.msra.mxu0 0
    %1769 = vmatpush.bf16.msra.mxu0 0
    %1770 = vmatpush.bf16.msra.mxu0 0
    %1771 = vmatpush.bf16.msra.mxu0 0
    %1772 = vmatpush.bf16.msra.mxu0 0
    %1773 = vmatpush.bf16.msra.mxu0 0
    %1774 = vmatpush.bf16.msra.mxu0 %v1698
    %1775 = vmatmul.bf16.gmra.mxu0 %v1765
    %v1776 = vpop.f32.mrf.mxu0
    %v1777 = vadd.f32 0.0, %v1776
    %v1778 = vpop.f32.mrf.mxu0
    %1779 = vdwg.mxu0
    %v1781 = vsel %vm438, %v1655, 0
    %1783 = vmatpush.bf16.msra.mxu0 0
    %1784 = vmatpush.bf16.msra.mxu0 0
    %1785 = vmatpush.bf16.msra.mxu0 0
    %1786 = vmatpush.bf16.msra.mxu0 0
    %1787 = vmatpush.bf16.msra.mxu0 0
    %1788 = vmatpush.bf16.msra.mxu0 0
    %1789 = vmatpush.bf16.msra.mxu0 0
    %1790 = vmatpush.bf16.msra.mxu0 %v1717
    %1791 = vmatmul.bf16.gmra.mxu0 %v1781
    %v1792 = vpop.f32.mrf.mxu0
    %v1793 = vadd.f32 0.0, %v1792
    %v1794 = vpop.f32.mrf.mxu0
    %1795 = vdwg.mxu0
    %vm1796 = vcmask 254976
    %v1797 = vsel %vm1796, %v1672, 0.0
    %v1798 = vsel %vm1796, %v1691, 0.0
    %v1799 = vadd.f32 %v1797, %v1798
    %v1800 = vsel %vm1796, %v1710, 0.0
    %v1801 = vadd.f32 %v1799, %v1800
    %v1802 = vsel %vm1796, %v1729, 0.0
    %v1803 = vadd.f32 %v1801, %v1802
    %v1804 = vsel %vm1796, %v1745, 0.0
    %v1805 = vsel %vm1796, %v1761, 0.0
    %v1806 = vadd.f32 %v1804, %v1805
    %v1807 = vsel %vm1796, %v1777, 0.0
    %v1808 = vadd.f32 %v1806, %v1807
    %v1809 = vsel %vm1796, %v1793, 0.0
    %v1810 = vadd.f32 %v1808, %v1809
    %v1812 = vperm.slane %v1190, 0
    %v1814 = vadd.f32 %v1803, %v1812
    %v1815 = vadd.f32 %v1810, %v1812
    %v1816 = vpack.c.bf16 %v1814, %v1814
    %v1817 = vpack.c.bf16 %v1815, %v1815
    %v1820 = vunpack.c.l.b16 %v1816
    %v1821 = vunpack.c.l.b16 %v1817
    %v1822 = vrot.slane %v1820, 1
    %vm1823 = vcmask 1041409
    %v1824 = vsel %vm1823, %v1821, %v1822
    %v1825 = vpack.c.b16 %v1824, %v1824
    %v1830 = vunpack.c.l.b16 %v341
    %v1831 = vunpack.c.l.b16 %v342
    %v1832 = vunpack.c.l.b16 %v343
    %v1833 = vunpack.c.l.b16 %v344
    %v1834 = vpack.c.b16 %v1831, %v1830
    %v1835 = vpack.c.b16 %v1833, %v1832
    %v1839 = vsel %vm382, %v1825, 0
    %1841 = vmatpush.bf16.msra.mxu0 0
    %1842 = vmatpush.bf16.msra.mxu0 0
    %1843 = vmatpush.bf16.msra.mxu0 0
    %1844 = vmatpush.bf16.msra.mxu0 0
    %1845 = vmatpush.bf16.msra.mxu0 0
    %1846 = vmatpush.bf16.msra.mxu0 0
    %1847 = vmatpush.bf16.msra.mxu0 %v1835
    %1848 = vmatpush.bf16.msra.mxu0 %v1834
    %1849 = vmatmul.bf16.gmra.mxu0 %v1839
    %v1850 = vpop.f32.mrf.mxu0
    %v1851 = vadd.f32 0.0, %v1850
    %v1852 = vpop.f32.mrf.mxu0
    %1853 = vdwg.mxu0
    %v1854 = vrot.slane %v1821, 7
    %v1855 = vsel %vm1823, %v1854, %v1820
    %v1856 = vpack.c.b16 %v1855, %v1855
    %v1861 = vunpack.c.l.b16 %v337
    %v1862 = vunpack.c.l.b16 %v338
    %v1863 = vunpack.c.l.b16 %v339
    %v1864 = vunpack.c.l.b16 %v340
    %v1865 = vpack.c.b16 %v1862, %v1861
    %v1866 = vpack.c.b16 %v1864, %v1863
    %v1870 = vsel %vm382, %v1856, 0
    %1872 = vmatpush.bf16.msra.mxu0 0
    %1873 = vmatpush.bf16.msra.mxu0 0
    %1874 = vmatpush.bf16.msra.mxu0 0
    %1875 = vmatpush.bf16.msra.mxu0 0
    %1876 = vmatpush.bf16.msra.mxu0 0
    %1877 = vmatpush.bf16.msra.mxu0 0
    %1878 = vmatpush.bf16.msra.mxu0 %v1866
    %1879 = vmatpush.bf16.msra.mxu0 %v1865
    %1880 = vmatmul.bf16.gmra.mxu0 %v1870
    %v1881 = vpop.f32.mrf.mxu0
    %v1882 = vadd.f32 %v1851, %v1881
    %v1883 = vpop.f32.mrf.mxu0
    %1884 = vdwg.mxu0
    %v1885 = vld [vmem:[#allocation17] sm:$0x1]
    %v1886 = vld [vmem:[#allocation17 + $0x1] sm:$0x1]
    %vm1887 = vcmp.gt.f32.partialorder %v1885, 0.5
    %vm1888 = vcmp.gt.f32.partialorder %v1886, 0.5
    %v1889 = vsel %vm1887, -1e+30, 0.0
    %v1890 = vsel %vm1888, -1e+30, 0.0
    %v1891 = vld [vmem:[#allocation16] sm:$0xff]
    %v1892 = vld [vmem:[#allocation16 + $0x8] sm:$0xff]
    %v1893 = vld [vmem:[#allocation19] sm:$0xf]
    %v1894 = vld [vmem:[#allocation19 + $0x4] sm:$0xf]
    %v1895 = vld [vmem:[#allocation19 + $0x8] sm:$0xf]
    %v1896 = vld [vmem:[#allocation19 + $0xc] sm:$0xf]
    %v1897 = vpack.c.bf16 %v1892, %v1891
    %v1898 = vld [vmem:[#allocation20] sm:$0x1]
    %v1900 = vperm.slane %v1898, 0
    %v1906 = vunpack.c.l.b16 %v1893
    %v1907 = vunpack.c.l.b16 %v1894
    %v1908 = vunpack.c.l.b16 %v1895
    %v1909 = vunpack.c.l.b16 %v1896
    %v1910 = vpack.c.b16 %v1907, %v1906
    %v1911 = vpack.c.b16 %v1909, %v1908
    %v1915 = vsel %vm382, %v1897, 0
    %1917 = vmatpush.bf16.msra.mxu0 0
    %1918 = vmatpush.bf16.msra.mxu0 0
    %1919 = vmatpush.bf16.msra.mxu0 0
    %1920 = vmatpush.bf16.msra.mxu0 0
    %1921 = vmatpush.bf16.msra.mxu0 0
    %1922 = vmatpush.bf16.msra.mxu0 0
    %1923 = vmatpush.bf16.msra.mxu0 %v1911
    %1924 = vmatpush.bf16.msra.mxu0 %v1910
    %1925 = vmatmul.bf16.gmra.mxu0 %v1915
    %v1926 = vpop.f32.mrf.mxu0
    %v1927 = vadd.f32 %v1900, %v1926
    %v1928 = vpop.f32.mrf.mxu0
    %v1929 = vadd.f32 %v1900, %v1928
    %1930 = vdwg.mxu0
    %1933 = vrot.lane.b32.xlu0 %v1927, 120
    %v1934 = vpop.permute.xlu0 %1933
    %1935 = vrot.lane.b32.xlu0 %v1929, 120
    %v1936 = vpop.permute.xlu0 %1935
    %1939 = vrot.lane.b32.xlu0 %v1927, 112
    %v1940 = vpop.permute.xlu0 %1939
    %1941 = vrot.lane.b32.xlu0 %v1929, 112
    %v1942 = vpop.permute.xlu0 %1941
    %1945 = vrot.lane.b32.xlu0 %v1927, 104
    %v1946 = vpop.permute.xlu0 %1945
    %1947 = vrot.lane.b32.xlu0 %v1929, 104
    %v1948 = vpop.permute.xlu0 %1947
    %v1951 = vld [vmem:[#allocation22] sm:$0xf]
    %v1952 = vld [vmem:[#allocation22 + $0x4] sm:$0xf]
    %v1953 = vld [vmem:[#allocation22 + $0x8] sm:$0xf]
    %v1954 = vld [vmem:[#allocation22 + $0xc] sm:$0xf]
    %v1955 = vld [vmem:[#allocation23] sm:$0x1]
    %v1956 = vpack.c.bf16 %v1927, %v1927
    %v1957 = vpack.c.bf16 %v1934, %v1934
    %v1958 = vpack.c.bf16 %v1940, %v1940
    %v1959 = vpack.c.bf16 %v1946, %v1946
    %v1960 = vpack.c.bf16 %v1929, %v1929
    %v1961 = vpack.c.bf16 %v1936, %v1936
    %v1962 = vpack.c.bf16 %v1942, %v1942
    %v1963 = vpack.c.bf16 %v1948, %v1948
    %v1965 = vunpack.c.l.b16 %v1956
    %v1966 = vpack.c.b16 %v1965, %v1965
    %1967 = vrot.lane.b32.xlu0 %v1966, 96
    %v1968 = vpop.permute.xlu0 %1967
    %v1970 = vsel %vm438, %v1956, 0
    %v1973 = vsel %vm438, %v1968, 0
    %1975 = vmatpush.bf16.xpose.msra.mxu0 0
    %1976 = vmatpush.bf16.xpose.msra.mxu0 0
    %1977 = vmatpush.bf16.xpose.msra.mxu0 0
    %1978 = vmatpush.bf16.xpose.msra.mxu0 0
    %1979 = vmatpush.bf16.xpose.msra.mxu0 0
    %1980 = vmatpush.bf16.xpose.msra.mxu0 0
    %1981 = vmatpush.bf16.xpose.msra.mxu0 0
    %1982 = vmatpush.bf16.xpose.msra.mxu0 %v1973
    %1983 = vmatmul.bf16.gmra.mxu0 %v1970
    %v1984 = vpop.f32.mrf.mxu0
    %v1985 = vadd.f32 0.0, %v1984
    %v1986 = vpop.f32.mrf.mxu0
    %1987 = vdwg.mxu0
    %v1989 = vunpack.c.l.b16 %v1957
    %v1990 = vpack.c.b16 %v1989, %v1989
    %1991 = vrot.lane.b32.xlu0 %v1990, 96
    %v1992 = vpop.permute.xlu0 %1991
    %v1994 = vsel %vm438, %v1957, 0
    %v1997 = vsel %vm438, %v1992, 0
    %1999 = vmatpush.bf16.xpose.msra.mxu0 0
    %2000 = vmatpush.bf16.xpose.msra.mxu0 0
    %2001 = vmatpush.bf16.xpose.msra.mxu0 0
    %2002 = vmatpush.bf16.xpose.msra.mxu0 0
    %2003 = vmatpush.bf16.xpose.msra.mxu0 0
    %2004 = vmatpush.bf16.xpose.msra.mxu0 0
    %2005 = vmatpush.bf16.xpose.msra.mxu0 0
    %2006 = vmatpush.bf16.xpose.msra.mxu0 %v1997
    %2007 = vmatmul.bf16.gmra.mxu0 %v1994
    %v2008 = vpop.f32.mrf.mxu0
    %v2009 = vadd.f32 0.0, %v2008
    %v2010 = vpop.f32.mrf.mxu0
    %2011 = vdwg.mxu0
    %v2013 = vunpack.c.l.b16 %v1958
    %v2014 = vpack.c.b16 %v2013, %v2013
    %2015 = vrot.lane.b32.xlu0 %v2014, 96
    %v2016 = vpop.permute.xlu0 %2015
    %v2018 = vsel %vm438, %v1958, 0
    %v2021 = vsel %vm438, %v2016, 0
    %2023 = vmatpush.bf16.xpose.msra.mxu0 0
    %2024 = vmatpush.bf16.xpose.msra.mxu0 0
    %2025 = vmatpush.bf16.xpose.msra.mxu0 0
    %2026 = vmatpush.bf16.xpose.msra.mxu0 0
    %2027 = vmatpush.bf16.xpose.msra.mxu0 0
    %2028 = vmatpush.bf16.xpose.msra.mxu0 0
    %2029 = vmatpush.bf16.xpose.msra.mxu0 0
    %2030 = vmatpush.bf16.xpose.msra.mxu0 %v2021
    %2031 = vmatmul.bf16.gmra.mxu0 %v2018
    %v2032 = vpop.f32.mrf.mxu0
    %v2033 = vadd.f32 0.0, %v2032
    %v2034 = vpop.f32.mrf.mxu0
    %2035 = vdwg.mxu0
    %v2037 = vunpack.c.l.b16 %v1959
    %v2038 = vpack.c.b16 %v2037, %v2037
    %2039 = vrot.lane.b32.xlu0 %v2038, 96
    %v2040 = vpop.permute.xlu0 %2039
    %v2042 = vsel %vm438, %v1959, 0
    %v2045 = vsel %vm438, %v2040, 0
    %2047 = vmatpush.bf16.xpose.msra.mxu0 0
    %2048 = vmatpush.bf16.xpose.msra.mxu0 0
    %2049 = vmatpush.bf16.xpose.msra.mxu0 0
    %2050 = vmatpush.bf16.xpose.msra.mxu0 0
    %2051 = vmatpush.bf16.xpose.msra.mxu0 0
    %2052 = vmatpush.bf16.xpose.msra.mxu0 0
    %2053 = vmatpush.bf16.xpose.msra.mxu0 0
    %2054 = vmatpush.bf16.xpose.msra.mxu0 %v2045
    %2055 = vmatmul.bf16.gmra.mxu0 %v2042
    %v2056 = vpop.f32.mrf.mxu0
    %v2057 = vadd.f32 0.0, %v2056
    %v2058 = vpop.f32.mrf.mxu0
    %2059 = vdwg.mxu0
    %v2061 = vunpack.c.l.b16 %v1960
    %v2062 = vpack.c.b16 %v2061, %v2061
    %2063 = vrot.lane.b32.xlu0 %v2062, 96
    %v2064 = vpop.permute.xlu0 %2063
    %v2066 = vsel %vm438, %v1960, 0
    %v2069 = vsel %vm438, %v2064, 0
    %2071 = vmatpush.bf16.xpose.msra.mxu0 0
    %2072 = vmatpush.bf16.xpose.msra.mxu0 0
    %2073 = vmatpush.bf16.xpose.msra.mxu0 0
    %2074 = vmatpush.bf16.xpose.msra.mxu0 0
    %2075 = vmatpush.bf16.xpose.msra.mxu0 0
    %2076 = vmatpush.bf16.xpose.msra.mxu0 0
    %2077 = vmatpush.bf16.xpose.msra.mxu0 0
    %2078 = vmatpush.bf16.xpose.msra.mxu0 %v2069
    %2079 = vmatmul.bf16.gmra.mxu0 %v2066
    %v2080 = vpop.f32.mrf.mxu0
    %v2081 = vadd.f32 0.0, %v2080
    %v2082 = vpop.f32.mrf.mxu0
    %2083 = vdwg.mxu0
    %v2085 = vunpack.c.l.b16 %v1961
    %v2086 = vpack.c.b16 %v2085, %v2085
    %2087 = vrot.lane.b32.xlu0 %v2086, 96
    %v2088 = vpop.permute.xlu0 %2087
    %v2090 = vsel %vm438, %v1961, 0
    %v2093 = vsel %vm438, %v2088, 0
    %2095 = vmatpush.bf16.xpose.msra.mxu0 0
    %2096 = vmatpush.bf16.xpose.msra.mxu0 0
    %2097 = vmatpush.bf16.xpose.msra.mxu0 0
    %2098 = vmatpush.bf16.xpose.msra.mxu0 0
    %2099 = vmatpush.bf16.xpose.msra.mxu0 0
    %2100 = vmatpush.bf16.xpose.msra.mxu0 0
    %2101 = vmatpush.bf16.xpose.msra.mxu0 0
    %2102 = vmatpush.bf16.xpose.msra.mxu0 %v2093
    %2103 = vmatmul.bf16.gmra.mxu0 %v2090
    %v2104 = vpop.f32.mrf.mxu0
    %v2105 = vadd.f32 0.0, %v2104
    %v2106 = vpop.f32.mrf.mxu0
    %2107 = vdwg.mxu0
    %v2109 = vunpack.c.l.b16 %v1962
    %v2110 = vpack.c.b16 %v2109, %v2109
    %2111 = vrot.lane.b32.xlu0 %v2110, 96
    %v2112 = vpop.permute.xlu0 %2111
    %v2114 = vsel %vm438, %v1962, 0
    %v2117 = vsel %vm438, %v2112, 0
    %2119 = vmatpush.bf16.xpose.msra.mxu0 0
    %2120 = vmatpush.bf16.xpose.msra.mxu0 0
    %2121 = vmatpush.bf16.xpose.msra.mxu0 0
    %2122 = vmatpush.bf16.xpose.msra.mxu0 0
    %2123 = vmatpush.bf16.xpose.msra.mxu0 0
    %2124 = vmatpush.bf16.xpose.msra.mxu0 0
    %2125 = vmatpush.bf16.xpose.msra.mxu0 0
    %2126 = vmatpush.bf16.xpose.msra.mxu0 %v2117
    %2127 = vmatmul.bf16.gmra.mxu0 %v2114
    %v2128 = vpop.f32.mrf.mxu0
    %v2129 = vadd.f32 0.0, %v2128
    %v2130 = vpop.f32.mrf.mxu0
    %2131 = vdwg.mxu0
    %v2133 = vunpack.c.l.b16 %v1963
    %v2134 = vpack.c.b16 %v2133, %v2133
    %2135 = vrot.lane.b32.xlu0 %v2134, 96
    %v2136 = vpop.permute.xlu0 %2135
    %v2138 = vsel %vm438, %v1963, 0
    %v2141 = vsel %vm438, %v2136, 0
    %2143 = vmatpush.bf16.xpose.msra.mxu0 0
    %2144 = vmatpush.bf16.xpose.msra.mxu0 0
    %2145 = vmatpush.bf16.xpose.msra.mxu0 0
    %2146 = vmatpush.bf16.xpose.msra.mxu0 0
    %2147 = vmatpush.bf16.xpose.msra.mxu0 0
    %2148 = vmatpush.bf16.xpose.msra.mxu0 0
    %2149 = vmatpush.bf16.xpose.msra.mxu0 0
    %2150 = vmatpush.bf16.xpose.msra.mxu0 %v2141
    %2151 = vmatmul.bf16.gmra.mxu0 %v2138
    %v2152 = vpop.f32.mrf.mxu0
    %v2153 = vadd.f32 0.0, %v2152
    %v2154 = vpop.f32.mrf.mxu0
    %2155 = vdwg.mxu0
    %v2156 = vmul.f32 %v1985, 0.35355338
    %v2157 = vmul.f32 %v2009, 0.35355338
    %v2158 = vmul.f32 %v2033, 0.35355338
    %v2159 = vmul.f32 %v2057, 0.35355338
    %v2160 = vmul.f32 %v2081, 0.35355338
    %v2161 = vmul.f32 %v2105, 0.35355338
    %v2162 = vmul.f32 %v2129, 0.35355338
    %v2163 = vmul.f32 %v2153, 0.35355338
    %v2166 = vperm.slane %v1889, 0
    %v2167 = vperm.slane %v1890, 0
    %v2170 = vadd.f32 %v2156, %v2166
    %v2171 = vadd.f32 %v2157, %v2166
    %v2172 = vadd.f32 %v2158, %v2166
    %v2173 = vadd.f32 %v2159, %v2166
    %v2174 = vadd.f32 %v2160, %v2167
    %v2175 = vadd.f32 %v2161, %v2167
    %v2176 = vadd.f32 %v2162, %v2167
    %v2177 = vadd.f32 %v2163, %v2167
    %v2178 = vsel %vm438, %v2170, -inf
    %2179 = vmax.xlane.f32.xlu0 %v2178
    %v2180 = vpop.xlane.xlu0 %2179
    %v2181 = vsel %vm438, %v2171, -inf
    %2182 = vmax.xlane.f32.xlu0 %v2181
    %v2183 = vpop.xlane.xlu0 %2182
    %v2184 = vsel %vm438, %v2172, -inf
    %2185 = vmax.xlane.f32.xlu0 %v2184
    %v2186 = vpop.xlane.xlu0 %2185
    %v2187 = vsel %vm438, %v2173, -inf
    %2188 = vmax.xlane.f32.xlu0 %v2187
    %v2189 = vpop.xlane.xlu0 %2188
    %v2190 = vsel %vm438, %v2174, -inf
    %2191 = vmax.xlane.f32.xlu0 %v2190
    %v2192 = vpop.xlane.xlu0 %2191
    %v2193 = vsel %vm438, %v2175, -inf
    %2194 = vmax.xlane.f32.xlu0 %v2193
    %v2195 = vpop.xlane.xlu0 %2194
    %v2196 = vsel %vm438, %v2176, -inf
    %2197 = vmax.xlane.f32.xlu0 %v2196
    %v2198 = vpop.xlane.xlu0 %2197
    %v2199 = vsel %vm438, %v2177, -inf
    %2200 = vmax.xlane.f32.xlu0 %v2199
    %v2201 = vpop.xlane.xlu0 %2200
    %v2202 = vsub.f32 %v2170, %v2180
    %v2203 = vsub.f32 %v2171, %v2183
    %v2204 = vsub.f32 %v2172, %v2186
    %v2205 = vsub.f32 %v2173, %v2189
    %v2206 = vsub.f32 %v2174, %v2192
    %v2207 = vsub.f32 %v2175, %v2195
    %v2208 = vsub.f32 %v2176, %v2198
    %v2209 = vsub.f32 %v2177, %v2201
    %v2210 = vmul.f32 %v2202, 1.442695
    %v2211 = vpow.pop %v2210
    %v2212 = vmul.f32 %v2203, 1.442695
    %v2213 = vpow.pop %v2212
    %v2214 = vmul.f32 %v2204, 1.442695
    %v2215 = vpow.pop %v2214
    %v2216 = vmul.f32 %v2205, 1.442695
    %v2217 = vpow.pop %v2216
    %v2218 = vmul.f32 %v2206, 1.442695
    %v2219 = vpow.pop %v2218
    %v2220 = vmul.f32 %v2207, 1.442695
    %v2221 = vpow.pop %v2220
    %v2222 = vmul.f32 %v2208, 1.442695
    %v2223 = vpow.pop %v2222
    %v2224 = vmul.f32 %v2209, 1.442695
    %v2225 = vpow.pop %v2224
    %v2226 = vsel %vm438, %v2211, 0.0
    %2227 = vadd.xlane.f32.xlu0 %v2226
    %v2228 = vpop.xlane.xlu0 %2227
    %v2229 = vsel %vm438, %v2213, 0.0
    %2230 = vadd.xlane.f32.xlu0 %v2229
    %v2231 = vpop.xlane.xlu0 %2230
    %v2232 = vsel %vm438, %v2215, 0.0
    %2233 = vadd.xlane.f32.xlu0 %v2232
    %v2234 = vpop.xlane.xlu0 %2233
    %v2235 = vsel %vm438, %v2217, 0.0
    %2236 = vadd.xlane.f32.xlu0 %v2235
    %v2237 = vpop.xlane.xlu0 %2236
    %v2238 = vsel %vm438, %v2219, 0.0
    %2239 = vadd.xlane.f32.xlu0 %v2238
    %v2240 = vpop.xlane.xlu0 %2239
    %v2241 = vsel %vm438, %v2221, 0.0
    %2242 = vadd.xlane.f32.xlu0 %v2241
    %v2243 = vpop.xlane.xlu0 %2242
    %v2244 = vsel %vm438, %v2223, 0.0
    %2245 = vadd.xlane.f32.xlu0 %v2244
    %v2246 = vpop.xlane.xlu0 %2245
    %v2247 = vsel %vm438, %v2225, 0.0
    %2248 = vadd.xlane.f32.xlu0 %v2247
    %v2249 = vpop.xlane.xlu0 %2248
    %v2250 = vrcp.pop %v2228
    %v2251 = vrcp.pop %v2231
    %v2252 = vrcp.pop %v2234
    %v2253 = vrcp.pop %v2237
    %v2254 = vrcp.pop %v2240
    %v2255 = vrcp.pop %v2243
    %v2256 = vrcp.pop %v2246
    %v2257 = vrcp.pop %v2249
    %v2258 = vmul.f32 %v2211, %v2250
    %v2259 = vmul.f32 %v2213, %v2251
    %v2260 = vmul.f32 %v2215, %v2252
    %v2261 = vmul.f32 %v2217, %v2253
    %v2262 = vmul.f32 %v2219, %v2254
    %v2263 = vmul.f32 %v2221, %v2255
    %v2264 = vmul.f32 %v2223, %v2256
    %v2265 = vmul.f32 %v2225, %v2257
    %v2266 = vpack.c.bf16 %v2258, %v2258
    %v2267 = vpack.c.bf16 %v2259, %v2259
    %v2268 = vpack.c.bf16 %v2260, %v2260
    %v2269 = vpack.c.bf16 %v2261, %v2261
    %v2270 = vpack.c.bf16 %v2262, %v2262
    %v2271 = vpack.c.bf16 %v2263, %v2263
    %v2272 = vpack.c.bf16 %v2264, %v2264
    %v2273 = vpack.c.bf16 %v2265, %v2265
    %2274 = vrot.lane.b32.xlu0 %v1966, 64
    %v2275 = vpop.permute.xlu0 %2274
    %v2277 = vsel %vm438, %v2266, 0
    %v2280 = vsel %vm749, %v2275, 0
    %2282 = vmatpush.bf16.msra.mxu0 0
    %2283 = vmatpush.bf16.msra.mxu0 0
    %2284 = vmatpush.bf16.msra.mxu0 0
    %2285 = vmatpush.bf16.msra.mxu0 0
    %2286 = vmatpush.bf16.msra.mxu0 0
    %2287 = vmatpush.bf16.msra.mxu0 0
    %2288 = vmatpush.bf16.msra.mxu0 0
    %2289 = vmatpush.bf16.msra.mxu0 %v2280
    %2290 = vmatmul.bf16.gmra.mxu0 %v2277
    %v2291 = vpop.f32.mrf.mxu0
    %v2292 = vadd.f32 0.0, %v2291
    %v2293 = vpop.f32.mrf.mxu0
    %2294 = vdwg.mxu0
    %2295 = vrot.lane.b32.xlu0 %v1990, 64
    %v2296 = vpop.permute.xlu0 %2295
    %v2298 = vsel %vm438, %v2267, 0
    %v2301 = vsel %vm749, %v2296, 0
    %2303 = vmatpush.bf16.msra.mxu0 0
    %2304 = vmatpush.bf16.msra.mxu0 0
    %2305 = vmatpush.bf16.msra.mxu0 0
    %2306 = vmatpush.bf16.msra.mxu0 0
    %2307 = vmatpush.bf16.msra.mxu0 0
    %2308 = vmatpush.bf16.msra.mxu0 0
    %2309 = vmatpush.bf16.msra.mxu0 0
    %2310 = vmatpush.bf16.msra.mxu0 %v2301
    %2311 = vmatmul.bf16.gmra.mxu0 %v2298
    %v2312 = vpop.f32.mrf.mxu0
    %v2313 = vadd.f32 0.0, %v2312
    %v2314 = vpop.f32.mrf.mxu0
    %2315 = vdwg.mxu0
    %2316 = vrot.lane.b32.xlu0 %v2014, 64
    %v2317 = vpop.permute.xlu0 %2316
    %v2319 = vsel %vm438, %v2268, 0
    %v2322 = vsel %vm749, %v2317, 0
    %2324 = vmatpush.bf16.msra.mxu0 0
    %2325 = vmatpush.bf16.msra.mxu0 0
    %2326 = vmatpush.bf16.msra.mxu0 0
    %2327 = vmatpush.bf16.msra.mxu0 0
    %2328 = vmatpush.bf16.msra.mxu0 0
    %2329 = vmatpush.bf16.msra.mxu0 0
    %2330 = vmatpush.bf16.msra.mxu0 0
    %2331 = vmatpush.bf16.msra.mxu0 %v2322
    %2332 = vmatmul.bf16.gmra.mxu0 %v2319
    %v2333 = vpop.f32.mrf.mxu0
    %v2334 = vadd.f32 0.0, %v2333
    %v2335 = vpop.f32.mrf.mxu0
    %2336 = vdwg.mxu0
    %2337 = vrot.lane.b32.xlu0 %v2038, 64
    %v2338 = vpop.permute.xlu0 %2337
    %v2340 = vsel %vm438, %v2269, 0
    %v2343 = vsel %vm749, %v2338, 0
    %2345 = vmatpush.bf16.msra.mxu0 0
    %2346 = vmatpush.bf16.msra.mxu0 0
    %2347 = vmatpush.bf16.msra.mxu0 0
    %2348 = vmatpush.bf16.msra.mxu0 0
    %2349 = vmatpush.bf16.msra.mxu0 0
    %2350 = vmatpush.bf16.msra.mxu0 0
    %2351 = vmatpush.bf16.msra.mxu0 0
    %2352 = vmatpush.bf16.msra.mxu0 %v2343
    %2353 = vmatmul.bf16.gmra.mxu0 %v2340
    %v2354 = vpop.f32.mrf.mxu0
    %v2355 = vadd.f32 0.0, %v2354
    %v2356 = vpop.f32.mrf.mxu0
    %2357 = vdwg.mxu0
    %2358 = vrot.lane.b32.xlu0 %v2062, 64
    %v2359 = vpop.permute.xlu0 %2358
    %v2361 = vsel %vm438, %v2270, 0
    %v2364 = vsel %vm749, %v2359, 0
    %2366 = vmatpush.bf16.msra.mxu0 0
    %2367 = vmatpush.bf16.msra.mxu0 0
    %2368 = vmatpush.bf16.msra.mxu0 0
    %2369 = vmatpush.bf16.msra.mxu0 0
    %2370 = vmatpush.bf16.msra.mxu0 0
    %2371 = vmatpush.bf16.msra.mxu0 0
    %2372 = vmatpush.bf16.msra.mxu0 0
    %2373 = vmatpush.bf16.msra.mxu0 %v2364
    %2374 = vmatmul.bf16.gmra.mxu0 %v2361
    %v2375 = vpop.f32.mrf.mxu0
    %v2376 = vadd.f32 0.0, %v2375
    %v2377 = vpop.f32.mrf.mxu0
    %2378 = vdwg.mxu0
    %2379 = vrot.lane.b32.xlu0 %v2086, 64
    %v2380 = vpop.permute.xlu0 %2379
    %v2382 = vsel %vm438, %v2271, 0
    %v2385 = vsel %vm749, %v2380, 0
    %2387 = vmatpush.bf16.msra.mxu0 0
    %2388 = vmatpush.bf16.msra.mxu0 0
    %2389 = vmatpush.bf16.msra.mxu0 0
    %2390 = vmatpush.bf16.msra.mxu0 0
    %2391 = vmatpush.bf16.msra.mxu0 0
    %2392 = vmatpush.bf16.msra.mxu0 0
    %2393 = vmatpush.bf16.msra.mxu0 0
    %2394 = vmatpush.bf16.msra.mxu0 %v2385
    %2395 = vmatmul.bf16.gmra.mxu0 %v2382
    %v2396 = vpop.f32.mrf.mxu0
    %v2397 = vadd.f32 0.0, %v2396
    %v2398 = vpop.f32.mrf.mxu0
    %2399 = vdwg.mxu0
    %2400 = vrot.lane.b32.xlu0 %v2110, 64
    %v2401 = vpop.permute.xlu0 %2400
    %v2403 = vsel %vm438, %v2272, 0
    %v2406 = vsel %vm749, %v2401, 0
    %2408 = vmatpush.bf16.msra.mxu0 0
    %2409 = vmatpush.bf16.msra.mxu0 0
    %2410 = vmatpush.bf16.msra.mxu0 0
    %2411 = vmatpush.bf16.msra.mxu0 0
    %2412 = vmatpush.bf16.msra.mxu0 0
    %2413 = vmatpush.bf16.msra.mxu0 0
    %2414 = vmatpush.bf16.msra.mxu0 0
    %2415 = vmatpush.bf16.msra.mxu0 %v2406
    %2416 = vmatmul.bf16.gmra.mxu0 %v2403
    %v2417 = vpop.f32.mrf.mxu0
    %v2418 = vadd.f32 0.0, %v2417
    %v2419 = vpop.f32.mrf.mxu0
    %2420 = vdwg.mxu0
    %2421 = vrot.lane.b32.xlu0 %v2134, 64
    %v2422 = vpop.permute.xlu0 %2421
    %v2424 = vsel %vm438, %v2273, 0
    %v2427 = vsel %vm749, %v2422, 0
    %2429 = vmatpush.bf16.msra.mxu0 0
    %2430 = vmatpush.bf16.msra.mxu0 0
    %2431 = vmatpush.bf16.msra.mxu0 0
    %2432 = vmatpush.bf16.msra.mxu0 0
    %2433 = vmatpush.bf16.msra.mxu0 0
    %2434 = vmatpush.bf16.msra.mxu0 0
    %2435 = vmatpush.bf16.msra.mxu0 0
    %2436 = vmatpush.bf16.msra.mxu0 %v2427
    %2437 = vmatmul.bf16.gmra.mxu0 %v2424
    %v2438 = vpop.f32.mrf.mxu0
    %v2439 = vadd.f32 0.0, %v2438
    %v2440 = vpop.f32.mrf.mxu0
    %2441 = vdwg.mxu0
    %v2442 = vpack.c.bf16 %v2292, %v2292
    %v2443 = vpack.c.bf16 %v2313, %v2313
    %v2444 = vpack.c.bf16 %v2334, %v2334
    %v2445 = vpack.c.bf16 %v2355, %v2355
    %v2446 = vpack.c.bf16 %v2376, %v2376
    %v2447 = vpack.c.bf16 %v2397, %v2397
    %v2448 = vpack.c.bf16 %v2418, %v2418
    %v2449 = vpack.c.bf16 %v2439, %v2439
    %v2451 = vsel %vm438, %v2442, 0
    %v2454 = vsel %vm749, %v1951, 0
    %2456 = vmatpush.bf16.msra.mxu0 0
    %2457 = vmatpush.bf16.msra.mxu0 0
    %2458 = vmatpush.bf16.msra.mxu0 0
    %2459 = vmatpush.bf16.msra.mxu0 0
    %2460 = vmatpush.bf16.msra.mxu0 0
    %2461 = vmatpush.bf16.msra.mxu0 0
    %2462 = vmatpush.bf16.msra.mxu0 0
    %2463 = vmatpush.bf16.msra.mxu0 %v2454
    %2464 = vmatmul.bf16.gmra.mxu0 %v2451
    %v2465 = vpop.f32.mrf.mxu0
    %v2466 = vadd.f32 0.0, %v2465
    %v2467 = vpop.f32.mrf.mxu0
    %2468 = vdwg.mxu0
    %v2470 = vsel %vm438, %v2443, 0
    %v2473 = vsel %vm749, %v1952, 0
    %2475 = vmatpush.bf16.msra.mxu0 0
    %2476 = vmatpush.bf16.msra.mxu0 0
    %2477 = vmatpush.bf16.msra.mxu0 0
    %2478 = vmatpush.bf16.msra.mxu0 0
    %2479 = vmatpush.bf16.msra.mxu0 0
    %2480 = vmatpush.bf16.msra.mxu0 0
    %2481 = vmatpush.bf16.msra.mxu0 0
    %2482 = vmatpush.bf16.msra.mxu0 %v2473
    %2483 = vmatmul.bf16.gmra.mxu0 %v2470
    %v2484 = vpop.f32.mrf.mxu0
    %v2485 = vadd.f32 0.0, %v2484
    %v2486 = vpop.f32.mrf.mxu0
    %2487 = vdwg.mxu0
    %v2489 = vsel %vm438, %v2444, 0
    %v2492 = vsel %vm749, %v1953, 0
    %2494 = vmatpush.bf16.msra.mxu0 0
    %2495 = vmatpush.bf16.msra.mxu0 0
    %2496 = vmatpush.bf16.msra.mxu0 0
    %2497 = vmatpush.bf16.msra.mxu0 0
    %2498 = vmatpush.bf16.msra.mxu0 0
    %2499 = vmatpush.bf16.msra.mxu0 0
    %2500 = vmatpush.bf16.msra.mxu0 0
    %2501 = vmatpush.bf16.msra.mxu0 %v2492
    %2502 = vmatmul.bf16.gmra.mxu0 %v2489
    %v2503 = vpop.f32.mrf.mxu0
    %v2504 = vadd.f32 0.0, %v2503
    %v2505 = vpop.f32.mrf.mxu0
    %2506 = vdwg.mxu0
    %v2508 = vsel %vm438, %v2445, 0
    %v2511 = vsel %vm749, %v1954, 0
    %2513 = vmatpush.bf16.msra.mxu0 0
    %2514 = vmatpush.bf16.msra.mxu0 0
    %2515 = vmatpush.bf16.msra.mxu0 0
    %2516 = vmatpush.bf16.msra.mxu0 0
    %2517 = vmatpush.bf16.msra.mxu0 0
    %2518 = vmatpush.bf16.msra.mxu0 0
    %2519 = vmatpush.bf16.msra.mxu0 0
    %2520 = vmatpush.bf16.msra.mxu0 %v2511
    %2521 = vmatmul.bf16.gmra.mxu0 %v2508
    %v2522 = vpop.f32.mrf.mxu0
    %v2523 = vadd.f32 0.0, %v2522
    %v2524 = vpop.f32.mrf.mxu0
    %2525 = vdwg.mxu0
    %v2527 = vsel %vm438, %v2446, 0
    %2529 = vmatpush.bf16.msra.mxu0 0
    %2530 = vmatpush.bf16.msra.mxu0 0
    %2531 = vmatpush.bf16.msra.mxu0 0
    %2532 = vmatpush.bf16.msra.mxu0 0
    %2533 = vmatpush.bf16.msra.mxu0 0
    %2534 = vmatpush.bf16.msra.mxu0 0
    %2535 = vmatpush.bf16.msra.mxu0 0
    %2536 = vmatpush.bf16.msra.mxu0 %v2454
    %2537 = vmatmul.bf16.gmra.mxu0 %v2527
    %v2538 = vpop.f32.mrf.mxu0
    %v2539 = vadd.f32 0.0, %v2538
    %v2540 = vpop.f32.mrf.mxu0
    %2541 = vdwg.mxu0
    %v2543 = vsel %vm438, %v2447, 0
    %2545 = vmatpush.bf16.msra.mxu0 0
    %2546 = vmatpush.bf16.msra.mxu0 0
    %2547 = vmatpush.bf16.msra.mxu0 0
    %2548 = vmatpush.bf16.msra.mxu0 0
    %2549 = vmatpush.bf16.msra.mxu0 0
    %2550 = vmatpush.bf16.msra.mxu0 0
    %2551 = vmatpush.bf16.msra.mxu0 0
    %2552 = vmatpush.bf16.msra.mxu0 %v2473
    %2553 = vmatmul.bf16.gmra.mxu0 %v2543
    %v2554 = vpop.f32.mrf.mxu0
    %v2555 = vadd.f32 0.0, %v2554
    %v2556 = vpop.f32.mrf.mxu0
    %2557 = vdwg.mxu0
    %v2559 = vsel %vm438, %v2448, 0
    %2561 = vmatpush.bf16.msra.mxu0 0
    %2562 = vmatpush.bf16.msra.mxu0 0
    %2563 = vmatpush.bf16.msra.mxu0 0
    %2564 = vmatpush.bf16.msra.mxu0 0
    %2565 = vmatpush.bf16.msra.mxu0 0
    %2566 = vmatpush.bf16.msra.mxu0 0
    %2567 = vmatpush.bf16.msra.mxu0 0
    %2568 = vmatpush.bf16.msra.mxu0 %v2492
    %2569 = vmatmul.bf16.gmra.mxu0 %v2559
    %v2570 = vpop.f32.mrf.mxu0
    %v2571 = vadd.f32 0.0, %v2570
    %v2572 = vpop.f32.mrf.mxu0
    %2573 = vdwg.mxu0
    %v2575 = vsel %vm438, %v2449, 0
    %2577 = vmatpush.bf16.msra.mxu0 0
    %2578 = vmatpush.bf16.msra.mxu0 0
    %2579 = vmatpush.bf16.msra.mxu0 0
    %2580 = vmatpush.bf16.msra.mxu0 0
    %2581 = vmatpush.bf16.msra.mxu0 0
    %2582 = vmatpush.bf16.msra.mxu0 0
    %2583 = vmatpush.bf16.msra.mxu0 0
    %2584 = vmatpush.bf16.msra.mxu0 %v2511
    %2585 = vmatmul.bf16.gmra.mxu0 %v2575
    %v2586 = vpop.f32.mrf.mxu0
    %v2587 = vadd.f32 0.0, %v2586
    %v2588 = vpop.f32.mrf.mxu0
    %2589 = vdwg.mxu0
    %v2590 = vsel %vm382, %v2466, 0.0
    %v2591 = vsel %vm382, %v2485, 0.0
    %v2592 = vadd.f32 %v2590, %v2591
    %v2593 = vsel %vm382, %v2504, 0.0
    %v2594 = vadd.f32 %v2592, %v2593
    %v2595 = vsel %vm382, %v2523, 0.0
    %v2596 = vadd.f32 %v2594, %v2595
    %v2597 = vsel %vm382, %v2539, 0.0
    %v2598 = vsel %vm382, %v2555, 0.0
    %v2599 = vadd.f32 %v2597, %v2598
    %v2600 = vsel %vm382, %v2571, 0.0
    %v2601 = vadd.f32 %v2599, %v2600
    %v2602 = vsel %vm382, %v2587, 0.0
    %v2603 = vadd.f32 %v2601, %v2602
    %v2605 = vperm.slane %v1955, 0
    %v2607 = vadd.f32 %v2596, %v2605
    %v2608 = vadd.f32 %v2603, %v2605
    %v2609 = vld [vmem:[#allocation26] sm:$0xf]
    %v2610 = vld [vmem:[#allocation26 + $0x4] sm:$0xf]
    %v2611 = vld [vmem:[#allocation26 + $0x8] sm:$0xf]
    %v2612 = vld [vmem:[#allocation26 + $0xc] sm:$0xf]
    %v2613 = vpack.c.bf16 %v2608, %v2607
    %v2614 = vld [vmem:[%s23] sm:$0x1]
    %v2616 = vperm.slane %v2614, 0
    %v2622 = vunpack.c.l.b16 %v2609
    %v2623 = vunpack.c.l.b16 %v2610
    %v2624 = vunpack.c.l.b16 %v2611
    %v2625 = vunpack.c.l.b16 %v2612
    %v2626 = vpack.c.b16 %v2623, %v2622
    %v2627 = vpack.c.b16 %v2625, %v2624
    %v2631 = vsel %vm382, %v2613, 0
    %2633 = vmatpush.bf16.msra.mxu0 0
    %2634 = vmatpush.bf16.msra.mxu0 0
    %2635 = vmatpush.bf16.msra.mxu0 0
    %2636 = vmatpush.bf16.msra.mxu0 0
    %2637 = vmatpush.bf16.msra.mxu0 0
    %2638 = vmatpush.bf16.msra.mxu0 0
    %2639 = vmatpush.bf16.msra.mxu0 %v2627
    %2640 = vmatpush.bf16.msra.mxu0 %v2626
    %2641 = vmatmul.bf16.gmra.mxu0 %v2631
    %v2642 = vpop.f32.mrf.mxu0
    %v2643 = vadd.f32 %v2616, %v2642
    %v2644 = vpop.f32.mrf.mxu0
    %v2645 = vadd.f32 %v2616, %v2644
    %2646 = vdwg.mxu0
    %2649 = vrot.lane.b32.xlu0 %v2643, 120
    %v2650 = vpop.permute.xlu0 %2649
    %2651 = vrot.lane.b32.xlu0 %v2645, 120
    %v2652 = vpop.permute.xlu0 %2651
    %2655 = vrot.lane.b32.xlu0 %v2643, 112
    %v2656 = vpop.permute.xlu0 %2655
    %2657 = vrot.lane.b32.xlu0 %v2645, 112
    %v2658 = vpop.permute.xlu0 %2657
    %2661 = vrot.lane.b32.xlu0 %v2643, 104
    %v2662 = vpop.permute.xlu0 %2661
    %2663 = vrot.lane.b32.xlu0 %v2645, 104
    %v2664 = vpop.permute.xlu0 %2663
    %v2667 = vld [vmem:[#allocation25] sm:$0x3]
    %v2668 = vld [vmem:[%s20] sm:$0xf]
    %v2669 = vld [vmem:[%s20 + $0x4] sm:$0xf]
    %v2670 = vld [vmem:[%s20 + $0x8] sm:$0xf]
    %v2671 = vld [vmem:[%s20 + $0xc] sm:$0xf]
    %v2672 = vpack.c.bf16 %v2667, %v2667
    %v2673 = vld [vmem:[%s21] sm:$0x1]
    %v2675 = vperm.slane %v2673, 0
    %v2681 = vunpack.c.l.b16 %v2668
    %v2682 = vunpack.c.l.b16 %v2669
    %v2683 = vunpack.c.l.b16 %v2670
    %v2684 = vunpack.c.l.b16 %v2671
    %v2685 = vpack.c.b16 %v2682, %v2681
    %v2686 = vpack.c.b16 %v2684, %v2683
    %v2690 = vsel %vm382, %v2672, 0
    %2692 = vmatpush.bf16.msra.mxu0 0
    %2693 = vmatpush.bf16.msra.mxu0 0
    %2694 = vmatpush.bf16.msra.mxu0 0
    %2695 = vmatpush.bf16.msra.mxu0 0
    %2696 = vmatpush.bf16.msra.mxu0 0
    %2697 = vmatpush.bf16.msra.mxu0 0
    %2698 = vmatpush.bf16.msra.mxu0 %v2686
    %2699 = vmatpush.bf16.msra.mxu0 %v2685
    %2700 = vmatmul.bf16.gmra.mxu0 %v2690
    %v2701 = vpop.f32.mrf.mxu0
    %v2702 = vadd.f32 %v2675, %v2701
    %v2703 = vpop.f32.mrf.mxu0
    %2704 = vdwg.mxu0
    %2706 = vrot.lane.b32.xlu0 %v2702, 120
    %v2707 = vpop.permute.xlu0 %2706
    %2709 = vrot.lane.b32.xlu0 %v2702, 112
    %v2710 = vpop.permute.xlu0 %2709
    %2712 = vrot.lane.b32.xlu0 %v2702, 104
    %v2713 = vpop.permute.xlu0 %2712
    %v2715 = vld [vmem:[#allocation28] sm:$0xf]
    %v2716 = vld [vmem:[#allocation28 + $0x4] sm:$0xf]
    %v2717 = vld [vmem:[#allocation28 + $0x8] sm:$0xf]
    %v2718 = vld [vmem:[#allocation28 + $0xc] sm:$0xf]
    %v2719 = vld [vmem:[%s25] sm:$0x1]
    %v2720 = vpack.c.bf16 %v2702, %v2702
    %v2721 = vpack.c.bf16 %v2707, %v2707
    %v2722 = vpack.c.bf16 %v2710, %v2710
    %v2723 = vpack.c.bf16 %v2713, %v2713
    %v2724 = vpack.c.bf16 %v2643, %v2643
    %v2725 = vpack.c.bf16 %v2650, %v2650
    %v2726 = vpack.c.bf16 %v2656, %v2656
    %v2727 = vpack.c.bf16 %v2662, %v2662
    %v2728 = vpack.c.bf16 %v2645, %v2645
    %v2729 = vpack.c.bf16 %v2652, %v2652
    %v2730 = vpack.c.bf16 %v2658, %v2658
    %v2731 = vpack.c.bf16 %v2664, %v2664
    %v2733 = vsel %vm438, %v2720, 0
    %v2736 = vsel %vm438, %v2724, 0
    %2738 = vmatpush.bf16.xpose.msra.mxu0 0
    %2739 = vmatpush.bf16.xpose.msra.mxu0 0
    %2740 = vmatpush.bf16.xpose.msra.mxu0 0
    %2741 = vmatpush.bf16.xpose.msra.mxu0 0
    %2742 = vmatpush.bf16.xpose.msra.mxu0 0
    %2743 = vmatpush.bf16.xpose.msra.mxu0 0
    %2744 = vmatpush.bf16.xpose.msra.mxu0 0
    %2745 = vmatpush.bf16.xpose.msra.mxu0 %v2736
    %2746 = vmatmul.bf16.gmra.mxu0 %v2733
    %v2747 = vpop.f32.mrf.mxu0
    %v2748 = vadd.f32 0.0, %v2747
    %v2749 = vpop.f32.mrf.mxu0
    %2750 = vdwg.mxu0
    %v2752 = vsel %vm438, %v2721, 0
    %v2755 = vsel %vm438, %v2725, 0
    %2757 = vmatpush.bf16.xpose.msra.mxu0 0
    %2758 = vmatpush.bf16.xpose.msra.mxu0 0
    %2759 = vmatpush.bf16.xpose.msra.mxu0 0
    %2760 = vmatpush.bf16.xpose.msra.mxu0 0
    %2761 = vmatpush.bf16.xpose.msra.mxu0 0
    %2762 = vmatpush.bf16.xpose.msra.mxu0 0
    %2763 = vmatpush.bf16.xpose.msra.mxu0 0
    %2764 = vmatpush.bf16.xpose.msra.mxu0 %v2755
    %2765 = vmatmul.bf16.gmra.mxu0 %v2752
    %v2766 = vpop.f32.mrf.mxu0
    %v2767 = vadd.f32 0.0, %v2766
    %v2768 = vpop.f32.mrf.mxu0
    %2769 = vdwg.mxu0
    %v2771 = vsel %vm438, %v2722, 0
    %v2774 = vsel %vm438, %v2726, 0
    %2776 = vmatpush.bf16.xpose.msra.mxu0 0
    %2777 = vmatpush.bf16.xpose.msra.mxu0 0
    %2778 = vmatpush.bf16.xpose.msra.mxu0 0
    %2779 = vmatpush.bf16.xpose.msra.mxu0 0
    %2780 = vmatpush.bf16.xpose.msra.mxu0 0
    %2781 = vmatpush.bf16.xpose.msra.mxu0 0
    %2782 = vmatpush.bf16.xpose.msra.mxu0 0
    %2783 = vmatpush.bf16.xpose.msra.mxu0 %v2774
    %2784 = vmatmul.bf16.gmra.mxu0 %v2771
    %v2785 = vpop.f32.mrf.mxu0
    %v2786 = vadd.f32 0.0, %v2785
    %v2787 = vpop.f32.mrf.mxu0
    %2788 = vdwg.mxu0
    %v2790 = vsel %vm438, %v2723, 0
    %v2793 = vsel %vm438, %v2727, 0
    %2795 = vmatpush.bf16.xpose.msra.mxu0 0
    %2796 = vmatpush.bf16.xpose.msra.mxu0 0
    %2797 = vmatpush.bf16.xpose.msra.mxu0 0
    %2798 = vmatpush.bf16.xpose.msra.mxu0 0
    %2799 = vmatpush.bf16.xpose.msra.mxu0 0
    %2800 = vmatpush.bf16.xpose.msra.mxu0 0
    %2801 = vmatpush.bf16.xpose.msra.mxu0 0
    %2802 = vmatpush.bf16.xpose.msra.mxu0 %v2793
    %2803 = vmatmul.bf16.gmra.mxu0 %v2790
    %v2804 = vpop.f32.mrf.mxu0
    %v2805 = vadd.f32 0.0, %v2804
    %v2806 = vpop.f32.mrf.mxu0
    %2807 = vdwg.mxu0
    %v2809 = vsel %vm438, %v2728, 0
    %2811 = vmatpush.bf16.xpose.msra.mxu0 0
    %2812 = vmatpush.bf16.xpose.msra.mxu0 0
    %2813 = vmatpush.bf16.xpose.msra.mxu0 0
    %2814 = vmatpush.bf16.xpose.msra.mxu0 0
    %2815 = vmatpush.bf16.xpose.msra.mxu0 0
    %2816 = vmatpush.bf16.xpose.msra.mxu0 0
    %2817 = vmatpush.bf16.xpose.msra.mxu0 0
    %2818 = vmatpush.bf16.xpose.msra.mxu0 %v2809
    %2819 = vmatmul.bf16.gmra.mxu0 %v2733
    %v2820 = vpop.f32.mrf.mxu0
    %v2821 = vadd.f32 0.0, %v2820
    %v2822 = vpop.f32.mrf.mxu0
    %2823 = vdwg.mxu0
    %v2825 = vsel %vm438, %v2729, 0
    %2827 = vmatpush.bf16.xpose.msra.mxu0 0
    %2828 = vmatpush.bf16.xpose.msra.mxu0 0
    %2829 = vmatpush.bf16.xpose.msra.mxu0 0
    %2830 = vmatpush.bf16.xpose.msra.mxu0 0
    %2831 = vmatpush.bf16.xpose.msra.mxu0 0
    %2832 = vmatpush.bf16.xpose.msra.mxu0 0
    %2833 = vmatpush.bf16.xpose.msra.mxu0 0
    %2834 = vmatpush.bf16.xpose.msra.mxu0 %v2825
    %2835 = vmatmul.bf16.gmra.mxu0 %v2752
    %v2836 = vpop.f32.mrf.mxu0
    %v2837 = vadd.f32 0.0, %v2836
    %v2838 = vpop.f32.mrf.mxu0
    %2839 = vdwg.mxu0
    %v2841 = vsel %vm438, %v2730, 0
    %2843 = vmatpush.bf16.xpose.msra.mxu0 0
    %2844 = vmatpush.bf16.xpose.msra.mxu0 0
    %2845 = vmatpush.bf16.xpose.msra.mxu0 0
    %2846 = vmatpush.bf16.xpose.msra.mxu0 0
    %2847 = vmatpush.bf16.xpose.msra.mxu0 0
    %2848 = vmatpush.bf16.xpose.msra.mxu0 0
    %2849 = vmatpush.bf16.xpose.msra.mxu0 0
    %2850 = vmatpush.bf16.xpose.msra.mxu0 %v2841
    %2851 = vmatmul.bf16.gmra.mxu0 %v2771
    %v2852 = vpop.f32.mrf.mxu0
    %v2853 = vadd.f32 0.0, %v2852
    %v2854 = vpop.f32.mrf.mxu0
    %2855 = vdwg.mxu0
    %v2857 = vsel %vm438, %v2731, 0
    %2859 = vmatpush.bf16.xpose.msra.mxu0 0
    %2860 = vmatpush.bf16.xpose.msra.mxu0 0
    %2861 = vmatpush.bf16.xpose.msra.mxu0 0
    %2862 = vmatpush.bf16.xpose.msra.mxu0 0
    %2863 = vmatpush.bf16.xpose.msra.mxu0 0
    %2864 = vmatpush.bf16.xpose.msra.mxu0 0
    %2865 = vmatpush.bf16.xpose.msra.mxu0 0
    %2866 = vmatpush.bf16.xpose.msra.mxu0 %v2857
    %2867 = vmatmul.bf16.gmra.mxu0 %v2790
    %v2868 = vpop.f32.mrf.mxu0
    %v2869 = vadd.f32 0.0, %v2868
    %v2870 = vpop.f32.mrf.mxu0
    %2871 = vdwg.mxu0
    %v2872 = vmul.f32 %v2748, 0.35355338
    %v2873 = vmul.f32 %v2767, 0.35355338
    %v2874 = vmul.f32 %v2786, 0.35355338
    %v2875 = vmul.f32 %v2805, 0.35355338
    %v2876 = vmul.f32 %v2821, 0.35355338
    %v2877 = vmul.f32 %v2837, 0.35355338
    %v2878 = vmul.f32 %v2853, 0.35355338
    %v2879 = vmul.f32 %v2869, 0.35355338
    %v2880 = vadd.f32 %v2872, %v2166
    %v2881 = vadd.f32 %v2873, %v2166
    %v2882 = vadd.f32 %v2874, %v2166
    %v2883 = vadd.f32 %v2875, %v2166
    %v2884 = vadd.f32 %v2876, %v2167
    %v2885 = vadd.f32 %v2877, %v2167
    %v2886 = vadd.f32 %v2878, %v2167
    %v2887 = vadd.f32 %v2879, %v2167
    %v2888 = vsel %vm1359, %v2880, -inf
    %2889 = vmax.xlane.f32.xlu0 %v2888
    %v2890 = vpop.xlane.xlu0 %2889
    %v2891 = vsel %vm1359, %v2881, -inf
    %2892 = vmax.xlane.f32.xlu0 %v2891
    %v2893 = vpop.xlane.xlu0 %2892
    %v2894 = vsel %vm1359, %v2882, -inf
    %2895 = vmax.xlane.f32.xlu0 %v2894
    %v2896 = vpop.xlane.xlu0 %2895
    %v2897 = vsel %vm1359, %v2883, -inf
    %2898 = vmax.xlane.f32.xlu0 %v2897
    %v2899 = vpop.xlane.xlu0 %2898
    %v2900 = vsel %vm1359, %v2884, -inf
    %2901 = vmax.xlane.f32.xlu0 %v2900
    %v2902 = vpop.xlane.xlu0 %2901
    %v2903 = vsel %vm1359, %v2885, -inf
    %2904 = vmax.xlane.f32.xlu0 %v2903
    %v2905 = vpop.xlane.xlu0 %2904
    %v2906 = vsel %vm1359, %v2886, -inf
    %2907 = vmax.xlane.f32.xlu0 %v2906
    %v2908 = vpop.xlane.xlu0 %2907
    %v2909 = vsel %vm1359, %v2887, -inf
    %2910 = vmax.xlane.f32.xlu0 %v2909
    %v2911 = vpop.xlane.xlu0 %2910
    %v2912 = vsub.f32 %v2880, %v2890
    %v2913 = vsub.f32 %v2881, %v2893
    %v2914 = vsub.f32 %v2882, %v2896
    %v2915 = vsub.f32 %v2883, %v2899
    %v2916 = vsub.f32 %v2884, %v2902
    %v2917 = vsub.f32 %v2885, %v2905
    %v2918 = vsub.f32 %v2886, %v2908
    %v2919 = vsub.f32 %v2887, %v2911
    %v2920 = vmul.f32 %v2912, 1.442695
    %v2921 = vpow.pop %v2920
    %v2922 = vmul.f32 %v2913, 1.442695
    %v2923 = vpow.pop %v2922
    %v2924 = vmul.f32 %v2914, 1.442695
    %v2925 = vpow.pop %v2924
    %v2926 = vmul.f32 %v2915, 1.442695
    %v2927 = vpow.pop %v2926
    %v2928 = vmul.f32 %v2916, 1.442695
    %v2929 = vpow.pop %v2928
    %v2930 = vmul.f32 %v2917, 1.442695
    %v2931 = vpow.pop %v2930
    %v2932 = vmul.f32 %v2918, 1.442695
    %v2933 = vpow.pop %v2932
    %v2934 = vmul.f32 %v2919, 1.442695
    %v2935 = vpow.pop %v2934
    %v2936 = vsel %vm1359, %v2921, 0.0
    %2937 = vadd.xlane.f32.xlu0 %v2936
    %v2938 = vpop.xlane.xlu0 %2937
    %v2939 = vsel %vm1359, %v2923, 0.0
    %2940 = vadd.xlane.f32.xlu0 %v2939
    %v2941 = vpop.xlane.xlu0 %2940
    %v2942 = vsel %vm1359, %v2925, 0.0
    %2943 = vadd.xlane.f32.xlu0 %v2942
    %v2944 = vpop.xlane.xlu0 %2943
    %v2945 = vsel %vm1359, %v2927, 0.0
    %2946 = vadd.xlane.f32.xlu0 %v2945
    %v2947 = vpop.xlane.xlu0 %2946
    %v2948 = vsel %vm1359, %v2929, 0.0
    %2949 = vadd.xlane.f32.xlu0 %v2948
    %v2950 = vpop.xlane.xlu0 %2949
    %v2951 = vsel %vm1359, %v2931, 0.0
    %2952 = vadd.xlane.f32.xlu0 %v2951
    %v2953 = vpop.xlane.xlu0 %2952
    %v2954 = vsel %vm1359, %v2933, 0.0
    %2955 = vadd.xlane.f32.xlu0 %v2954
    %v2956 = vpop.xlane.xlu0 %2955
    %v2957 = vsel %vm1359, %v2935, 0.0
    %2958 = vadd.xlane.f32.xlu0 %v2957
    %v2959 = vpop.xlane.xlu0 %2958
    %v2960 = vrcp.pop %v2938
    %v2961 = vrcp.pop %v2941
    %v2962 = vrcp.pop %v2944
    %v2963 = vrcp.pop %v2947
    %v2964 = vrcp.pop %v2950
    %v2965 = vrcp.pop %v2953
    %v2966 = vrcp.pop %v2956
    %v2967 = vrcp.pop %v2959
    %v2968 = vmul.f32 %v2921, %v2960
    %v2969 = vmul.f32 %v2923, %v2961
    %v2970 = vmul.f32 %v2925, %v2962
    %v2971 = vmul.f32 %v2927, %v2963
    %v2972 = vmul.f32 %v2929, %v2964
    %v2973 = vmul.f32 %v2931, %v2965
    %v2974 = vmul.f32 %v2933, %v2966
    %v2975 = vmul.f32 %v2935, %v2967
    %v2976 = vpack.c.bf16 %v2968, %v2968
    %v2977 = vpack.c.bf16 %v2969, %v2969
    %v2978 = vpack.c.bf16 %v2970, %v2970
    %v2979 = vpack.c.bf16 %v2971, %v2971
    %v2980 = vpack.c.bf16 %v2972, %v2972
    %v2981 = vpack.c.bf16 %v2973, %v2973
    %v2982 = vpack.c.bf16 %v2974, %v2974
    %v2983 = vpack.c.bf16 %v2975, %v2975
    %v2985 = vunpack.c.l.b16 %v2724
    %v2986 = vpack.c.b16 %v2985, %v2985
    %2987 = vrot.lane.b32.xlu0 %v2986, 96
    %v2988 = vpop.permute.xlu0 %2987
    %v2990 = vsel %vm438, %v2976, 0
    %v2993 = vsel %vm749, %v2988, 0
    %2995 = vmatpush.bf16.msra.mxu0 0
    %2996 = vmatpush.bf16.msra.mxu0 0
    %2997 = vmatpush.bf16.msra.mxu0 0
    %2998 = vmatpush.bf16.msra.mxu0 0
    %2999 = vmatpush.bf16.msra.mxu0 0
    %3000 = vmatpush.bf16.msra.mxu0 0
    %3001 = vmatpush.bf16.msra.mxu0 0
    %3002 = vmatpush.bf16.msra.mxu0 %v2993
    %3003 = vmatmul.bf16.gmra.mxu0 %v2990
    %v3004 = vpop.f32.mrf.mxu0
    %v3005 = vadd.f32 0.0, %v3004
    %v3006 = vpop.f32.mrf.mxu0
    %3007 = vdwg.mxu0
    %v3009 = vunpack.c.l.b16 %v2725
    %v3010 = vpack.c.b16 %v3009, %v3009
    %3011 = vrot.lane.b32.xlu0 %v3010, 96
    %v3012 = vpop.permute.xlu0 %3011
    %v3014 = vsel %vm438, %v2977, 0
    %v3017 = vsel %vm749, %v3012, 0
    %3019 = vmatpush.bf16.msra.mxu0 0
    %3020 = vmatpush.bf16.msra.mxu0 0
    %3021 = vmatpush.bf16.msra.mxu0 0
    %3022 = vmatpush.bf16.msra.mxu0 0
    %3023 = vmatpush.bf16.msra.mxu0 0
    %3024 = vmatpush.bf16.msra.mxu0 0
    %3025 = vmatpush.bf16.msra.mxu0 0
    %3026 = vmatpush.bf16.msra.mxu0 %v3017
    %3027 = vmatmul.bf16.gmra.mxu0 %v3014
    %v3028 = vpop.f32.mrf.mxu0
    %v3029 = vadd.f32 0.0, %v3028
    %v3030 = vpop.f32.mrf.mxu0
    %3031 = vdwg.mxu0
    %v3033 = vunpack.c.l.b16 %v2726
    %v3034 = vpack.c.b16 %v3033, %v3033
    %3035 = vrot.lane.b32.xlu0 %v3034, 96
    %v3036 = vpop.permute.xlu0 %3035
    %v3038 = vsel %vm438, %v2978, 0
    %v3041 = vsel %vm749, %v3036, 0
    %3043 = vmatpush.bf16.msra.mxu0 0
    %3044 = vmatpush.bf16.msra.mxu0 0
    %3045 = vmatpush.bf16.msra.mxu0 0
    %3046 = vmatpush.bf16.msra.mxu0 0
    %3047 = vmatpush.bf16.msra.mxu0 0
    %3048 = vmatpush.bf16.msra.mxu0 0
    %3049 = vmatpush.bf16.msra.mxu0 0
    %3050 = vmatpush.bf16.msra.mxu0 %v3041
    %3051 = vmatmul.bf16.gmra.mxu0 %v3038
    %v3052 = vpop.f32.mrf.mxu0
    %v3053 = vadd.f32 0.0, %v3052
    %v3054 = vpop.f32.mrf.mxu0
    %3055 = vdwg.mxu0
    %v3057 = vunpack.c.l.b16 %v2727
    %v3058 = vpack.c.b16 %v3057, %v3057
    %3059 = vrot.lane.b32.xlu0 %v3058, 96
    %v3060 = vpop.permute.xlu0 %3059
    %v3062 = vsel %vm438, %v2979, 0
    %v3065 = vsel %vm749, %v3060, 0
    %3067 = vmatpush.bf16.msra.mxu0 0
    %3068 = vmatpush.bf16.msra.mxu0 0
    %3069 = vmatpush.bf16.msra.mxu0 0
    %3070 = vmatpush.bf16.msra.mxu0 0
    %3071 = vmatpush.bf16.msra.mxu0 0
    %3072 = vmatpush.bf16.msra.mxu0 0
    %3073 = vmatpush.bf16.msra.mxu0 0
    %3074 = vmatpush.bf16.msra.mxu0 %v3065
    %3075 = vmatmul.bf16.gmra.mxu0 %v3062
    %v3076 = vpop.f32.mrf.mxu0
    %v3077 = vadd.f32 0.0, %v3076
    %v3078 = vpop.f32.mrf.mxu0
    %3079 = vdwg.mxu0
    %v3081 = vunpack.c.l.b16 %v2728
    %v3082 = vpack.c.b16 %v3081, %v3081
    %3083 = vrot.lane.b32.xlu0 %v3082, 96
    %v3084 = vpop.permute.xlu0 %3083
    %v3086 = vsel %vm438, %v2980, 0
    %v3089 = vsel %vm749, %v3084, 0
    %3091 = vmatpush.bf16.msra.mxu0 0
    %3092 = vmatpush.bf16.msra.mxu0 0
    %3093 = vmatpush.bf16.msra.mxu0 0
    %3094 = vmatpush.bf16.msra.mxu0 0
    %3095 = vmatpush.bf16.msra.mxu0 0
    %3096 = vmatpush.bf16.msra.mxu0 0
    %3097 = vmatpush.bf16.msra.mxu0 0
    %3098 = vmatpush.bf16.msra.mxu0 %v3089
    %3099 = vmatmul.bf16.gmra.mxu0 %v3086
    %v3100 = vpop.f32.mrf.mxu0
    %v3101 = vadd.f32 0.0, %v3100
    %v3102 = vpop.f32.mrf.mxu0
    %3103 = vdwg.mxu0
    %v3105 = vunpack.c.l.b16 %v2729
    %v3106 = vpack.c.b16 %v3105, %v3105
    %3107 = vrot.lane.b32.xlu0 %v3106, 96
    %v3108 = vpop.permute.xlu0 %3107
    %v3110 = vsel %vm438, %v2981, 0
    %v3113 = vsel %vm749, %v3108, 0
    %3115 = vmatpush.bf16.msra.mxu0 0
    %3116 = vmatpush.bf16.msra.mxu0 0
    %3117 = vmatpush.bf16.msra.mxu0 0
    %3118 = vmatpush.bf16.msra.mxu0 0
    %3119 = vmatpush.bf16.msra.mxu0 0
    %3120 = vmatpush.bf16.msra.mxu0 0
    %3121 = vmatpush.bf16.msra.mxu0 0
    %3122 = vmatpush.bf16.msra.mxu0 %v3113
    %3123 = vmatmul.bf16.gmra.mxu0 %v3110
    %v3124 = vpop.f32.mrf.mxu0
    %v3125 = vadd.f32 0.0, %v3124
    %v3126 = vpop.f32.mrf.mxu0
    %3127 = vdwg.mxu0
    %v3129 = vunpack.c.l.b16 %v2730
    %v3130 = vpack.c.b16 %v3129, %v3129
    %3131 = vrot.lane.b32.xlu0 %v3130, 96
    %v3132 = vpop.permute.xlu0 %3131
    %v3134 = vsel %vm438, %v2982, 0
    %v3137 = vsel %vm749, %v3132, 0
    %3139 = vmatpush.bf16.msra.mxu0 0
    %3140 = vmatpush.bf16.msra.mxu0 0
    %3141 = vmatpush.bf16.msra.mxu0 0
    %3142 = vmatpush.bf16.msra.mxu0 0
    %3143 = vmatpush.bf16.msra.mxu0 0
    %3144 = vmatpush.bf16.msra.mxu0 0
    %3145 = vmatpush.bf16.msra.mxu0 0
    %3146 = vmatpush.bf16.msra.mxu0 %v3137
    %3147 = vmatmul.bf16.gmra.mxu0 %v3134
    %v3148 = vpop.f32.mrf.mxu0
    %v3149 = vadd.f32 0.0, %v3148
    %v3150 = vpop.f32.mrf.mxu0
    %3151 = vdwg.mxu0
    %v3153 = vunpack.c.l.b16 %v2731
    %v3154 = vpack.c.b16 %v3153, %v3153
    %3155 = vrot.lane.b32.xlu0 %v3154, 96
    %v3156 = vpop.permute.xlu0 %3155
    %v3158 = vsel %vm438, %v2983, 0
    %v3161 = vsel %vm749, %v3156, 0
    %3163 = vmatpush.bf16.msra.mxu0 0
    %3164 = vmatpush.bf16.msra.mxu0 0
    %3165 = vmatpush.bf16.msra.mxu0 0
    %3166 = vmatpush.bf16.msra.mxu0 0
    %3167 = vmatpush.bf16.msra.mxu0 0
    %3168 = vmatpush.bf16.msra.mxu0 0
    %3169 = vmatpush.bf16.msra.mxu0 0
    %3170 = vmatpush.bf16.msra.mxu0 %v3161
    %3171 = vmatmul.bf16.gmra.mxu0 %v3158
    %v3172 = vpop.f32.mrf.mxu0
    %v3173 = vadd.f32 0.0, %v3172
    %v3174 = vpop.f32.mrf.mxu0
    %3175 = vdwg.mxu0
    %v3176 = vpack.c.bf16 %v3005, %v3005
    %v3177 = vpack.c.bf16 %v3029, %v3029
    %v3178 = vpack.c.bf16 %v3053, %v3053
    %v3179 = vpack.c.bf16 %v3077, %v3077
    %v3180 = vpack.c.bf16 %v3101, %v3101
    %v3181 = vpack.c.bf16 %v3125, %v3125
    %v3182 = vpack.c.bf16 %v3149, %v3149
    %v3183 = vpack.c.bf16 %v3173, %v3173
    %v3185 = vsel %vm438, %v3176, 0
    %v3188 = vsel %vm749, %v2715, 0
    %3190 = vmatpush.bf16.msra.mxu0 0
    %3191 = vmatpush.bf16.msra.mxu0 0
    %3192 = vmatpush.bf16.msra.mxu0 0
    %3193 = vmatpush.bf16.msra.mxu0 0
    %3194 = vmatpush.bf16.msra.mxu0 0
    %3195 = vmatpush.bf16.msra.mxu0 0
    %3196 = vmatpush.bf16.msra.mxu0 0
    %3197 = vmatpush.bf16.msra.mxu0 %v3188
    %3198 = vmatmul.bf16.gmra.mxu0 %v3185
    %v3199 = vpop.f32.mrf.mxu0
    %v3200 = vadd.f32 0.0, %v3199
    %v3201 = vpop.f32.mrf.mxu0
    %3202 = vdwg.mxu0
    %v3204 = vsel %vm438, %v3177, 0
    %v3207 = vsel %vm749, %v2716, 0
    %3209 = vmatpush.bf16.msra.mxu0 0
    %3210 = vmatpush.bf16.msra.mxu0 0
    %3211 = vmatpush.bf16.msra.mxu0 0
    %3212 = vmatpush.bf16.msra.mxu0 0
    %3213 = vmatpush.bf16.msra.mxu0 0
    %3214 = vmatpush.bf16.msra.mxu0 0
    %3215 = vmatpush.bf16.msra.mxu0 0
    %3216 = vmatpush.bf16.msra.mxu0 %v3207
    %3217 = vmatmul.bf16.gmra.mxu0 %v3204
    %v3218 = vpop.f32.mrf.mxu0
    %v3219 = vadd.f32 0.0, %v3218
    %v3220 = vpop.f32.mrf.mxu0
    %3221 = vdwg.mxu0
    %v3223 = vsel %vm438, %v3178, 0
    %v3226 = vsel %vm749, %v2717, 0
    %3228 = vmatpush.bf16.msra.mxu0 0
    %3229 = vmatpush.bf16.msra.mxu0 0
    %3230 = vmatpush.bf16.msra.mxu0 0
    %3231 = vmatpush.bf16.msra.mxu0 0
    %3232 = vmatpush.bf16.msra.mxu0 0
    %3233 = vmatpush.bf16.msra.mxu0 0
    %3234 = vmatpush.bf16.msra.mxu0 0
    %3235 = vmatpush.bf16.msra.mxu0 %v3226
    %3236 = vmatmul.bf16.gmra.mxu0 %v3223
    %v3237 = vpop.f32.mrf.mxu0
    %v3238 = vadd.f32 0.0, %v3237
    %v3239 = vpop.f32.mrf.mxu0
    %3240 = vdwg.mxu0
    %v3242 = vsel %vm438, %v3179, 0
    %v3245 = vsel %vm749, %v2718, 0
    %3247 = vmatpush.bf16.msra.mxu0 0
    %3248 = vmatpush.bf16.msra.mxu0 0
    %3249 = vmatpush.bf16.msra.mxu0 0
    %3250 = vmatpush.bf16.msra.mxu0 0
    %3251 = vmatpush.bf16.msra.mxu0 0
    %3252 = vmatpush.bf16.msra.mxu0 0
    %3253 = vmatpush.bf16.msra.mxu0 0
    %3254 = vmatpush.bf16.msra.mxu0 %v3245
    %3255 = vmatmul.bf16.gmra.mxu0 %v3242
    %v3256 = vpop.f32.mrf.mxu0
    %v3257 = vadd.f32 0.0, %v3256
    %v3258 = vpop.f32.mrf.mxu0
    %3259 = vdwg.mxu0
    %v3261 = vsel %vm438, %v3180, 0
    %3263 = vmatpush.bf16.msra.mxu0 0
    %3264 = vmatpush.bf16.msra.mxu0 0
    %3265 = vmatpush.bf16.msra.mxu0 0
    %3266 = vmatpush.bf16.msra.mxu0 0
    %3267 = vmatpush.bf16.msra.mxu0 0
    %3268 = vmatpush.bf16.msra.mxu0 0
    %3269 = vmatpush.bf16.msra.mxu0 0
    %3270 = vmatpush.bf16.msra.mxu0 %v3188
    %3271 = vmatmul.bf16.gmra.mxu0 %v3261
    %v3272 = vpop.f32.mrf.mxu0
    %v3273 = vadd.f32 0.0, %v3272
    %v3274 = vpop.f32.mrf.mxu0
    %3275 = vdwg.mxu0
    %v3277 = vsel %vm438, %v3181, 0
    %3279 = vmatpush.bf16.msra.mxu0 0
    %3280 = vmatpush.bf16.msra.mxu0 0
    %3281 = vmatpush.bf16.msra.mxu0 0
    %3282 = vmatpush.bf16.msra.mxu0 0
    %3283 = vmatpush.bf16.msra.mxu0 0
    %3284 = vmatpush.bf16.msra.mxu0 0
    %3285 = vmatpush.bf16.msra.mxu0 0
    %3286 = vmatpush.bf16.msra.mxu0 %v3207
    %3287 = vmatmul.bf16.gmra.mxu0 %v3277
    %v3288 = vpop.f32.mrf.mxu0
    %v3289 = vadd.f32 0.0, %v3288
    %v3290 = vpop.f32.mrf.mxu0
    %3291 = vdwg.mxu0
    %v3293 = vsel %vm438, %v3182, 0
    %3295 = vmatpush.bf16.msra.mxu0 0
    %3296 = vmatpush.bf16.msra.mxu0 0
    %3297 = vmatpush.bf16.msra.mxu0 0
    %3298 = vmatpush.bf16.msra.mxu0 0
    %3299 = vmatpush.bf16.msra.mxu0 0
    %3300 = vmatpush.bf16.msra.mxu0 0
    %3301 = vmatpush.bf16.msra.mxu0 0
    %3302 = vmatpush.bf16.msra.mxu0 %v3226
    %3303 = vmatmul.bf16.gmra.mxu0 %v3293
    %v3304 = vpop.f32.mrf.mxu0
    %v3305 = vadd.f32 0.0, %v3304
    %v3306 = vpop.f32.mrf.mxu0
    %3307 = vdwg.mxu0
    %v3309 = vsel %vm438, %v3183, 0
    %3311 = vmatpush.bf16.msra.mxu0 0
    %3312 = vmatpush.bf16.msra.mxu0 0
    %3313 = vmatpush.bf16.msra.mxu0 0
    %3314 = vmatpush.bf16.msra.mxu0 0
    %3315 = vmatpush.bf16.msra.mxu0 0
    %3316 = vmatpush.bf16.msra.mxu0 0
    %3317 = vmatpush.bf16.msra.mxu0 0
    %3318 = vmatpush.bf16.msra.mxu0 %v3245
    %3319 = vmatmul.bf16.gmra.mxu0 %v3309
    %v3320 = vpop.f32.mrf.mxu0
    %v3321 = vadd.f32 0.0, %v3320
    %v3322 = vpop.f32.mrf.mxu0
    %3323 = vdwg.mxu0
    %v3324 = vsel %vm1796, %v3200, 0.0
    %v3325 = vsel %vm1796, %v3219, 0.0
    %v3326 = vadd.f32 %v3324, %v3325
    %v3327 = vsel %vm1796, %v3238, 0.0
    %v3328 = vadd.f32 %v3326, %v3327
    %v3329 = vsel %vm1796, %v3257, 0.0
    %v3330 = vadd.f32 %v3328, %v3329
    %v3331 = vsel %vm1796, %v3273, 0.0
    %v3332 = vsel %vm1796, %v3289, 0.0
    %v3333 = vadd.f32 %v3331, %v3332
    %v3334 = vsel %vm1796, %v3305, 0.0
    %v3335 = vadd.f32 %v3333, %v3334
    %v3336 = vsel %vm1796, %v3321, 0.0
    %v3337 = vadd.f32 %v3335, %v3336
    %v3339 = vperm.slane %v2719, 0
    %v3341 = vadd.f32 %v3330, %v3339
    %v3342 = vadd.f32 %v3337, %v3339
    %v3343 = vpack.c.bf16 %v3341, %v3341
    %v3344 = vpack.c.bf16 %v3342, %v3342
    %v3347 = vunpack.c.l.b16 %v3343
    %v3348 = vunpack.c.l.b16 %v3344
    %v3349 = vrot.slane %v3348, 7
    %v3350 = vsel %vm1823, %v3349, %v3347
    %v3351 = vpack.c.b16 %v3350, %v3350
    %v3356 = vunpack.c.l.b16 %v345
    %v3357 = vunpack.c.l.b16 %v346
    %v3358 = vunpack.c.l.b16 %v347
    %v3359 = vunpack.c.l.b16 %v348
    %v3360 = vpack.c.b16 %v3357, %v3356
    %v3361 = vpack.c.b16 %v3359, %v3358
    %v3365 = vsel %vm382, %v3351, 0
    %3367 = vmatpush.bf16.msra.mxu0 0
    %3368 = vmatpush.bf16.msra.mxu0 0
    %3369 = vmatpush.bf16.msra.mxu0 0
    %3370 = vmatpush.bf16.msra.mxu0 0
    %3371 = vmatpush.bf16.msra.mxu0 0
    %3372 = vmatpush.bf16.msra.mxu0 0
    %3373 = vmatpush.bf16.msra.mxu0 %v3361
    %3374 = vmatpush.bf16.msra.mxu0 %v3360
    %3375 = vmatmul.bf16.gmra.mxu0 %v3365
    %v3376 = vpop.f32.mrf.mxu0
    %v3377 = vadd.f32 0.0, %v3376
    %v3378 = vpop.f32.mrf.mxu0
    %3379 = vdwg.mxu0
    %v3380 = vadd.f32 %v1882, %v3377
    %v3381 = vrot.slane %v3347, 1
    %v3382 = vsel %vm1823, %v3348, %v3381
    %v3383 = vpack.c.b16 %v3382, %v3382
    %v3388 = vunpack.c.l.b16 %v349
    %v3389 = vunpack.c.l.b16 %v350
    %v3390 = vunpack.c.l.b16 %v351
    %v3391 = vunpack.c.l.b16 %v352
    %v3392 = vpack.c.b16 %v3389, %v3388
    %v3393 = vpack.c.b16 %v3391, %v3390
    %v3397 = vsel %vm382, %v3383, 0
    %3399 = vmatpush.bf16.msra.mxu0 0
    %3400 = vmatpush.bf16.msra.mxu0 0
    %3401 = vmatpush.bf16.msra.mxu0 0
    %3402 = vmatpush.bf16.msra.mxu0 0
    %3403 = vmatpush.bf16.msra.mxu0 0
    %3404 = vmatpush.bf16.msra.mxu0 0
    %3405 = vmatpush.bf16.msra.mxu0 %v3393
    %3406 = vmatpush.bf16.msra.mxu0 %v3392
    %3407 = vmatmul.bf16.gmra.mxu0 %v3397
    %v3408 = vpop.f32.mrf.mxu0
    %v3409 = vadd.f32 0.0, %v3408
    %v3410 = vpop.f32.mrf.mxu0
    %3411 = vdwg.mxu0
    %v3412 = vadd.f32 %v3380, %v3409
    %v3413 = vld [vmem:[%s27] sm:$0x1]
    %v3415 = vperm.slane %v3413, 0
    %v3417 = vadd.f32 %v3412, %v3415
    %vm3418 = vcmask 25600
    %3419 = vst.msk [vmem:[#allocation29] sm:$0x3] %vm3418, %v3417
    // Predicated region
    $region182: #{tpu_custom_call.1} parent=1 // pred_check
      _
    $region183: #{tpu_custom_call.1} parent=1 // pred_check_branch
      %3421 = sbr.rel (0) target = $region185
    $region184: #{tpu_custom_call.1} parent=1 // pred_region
      %3423 = vsyncadd [#allocation4], 0
      %s3425 = sshll.u32 [#allocation29], 4
      %s3426 = int_to_ptr.vmem [resolvable:$true] %s3425
      %s3427 = sshll.u32 %s28, 4
      %s3428 = int_to_ptr.hbm [resolvable:$true] %s3427
      %3430 = dma.vmem_to_hbm [thread:$0]  %s3426, 32, %s3428, [#allocation4]
    $region185: #{tpu_custom_call.1} parent=1 // pred_fallthru
      _
    // Predicated region
    $region186: #{tpu_custom_call.1} parent=1 // pred_check
      _
    $region187: #{tpu_custom_call.1} parent=1 // pred_check_branch
      %3432 = sbr.rel (0) target = $region189
    $region188: #{tpu_custom_call.1} parent=1 // pred_region
      %3434 = dma.done [#allocation4], 32
    $region189: #{tpu_custom_call.1} parent=1 // pred_fallthru
      _
    %3435 = vsyncpa [#allocation3], 1
    %3436 = vsyncpa [#allocation6], 1
    %3437 = vsyncpa [#allocation9], 1
    %3438 = vsyncpa [#allocation12], 1
    %3439 = vsyncpa [#allocation15], 1
    %3440 = vsyncpa [#allocation18], 1
    %3441 = vsyncpa [#allocation21], 1
    %3442 = vsyncpa [#allocation24], 1
    %3443 = vsyncpa [#allocation27], 1
    %3444 = vsyncpa [#allocation4], 1

</llo_original>
